<compile_context>
chip_gen: v5e
topology: v5e:2x2
jax: 0.10.0
libtpu: 0.0.40
codegen_flags: <defaults>
</compile_context>

<pallas_src>
import numpy as np
import jax
import jax.numpy as jnp
from jax.experimental import pallas as pl
from jax.experimental.pallas import tpu as pltpu

# ---- small, lane-dense, self-consistent dims (real module: FEAT=1000, EMB=500)
C, HH, WW = 3, 16, 16
CHW = C * HH * WW            # 768, flattened frame
FEAT = 256                   # stand-in "resnet" feature dim
EMB = FEAT // 2              # 128 = EMBENDING_DIM (conv1 stride-2 halves FEAT)
H = EMB // 2                 # 64  BiLSTM hidden size per direction
H2 = 2 * H                   # 128 fwd+bwd concatenated hidden (= EMB)
G8 = 8 * H                   # 512 fused bidirectional gate width
NFRAMES = 4
BATCH = 1                    # the as-written torch forward only runs for batch=1


# ---- unfused LSTM cell math (used by the pure-JAX reference only) ------------
def _lstm_cell(x, h, c, w_ih_t, w_hh_t, b):
    # x: (1, in), h/c: (1, H), w_ih_t: (in, 4H), w_hh_t: (H, 4H), b: (1, 4H)
    gates = (jnp.dot(x, w_ih_t, preferred_element_type=jnp.float32)
             + jnp.dot(h, w_hh_t, preferred_element_type=jnp.float32)
             + b)
    ig = jax.nn.sigmoid(gates[:, 0 * H:1 * H])
    fg = jax.nn.sigmoid(gates[:, 1 * H:2 * H])
    gg = jnp.tanh(gates[:, 2 * H:3 * H])
    og = jax.nn.sigmoid(gates[:, 3 * H:4 * H])
    c_new = fg * c + ig * gg
    h_new = og * jnp.tanh(c_new)
    return h_new, c_new


# ---- single fused kernel: features + conv chain + BiLSTM + projection --------
def video_encoder_kernel(img_ref, wres_ref, bres_ref,
                         a1_ref, b1_ref, a2_ref, b2_ref, a3_ref, b3_ref,
                         wih0_ref, whh0_ref, bl0_ref,
                         wih1_ref, whh1_ref, bl1_ref,
                         wp_ref, bp_ref,
                         out_ref):
    # ---------- batched, frame-parallel part: M = NFRAMES on the MXU ----------
    x = img_ref[...]                                            # (NFRAMES, CHW)
    # stand-in resnet: flatten + linear
    feat = jnp.dot(x, wres_ref[...],
                   preferred_element_type=jnp.float32) + bres_ref[...]
    # Conv1d chain as exact banded matmuls ('same' padding baked into A*)
    x1 = jax.nn.relu(jnp.dot(feat, a1_ref[...],
                             preferred_element_type=jnp.float32) + b1_ref[...])
    x2 = jax.nn.relu(jnp.dot(x1, a2_ref[...],
                             preferred_element_type=jnp.float32) + b2_ref[...])
    x3 = jax.nn.relu(jnp.dot(x2, a3_ref[...],
                             preferred_element_type=jnp.float32) + b3_ref[...])  # (NFRAMES, EMB)

    # layer-0 input projection hoisted out of the serial recurrence
    # (no serial dependence on the x path; bias folded in once here).
    g0_all = (jnp.dot(x3, wih0_ref[...],
                      preferred_element_type=jnp.float32)
              + bl0_ref[...])                                   # (NFRAMES, 8H)

    # weights kept live in vregs / VMEM across the unrolled frame loop
    whh0 = whh0_ref[...]
    wih1 = wih1_ref[...]
    whh1 = whh1_ref[...]
    bl1 = bl1_ref[...]

    def fused_gates(pre):
        # pre: (1, 8H); gate columns ordered [i_f,i_b | f_f,f_b | g_f,g_b | o_f,o_b]
        ig = jax.nn.sigmoid(pre[:, 0 * H2:1 * H2])
        fg = jax.nn.sigmoid(pre[:, 1 * H2:2 * H2])
        gg = jnp.tanh(pre[:, 2 * H2:3 * H2])
        og = jax.nn.sigmoid(pre[:, 3 * H2:4 * H2])
        return ig, fg, gg, og

    # ---------- serial BiLSTM recurrence (statically unrolled, state in vregs)
    h0 = jnp.zeros((1, H2), jnp.float32)
    c0 = jnp.zeros((1, H2), jnp.float32)
    h1 = jnp.zeros((1, H2), jnp.float32)
    c1 = jnp.zeros((1, H2), jnp.float32)
    outs = []
    for i in range(NFRAMES):
        # layer 0 (fwd+bwd fused): input term precomputed above
        pre0 = g0_all[i:i + 1, :] + jnp.dot(h0, whh0,
                                            preferred_element_type=jnp.float32)
        ig, fg, gg, og = fused_gates(pre0)
        c0 = fg * c0 + ig * gg
        h0 = og * jnp.tanh(c0)                                  # (1, 2H) = [fwd, bwd]

        # layer 1 (input = [h0_fwd, h0_bwd] = h0)
        pre1 = (jnp.dot(h0, wih1, preferred_element_type=jnp.float32)
                + jnp.dot(h1, whh1, preferred_element_type=jnp.float32)
                + bl1)
        ig, fg, gg, og = fused_gates(pre1)
        c1 = fg * c1 + ig * gg
        h1 = og * jnp.tanh(c1)
        outs.append(h1)

    res = jnp.concatenate(outs, axis=0)                         # (NFRAMES, EMB)
    # fused final Linear projection; single lane-dense (NFRAMES, 128) HBM store
    out_ref[...] = (jnp.dot(res, wp_ref[...],
                            preferred_element_type=jnp.float32) + bp_ref[...])


def video_encoder_forward(images, p):
    # images: (1, NFRAMES, C, H, W) f32, NCHW per frame
    assert images.shape[0] == BATCH == 1
    img_flat = images[0].reshape(NFRAMES, CHW).astype(jnp.float32)
    out = pl.pallas_call(
        video_encoder_kernel,
        out_shape=jax.ShapeDtypeStruct((NFRAMES, EMB), jnp.float32),
        compiler_params=pltpu.CompilerParams(
            vmem_limit_bytes=64 * 1024 * 1024),
    )(img_flat, p["w_res"], p["b_res"],
      p["A1"], p["b1"], p["A2"], p["b2"], p["A3"], p["b3"],
      p["Wih0"], p["Whh0"], p["bL0"],
      p["Wih1"], p["Whh1"], p["bL1"],
      p["w_projT"], p["b_proj"])                                # (NFRAMES, EMB)
    return out.T                                                # torch: res.transpose(0, 1)


# ---- deterministic parameter construction -------------------------------------
def _build_conv_matrix(w, l_in, l_out, stride, left_pad):
    # Conv1d(1->1) as a banded (l_in, l_out) matrix: y = x @ A  (exact, incl. 'same' pad)
    k = w.shape[0]
    a = np.zeros((l_in, l_out), np.float32)
    for j in range(l_out):
        for t in range(k):
            idx = j * stride + t - left_pad
            if 0 <= idx < l_in:
                a[idx, j] += float(w[t])
    return jnp.asarray(a)


def _fuse_bidir(wih_f, wih_b, whh_f, whh_b, b_f, b_b):
    # Fuse a bidirectional layer's fwd/bwd weights into one pair of matmuls.
    # Inputs are transposed per-direction weights with gate order [i, f, g, o]:
    #   wih_*: (in, 4H), whh_*: (H, 4H), b_*: (4H,)  (already b_ih + b_hh)
    # Output gate-column order: [i_f, i_b, f_f, f_b, g_f, g_b, o_f, o_b].
    def interleave_cols(m_f, m_b):
        blocks = []
        for g in range(4):
            blocks.append(m_f[:, g * H:(g + 1) * H])
            blocks.append(m_b[:, g * H:(g + 1) * H])
        return jnp.concatenate(blocks, axis=1)
    wih = interleave_cols(wih_f, wih_b)                               # (in, 8H)
    whh = jnp.concatenate(
        [interleave_cols(whh_f, jnp.zeros_like(whh_b)),               # fwd rows
         interleave_cols(jnp.zeros_like(whh_f), whh_b)],              # bwd rows
        axis=0)                                                       # (2H, 8H)
    b = interleave_cols(b_f.reshape(1, 4 * H), b_b.reshape(1, 4 * H))  # (1, 8H)
    return wih, whh, b


def init_params(key):
    ks = jax.random.split(key, 10)

    def uni(k, shape, bound):
        return jax.random.uniform(k, shape, jnp.float32, -bound, bound)

    w_res = uni(ks[0], (CHW, FEAT), float(np.sqrt(6.0 / (CHW + FEAT))))
    b_res = jnp.zeros((1, FEAT), jnp.float32)

    # conv_layers: xavier_uniform weights, bias filled with 0.01 (as in init_weights)
    w1 = np.asarray(uni(ks[1], (2,), float(np.sqrt(6.0 / 4.0))))
    w2 = np.asarray(uni(ks[2], (3,), float(np.sqrt(6.0 / 6.0))))
    w3 = np.asarray(uni(ks[3], (4,), float(np.sqrt(6.0 / 8.0))))
    a1 = _build_conv_matrix(w1, FEAT, EMB, stride=2, left_pad=0)       # k=2, s=2
    a2 = _build_conv_matrix(w2, EMB, EMB, stride=1, left_pad=1)        # k=3, 'same'
    a3 = _build_conv_matrix(w3, EMB, EMB, stride=1, left_pad=1)        # k=4, 'same' (pad 1,2)
    b1 = jnp.full((1, EMB), 0.01, jnp.float32)
    b2 = jnp.full((1, EMB), 0.01, jnp.float32)
    b3 = jnp.full((1, EMB), 0.01, jnp.float32)

    # BiLSTM: rows 0..3 = (layer0 fwd, layer0 bwd, layer1 fwd, layer1 bwd);
    # gate order inside the 4H axis is [i, f, g, o] (PyTorch convention).
    stdv = float(1.0 / np.sqrt(H))
    w_ih_t = uni(ks[4], (4, EMB, 4 * H), stdv)     # layer0 in=EMB, layer1 in=2H=EMB
    w_hh_t = uni(ks[5], (4, H, 4 * H), stdv)
    b_lstm = uni(ks[6], (4, 4 * H), stdv) + uni(ks[7], (4, 4 * H), stdv)  # b_ih + b_hh

    # fused fwd+bwd weights for the kernel (derived, not re-sampled)
    wih0, whh0, bl0 = _fuse_bidir(w_ih_t[0], w_ih_t[1], w_hh_t[0], w_hh_t[1],
                                  b_lstm[0], b_lstm[1])
    wih1, whh1, bl1 = _fuse_bidir(w_ih_t[2], w_ih_t[3], w_hh_t[2], w_hh_t[3],
                                  b_lstm[2], b_lstm[3])

    w_proj_t = uni(ks[8], (EMB, EMB), float(1.0 / np.sqrt(EMB)))
    b_proj = uni(ks[9], (1, EMB), float(1.0 / np.sqrt(EMB)))

    return dict(w_res=w_res, b_res=b_res,
                A1=a1, b1=b1, A2=a2, b2=b2, A3=a3, b3=b3,
                w_ih_T=w_ih_t, w_hh_T=w_hh_t, b_lstm=b_lstm,
                Wih0=wih0, Whh0=whh0, bL0=bl0,
                Wih1=wih1, Whh1=whh1, bL1=bl1,
                w_projT=w_proj_t, b_proj=b_proj)


# ---- pure-JAX reference (unfused math, no Pallas) for validation --------------
def reference_forward(images, p):
    x_flat = images[0].reshape(NFRAMES, CHW).astype(jnp.float32)
    hs = jnp.zeros((4, H), jnp.float32)
    cs = jnp.zeros((4, H), jnp.float32)
    outs = []
    for i in range(NFRAMES):
        x = x_flat[i:i + 1]
        feat = x @ p["w_res"] + p["b_res"]
        x1 = jax.nn.relu(feat @ p["A1"] + p["b1"])
        x2 = jax.nn.relu(x1 @ p["A2"] + p["b2"])
        x3 = jax.nn.relu(x2 @ p["A3"] + p["b3"])
        h0f, c0f = _lstm_cell(x3, hs[0:1], cs[0:1], p["w_ih_T"][0], p["w_hh_T"][0], p["b_lstm"][0:1])
        h0b, c0b = _lstm_cell(x3, hs[1:2], cs[1:2], p["w_ih_T"][1], p["w_hh_T"][1], p["b_lstm"][1:2])
        l1 = jnp.concatenate([h0f, h0b], axis=1)
        h1f, c1f = _lstm_cell(l1, hs[2:3], cs[2:3], p["w_ih_T"][2], p["w_hh_T"][2], p["b_lstm"][2:3])
        h1b, c1b = _lstm_cell(l1, hs[3:4], cs[3:4], p["w_ih_T"][3], p["w_hh_T"][3], p["b_lstm"][3:4])
        hs = jnp.concatenate([h0f, h0b, h1f, h1b], axis=0)
        cs = jnp.concatenate([c0f, c0b, c1f, c1b], axis=0)
        outs.append(jnp.concatenate([h1f, h1b], axis=1))
    res = jnp.concatenate(outs, axis=0)
    return (res @ p["w_projT"] + p["b_proj"]).T


if __name__ == "__main__":
    key = jax.random.PRNGKey(0)
    k_img, k_par = jax.random.split(key)
    images = jax.random.normal(k_img, (BATCH, NFRAMES, C, HH, WW), jnp.float32)
    params = init_params(k_par)

    out = video_encoder_forward(images, params)
    out = jax.block_until_ready(out)
    assert out.shape == (EMB, NFRAMES), out.shape

    ref = jax.block_until_ready(reference_forward(images, params))
    np.testing.assert_allclose(np.asarray(out), np.asarray(ref), rtol=2e-3, atol=2e-3)

    print("KERNEL_OK")
</pallas_src>

<mosaic_0001>
module attributes {stable_mosaic.version = 11 : i64} {
  func.func @video_encoder_kernel(%arg0: memref<4x768xf32, #tpu.memory_space<vmem>>, %arg1: memref<768x256xf32, #tpu.memory_space<vmem>>, %arg2: memref<1x256xf32, #tpu.memory_space<vmem>>, %arg3: memref<256x128xf32, #tpu.memory_space<vmem>>, %arg4: memref<1x128xf32, #tpu.memory_space<vmem>>, %arg5: memref<128x128xf32, #tpu.memory_space<vmem>>, %arg6: memref<1x128xf32, #tpu.memory_space<vmem>>, %arg7: memref<128x128xf32, #tpu.memory_space<vmem>>, %arg8: memref<1x128xf32, #tpu.memory_space<vmem>>, %arg9: memref<128x512xf32, #tpu.memory_space<vmem>>, %arg10: memref<128x512xf32, #tpu.memory_space<vmem>>, %arg11: memref<1x512xf32, #tpu.memory_space<vmem>>, %arg12: memref<128x512xf32, #tpu.memory_space<vmem>>, %arg13: memref<128x512xf32, #tpu.memory_space<vmem>>, %arg14: memref<1x512xf32, #tpu.memory_space<vmem>>, %arg15: memref<128x128xf32, #tpu.memory_space<vmem>>, %arg16: memref<1x128xf32, #tpu.memory_space<vmem>>, %arg17: memref<4x128xf32, #tpu.memory_space<vmem>>) attributes {dimension_semantics = [], scalar_prefetch = 0 : i64, scratch_operands = 0 : i64, tpu.core_type = #tpu.core_type<tc>} {
    %c0 = arith.constant 0 : index
    %c0_0 = arith.constant 0 : index
    %0 = vector.load %arg0[%c0, %c0_0] : memref<4x768xf32, #tpu.memory_space<vmem>>, vector<4x768xf32>
    %c0_1 = arith.constant 0 : index
    %c0_2 = arith.constant 0 : index
    %1 = vector.load %arg1[%c0_1, %c0_2] : memref<768x256xf32, #tpu.memory_space<vmem>>, vector<768x256xf32>
    %cst = arith.constant dense<0.000000e+00> : vector<4x256xf32>
    %2 = tpu.matmul %0, %1, %cst {dimension_numbers = #tpu.dot_dimension_numbers<[1], [0], [0], [1], [0, 0, 1, 1], [], []>} : vector<4x768xf32>, vector<768x256xf32>, vector<4x256xf32> -> vector<4x256xf32>
    %c0_3 = arith.constant 0 : index
    %c0_4 = arith.constant 0 : index
    %3 = vector.load %arg2[%c0_3, %c0_4] : memref<1x256xf32, #tpu.memory_space<vmem>>, vector<1x256xf32>
    %4 = vector.broadcast %3 : vector<1x256xf32> to vector<4x256xf32>
    %5 = arith.addf %2, %4 : vector<4x256xf32>
    %c0_5 = arith.constant 0 : index
    %c0_6 = arith.constant 0 : index
    %6 = vector.load %arg3[%c0_5, %c0_6] : memref<256x128xf32, #tpu.memory_space<vmem>>, vector<256x128xf32>
    %cst_7 = arith.constant dense<0.000000e+00> : vector<4x128xf32>
    %7 = tpu.matmul %5, %6, %cst_7 {dimension_numbers = #tpu.dot_dimension_numbers<[1], [0], [0], [1], [0, 0, 1, 1], [], []>} : vector<4x256xf32>, vector<256x128xf32>, vector<4x128xf32> -> vector<4x128xf32>
    %c0_8 = arith.constant 0 : index
    %c0_9 = arith.constant 0 : index
    %8 = vector.load %arg4[%c0_8, %c0_9] : memref<1x128xf32, #tpu.memory_space<vmem>>, vector<1x128xf32>
    %9 = vector.broadcast %8 : vector<1x128xf32> to vector<4x128xf32>
    %10 = arith.addf %7, %9 : vector<4x128xf32>
    %cst_10 = arith.constant 0.000000e+00 : f32
    %11 = vector.broadcast %cst_10 : f32 to vector<4x128xf32>
    %12 = arith.maximumf %10, %11 : vector<4x128xf32>
    %c0_11 = arith.constant 0 : index
    %c0_12 = arith.constant 0 : index
    %13 = vector.load %arg5[%c0_11, %c0_12] : memref<128x128xf32, #tpu.memory_space<vmem>>, vector<128x128xf32>
    %cst_13 = arith.constant dense<0.000000e+00> : vector<4x128xf32>
    %14 = tpu.matmul %12, %13, %cst_13 {dimension_numbers = #tpu.dot_dimension_numbers<[1], [0], [0], [1], [0, 0, 1, 1], [], []>} : vector<4x128xf32>, vector<128x128xf32>, vector<4x128xf32> -> vector<4x128xf32>
    %c0_14 = arith.constant 0 : index
    %c0_15 = arith.constant 0 : index
    %15 = vector.load %arg6[%c0_14, %c0_15] : memref<1x128xf32, #tpu.memory_space<vmem>>, vector<1x128xf32>
    %16 = vector.broadcast %15 : vector<1x128xf32> to vector<4x128xf32>
    %17 = arith.addf %14, %16 : vector<4x128xf32>
    %cst_16 = arith.constant 0.000000e+00 : f32
    %18 = vector.broadcast %cst_16 : f32 to vector<4x128xf32>
    %19 = arith.maximumf %17, %18 : vector<4x128xf32>
    %c0_17 = arith.constant 0 : index
    %c0_18 = arith.constant 0 : index
    %20 = vector.load %arg7[%c0_17, %c0_18] : memref<128x128xf32, #tpu.memory_space<vmem>>, vector<128x128xf32>
    %cst_19 = arith.constant dense<0.000000e+00> : vector<4x128xf32>
    %21 = tpu.matmul %19, %20, %cst_19 {dimension_numbers = #tpu.dot_dimension_numbers<[1], [0], [0], [1], [0, 0, 1, 1], [], []>} : vector<4x128xf32>, vector<128x128xf32>, vector<4x128xf32> -> vector<4x128xf32>
    %c0_20 = arith.constant 0 : index
    %c0_21 = arith.constant 0 : index
    %22 = vector.load %arg8[%c0_20, %c0_21] : memref<1x128xf32, #tpu.memory_space<vmem>>, vector<1x128xf32>
    %23 = vector.broadcast %22 : vector<1x128xf32> to vector<4x128xf32>
    %24 = arith.addf %21, %23 : vector<4x128xf32>
    %cst_22 = arith.constant 0.000000e+00 : f32
    %25 = vector.broadcast %cst_22 : f32 to vector<4x128xf32>
    %26 = arith.maximumf %24, %25 : vector<4x128xf32>
    %c0_23 = arith.constant 0 : index
    %c0_24 = arith.constant 0 : index
    %27 = vector.load %arg9[%c0_23, %c0_24] : memref<128x512xf32, #tpu.memory_space<vmem>>, vector<128x512xf32>
    %cst_25 = arith.constant dense<0.000000e+00> : vector<4x512xf32>
    %28 = tpu.matmul %26, %27, %cst_25 {dimension_numbers = #tpu.dot_dimension_numbers<[1], [0], [0], [1], [0, 0, 1, 1], [], []>} : vector<4x128xf32>, vector<128x512xf32>, vector<4x512xf32> -> vector<4x512xf32>
    %c0_26 = arith.constant 0 : index
    %c0_27 = arith.constant 0 : index
    %29 = vector.load %arg11[%c0_26, %c0_27] : memref<1x512xf32, #tpu.memory_space<vmem>>, vector<1x512xf32>
    %30 = vector.broadcast %29 : vector<1x512xf32> to vector<4x512xf32>
    %31 = arith.addf %28, %30 : vector<4x512xf32>
    %c0_28 = arith.constant 0 : index
    %c0_29 = arith.constant 0 : index
    %32 = vector.load %arg10[%c0_28, %c0_29] : memref<128x512xf32, #tpu.memory_space<vmem>>, vector<128x512xf32>
    %c0_30 = arith.constant 0 : index
    %c0_31 = arith.constant 0 : index
    %33 = vector.load %arg12[%c0_30, %c0_31] : memref<128x512xf32, #tpu.memory_space<vmem>>, vector<128x512xf32>
    %c0_32 = arith.constant 0 : index
    %c0_33 = arith.constant 0 : index
    %34 = vector.load %arg13[%c0_32, %c0_33] : memref<128x512xf32, #tpu.memory_space<vmem>>, vector<128x512xf32>
    %c0_34 = arith.constant 0 : index
    %c0_35 = arith.constant 0 : index
    %35 = vector.load %arg14[%c0_34, %c0_35] : memref<1x512xf32, #tpu.memory_space<vmem>>, vector<1x512xf32>
    %cst_36 = arith.constant 0.000000e+00 : f32
    %36 = vector.broadcast %cst_36 : f32 to vector<1x128xf32>
    %cst_37 = arith.constant 0.000000e+00 : f32
    %37 = vector.broadcast %cst_37 : f32 to vector<1x128xf32>
    %cst_38 = arith.constant 0.000000e+00 : f32
    %38 = vector.broadcast %cst_38 : f32 to vector<1x128xf32>
    %cst_39 = arith.constant 0.000000e+00 : f32
    %39 = vector.broadcast %cst_39 : f32 to vector<1x128xf32>
    %40 = vector.extract_strided_slice %31 {offsets = [0, 0], sizes = [1, 512], strides = [1, 1]} : vector<4x512xf32> to vector<1x512xf32>
    %cst_40 = arith.constant dense<0.000000e+00> : vector<1x512xf32>
    %41 = tpu.matmul %36, %32, %cst_40 {dimension_numbers = #tpu.dot_dimension_numbers<[1], [0], [0], [1], [0, 0, 1, 1], [], []>} : vector<1x128xf32>, vector<128x512xf32>, vector<1x512xf32> -> vector<1x512xf32>
    %42 = arith.addf %40, %41 : vector<1x512xf32>
    %43 = vector.extract_strided_slice %42 {offsets = [0, 0], sizes = [1, 128], strides = [1, 1]} : vector<1x512xf32> to vector<1x128xf32>
    %44 = arith.negf %43 : vector<1x128xf32>
    %45 = math.exp %44 : vector<1x128xf32>
    %cst_41 = arith.constant 1.000000e+00 : f32
    %46 = vector.broadcast %cst_41 : f32 to vector<1x128xf32>
    %47 = arith.addf %46, %45 : vector<1x128xf32>
    %48 = arith.divf %46, %47 : vector<1x128xf32>
    %49 = vector.extract_strided_slice %42 {offsets = [0, 128], sizes = [1, 128], strides = [1, 1]} : vector<1x512xf32> to vector<1x128xf32>
    %50 = arith.negf %49 : vector<1x128xf32>
    %51 = math.exp %50 : vector<1x128xf32>
    %cst_42 = arith.constant 1.000000e+00 : f32
    %52 = vector.broadcast %cst_42 : f32 to vector<1x128xf32>
    %53 = arith.addf %52, %51 : vector<1x128xf32>
    %54 = arith.divf %52, %53 : vector<1x128xf32>
    %55 = vector.extract_strided_slice %42 {offsets = [0, 256], sizes = [1, 128], strides = [1, 1]} : vector<1x512xf32> to vector<1x128xf32>
    %56 = math.tanh %55 : vector<1x128xf32>
    %57 = vector.extract_strided_slice %42 {offsets = [0, 384], sizes = [1, 128], strides = [1, 1]} : vector<1x512xf32> to vector<1x128xf32>
    %58 = arith.negf %57 : vector<1x128xf32>
    %59 = math.exp %58 : vector<1x128xf32>
    %cst_43 = arith.constant 1.000000e+00 : f32
    %60 = vector.broadcast %cst_43 : f32 to vector<1x128xf32>
    %61 = arith.addf %60, %59 : vector<1x128xf32>
    %62 = arith.divf %60, %61 : vector<1x128xf32>
    %63 = arith.mulf %54, %37 : vector<1x128xf32>
    %64 = arith.mulf %48, %56 : vector<1x128xf32>
    %65 = arith.addf %63, %64 : vector<1x128xf32>
    %66 = math.tanh %65 : vector<1x128xf32>
    %67 = arith.mulf %62, %66 : vector<1x128xf32>
    %cst_44 = arith.constant dense<0.000000e+00> : vector<1x512xf32>
    %68 = tpu.matmul %67, %33, %cst_44 {dimension_numbers = #tpu.dot_dimension_numbers<[1], [0], [0], [1], [0, 0, 1, 1], [], []>} : vector<1x128xf32>, vector<128x512xf32>, vector<1x512xf32> -> vector<1x512xf32>
    %cst_45 = arith.constant dense<0.000000e+00> : vector<1x512xf32>
    %69 = tpu.matmul %38, %34, %cst_45 {dimension_numbers = #tpu.dot_dimension_numbers<[1], [0], [0], [1], [0, 0, 1, 1], [], []>} : vector<1x128xf32>, vector<128x512xf32>, vector<1x512xf32> -> vector<1x512xf32>
    %70 = arith.addf %68, %69 : vector<1x512xf32>
    %71 = arith.addf %70, %35 : vector<1x512xf32>
    %72 = vector.extract_strided_slice %71 {offsets = [0, 0], sizes = [1, 128], strides = [1, 1]} : vector<1x512xf32> to vector<1x128xf32>
    %73 = arith.negf %72 : vector<1x128xf32>
    %74 = math.exp %73 : vector<1x128xf32>
    %cst_46 = arith.constant 1.000000e+00 : f32
    %75 = vector.broadcast %cst_46 : f32 to vector<1x128xf32>
    %76 = arith.addf %75, %74 : vector<1x128xf32>
    %77 = arith.divf %75, %76 : vector<1x128xf32>
    %78 = vector.extract_strided_slice %71 {offsets = [0, 128], sizes = [1, 128], strides = [1, 1]} : vector<1x512xf32> to vector<1x128xf32>
    %79 = arith.negf %78 : vector<1x128xf32>
    %80 = math.exp %79 : vector<1x128xf32>
    %cst_47 = arith.constant 1.000000e+00 : f32
    %81 = vector.broadcast %cst_47 : f32 to vector<1x128xf32>
    %82 = arith.addf %81, %80 : vector<1x128xf32>
    %83 = arith.divf %81, %82 : vector<1x128xf32>
    %84 = vector.extract_strided_slice %71 {offsets = [0, 256], sizes = [1, 128], strides = [1, 1]} : vector<1x512xf32> to vector<1x128xf32>
    %85 = math.tanh %84 : vector<1x128xf32>
    %86 = vector.extract_strided_slice %71 {offsets = [0, 384], sizes = [1, 128], strides = [1, 1]} : vector<1x512xf32> to vector<1x128xf32>
    %87 = arith.negf %86 : vector<1x128xf32>
    %88 = math.exp %87 : vector<1x128xf32>
    %cst_48 = arith.constant 1.000000e+00 : f32
    %89 = vector.broadcast %cst_48 : f32 to vector<1x128xf32>
    %90 = arith.addf %89, %88 : vector<1x128xf32>
    %91 = arith.divf %89, %90 : vector<1x128xf32>
    %92 = arith.mulf %83, %39 : vector<1x128xf32>
    %93 = arith.mulf %77, %85 : vector<1x128xf32>
    %94 = arith.addf %92, %93 : vector<1x128xf32>
    %95 = math.tanh %94 : vector<1x128xf32>
    %96 = arith.mulf %91, %95 : vector<1x128xf32>
    %97 = vector.extract_strided_slice %31 {offsets = [1, 0], sizes = [1, 512], strides = [1, 1]} : vector<4x512xf32> to vector<1x512xf32>
    %cst_49 = arith.constant dense<0.000000e+00> : vector<1x512xf32>
    %98 = tpu.matmul %67, %32, %cst_49 {dimension_numbers = #tpu.dot_dimension_numbers<[1], [0], [0], [1], [0, 0, 1, 1], [], []>} : vector<1x128xf32>, vector<128x512xf32>, vector<1x512xf32> -> vector<1x512xf32>
    %99 = arith.addf %97, %98 : vector<1x512xf32>
    %100 = vector.extract_strided_slice %99 {offsets = [0, 0], sizes = [1, 128], strides = [1, 1]} : vector<1x512xf32> to vector<1x128xf32>
    %101 = arith.negf %100 : vector<1x128xf32>
    %102 = math.exp %101 : vector<1x128xf32>
    %cst_50 = arith.constant 1.000000e+00 : f32
    %103 = vector.broadcast %cst_50 : f32 to vector<1x128xf32>
    %104 = arith.addf %103, %102 : vector<1x128xf32>
    %105 = arith.divf %103, %104 : vector<1x128xf32>
    %106 = vector.extract_strided_slice %99 {offsets = [0, 128], sizes = [1, 128], strides = [1, 1]} : vector<1x512xf32> to vector<1x128xf32>
    %107 = arith.negf %106 : vector<1x128xf32>
    %108 = math.exp %107 : vector<1x128xf32>
    %cst_51 = arith.constant 1.000000e+00 : f32
    %109 = vector.broadcast %cst_51 : f32 to vector<1x128xf32>
    %110 = arith.addf %109, %108 : vector<1x128xf32>
    %111 = arith.divf %109, %110 : vector<1x128xf32>
    %112 = vector.extract_strided_slice %99 {offsets = [0, 256], sizes = [1, 128], strides = [1, 1]} : vector<1x512xf32> to vector<1x128xf32>
    %113 = math.tanh %112 : vector<1x128xf32>
    %114 = vector.extract_strided_slice %99 {offsets = [0, 384], sizes = [1, 128], strides = [1, 1]} : vector<1x512xf32> to vector<1x128xf32>
    %115 = arith.negf %114 : vector<1x128xf32>
    %116 = math.exp %115 : vector<1x128xf32>
    %cst_52 = arith.constant 1.000000e+00 : f32
    %117 = vector.broadcast %cst_52 : f32 to vector<1x128xf32>
    %118 = arith.addf %117, %116 : vector<1x128xf32>
    %119 = arith.divf %117, %118 : vector<1x128xf32>
    %120 = arith.mulf %111, %65 : vector<1x128xf32>
    %121 = arith.mulf %105, %113 : vector<1x128xf32>
    %122 = arith.addf %120, %121 : vector<1x128xf32>
    %123 = math.tanh %122 : vector<1x128xf32>
    %124 = arith.mulf %119, %123 : vector<1x128xf32>
    %cst_53 = arith.constant dense<0.000000e+00> : vector<1x512xf32>
    %125 = tpu.matmul %124, %33, %cst_53 {dimension_numbers = #tpu.dot_dimension_numbers<[1], [0], [0], [1], [0, 0, 1, 1], [], []>} : vector<1x128xf32>, vector<128x512xf32>, vector<1x512xf32> -> vector<1x512xf32>
    %cst_54 = arith.constant dense<0.000000e+00> : vector<1x512xf32>
    %126 = tpu.matmul %96, %34, %cst_54 {dimension_numbers = #tpu.dot_dimension_numbers<[1], [0], [0], [1], [0, 0, 1, 1], [], []>} : vector<1x128xf32>, vector<128x512xf32>, vector<1x512xf32> -> vector<1x512xf32>
    %127 = arith.addf %125, %126 : vector<1x512xf32>
    %128 = arith.addf %127, %35 : vector<1x512xf32>
    %129 = vector.extract_strided_slice %128 {offsets = [0, 0], sizes = [1, 128], strides = [1, 1]} : vector<1x512xf32> to vector<1x128xf32>
    %130 = arith.negf %129 : vector<1x128xf32>
    %131 = math.exp %130 : vector<1x128xf32>
    %cst_55 = arith.constant 1.000000e+00 : f32
    %132 = vector.broadcast %cst_55 : f32 to vector<1x128xf32>
    %133 = arith.addf %132, %131 : vector<1x128xf32>
    %134 = arith.divf %132, %133 : vector<1x128xf32>
    %135 = vector.extract_strided_slice %128 {offsets = [0, 128], sizes = [1, 128], strides = [1, 1]} : vector<1x512xf32> to vector<1x128xf32>
    %136 = arith.negf %135 : vector<1x128xf32>
    %137 = math.exp %136 : vector<1x128xf32>
    %cst_56 = arith.constant 1.000000e+00 : f32
    %138 = vector.broadcast %cst_56 : f32 to vector<1x128xf32>
    %139 = arith.addf %138, %137 : vector<1x128xf32>
    %140 = arith.divf %138, %139 : vector<1x128xf32>
    %141 = vector.extract_strided_slice %128 {offsets = [0, 256], sizes = [1, 128], strides = [1, 1]} : vector<1x512xf32> to vector<1x128xf32>
    %142 = math.tanh %141 : vector<1x128xf32>
    %143 = vector.extract_strided_slice %128 {offsets = [0, 384], sizes = [1, 128], strides = [1, 1]} : vector<1x512xf32> to vector<1x128xf32>
    %144 = arith.negf %143 : vector<1x128xf32>
    %145 = math.exp %144 : vector<1x128xf32>
    %cst_57 = arith.constant 1.000000e+00 : f32
    %146 = vector.broadcast %cst_57 : f32 to vector<1x128xf32>
    %147 = arith.addf %146, %145 : vector<1x128xf32>
    %148 = arith.divf %146, %147 : vector<1x128xf32>
    %149 = arith.mulf %140, %94 : vector<1x128xf32>
    %150 = arith.mulf %134, %142 : vector<1x128xf32>
    %151 = arith.addf %149, %150 : vector<1x128xf32>
    %152 = math.tanh %151 : vector<1x128xf32>
    %153 = arith.mulf %148, %152 : vector<1x128xf32>
    %154 = vector.extract_strided_slice %31 {offsets = [2, 0], sizes = [1, 512], strides = [1, 1]} : vector<4x512xf32> to vector<1x512xf32>
    %cst_58 = arith.constant dense<0.000000e+00> : vector<1x512xf32>
    %155 = tpu.matmul %124, %32, %cst_58 {dimension_numbers = #tpu.dot_dimension_numbers<[1], [0], [0], [1], [0, 0, 1, 1], [], []>} : vector<1x128xf32>, vector<128x512xf32>, vector<1x512xf32> -> vector<1x512xf32>
    %156 = arith.addf %154, %155 : vector<1x512xf32>
    %157 = vector.extract_strided_slice %156 {offsets = [0, 0], sizes = [1, 128], strides = [1, 1]} : vector<1x512xf32> to vector<1x128xf32>
    %158 = arith.negf %157 : vector<1x128xf32>
    %159 = math.exp %158 : vector<1x128xf32>
    %cst_59 = arith.constant 1.000000e+00 : f32
    %160 = vector.broadcast %cst_59 : f32 to vector<1x128xf32>
    %161 = arith.addf %160, %159 : vector<1x128xf32>
    %162 = arith.divf %160, %161 : vector<1x128xf32>
    %163 = vector.extract_strided_slice %156 {offsets = [0, 128], sizes = [1, 128], strides = [1, 1]} : vector<1x512xf32> to vector<1x128xf32>
    %164 = arith.negf %163 : vector<1x128xf32>
    %165 = math.exp %164 : vector<1x128xf32>
    %cst_60 = arith.constant 1.000000e+00 : f32
    %166 = vector.broadcast %cst_60 : f32 to vector<1x128xf32>
    %167 = arith.addf %166, %165 : vector<1x128xf32>
    %168 = arith.divf %166, %167 : vector<1x128xf32>
    %169 = vector.extract_strided_slice %156 {offsets = [0, 256], sizes = [1, 128], strides = [1, 1]} : vector<1x512xf32> to vector<1x128xf32>
    %170 = math.tanh %169 : vector<1x128xf32>
    %171 = vector.extract_strided_slice %156 {offsets = [0, 384], sizes = [1, 128], strides = [1, 1]} : vector<1x512xf32> to vector<1x128xf32>
    %172 = arith.negf %171 : vector<1x128xf32>
    %173 = math.exp %172 : vector<1x128xf32>
    %cst_61 = arith.constant 1.000000e+00 : f32
    %174 = vector.broadcast %cst_61 : f32 to vector<1x128xf32>
    %175 = arith.addf %174, %173 : vector<1x128xf32>
    %176 = arith.divf %174, %175 : vector<1x128xf32>
    %177 = arith.mulf %168, %122 : vector<1x128xf32>
    %178 = arith.mulf %162, %170 : vector<1x128xf32>
    %179 = arith.addf %177, %178 : vector<1x128xf32>
    %180 = math.tanh %179 : vector<1x128xf32>
    %181 = arith.mulf %176, %180 : vector<1x128xf32>
    %cst_62 = arith.constant dense<0.000000e+00> : vector<1x512xf32>
    %182 = tpu.matmul %181, %33, %cst_62 {dimension_numbers = #tpu.dot_dimension_numbers<[1], [0], [0], [1], [0, 0, 1, 1], [], []>} : vector<1x128xf32>, vector<128x512xf32>, vector<1x512xf32> -> vector<1x512xf32>
    %cst_63 = arith.constant dense<0.000000e+00> : vector<1x512xf32>
    %183 = tpu.matmul %153, %34, %cst_63 {dimension_numbers = #tpu.dot_dimension_numbers<[1], [0], [0], [1], [0, 0, 1, 1], [], []>} : vector<1x128xf32>, vector<128x512xf32>, vector<1x512xf32> -> vector<1x512xf32>
    %184 = arith.addf %182, %183 : vector<1x512xf32>
    %185 = arith.addf %184, %35 : vector<1x512xf32>
    %186 = vector.extract_strided_slice %185 {offsets = [0, 0], sizes = [1, 128], strides = [1, 1]} : vector<1x512xf32> to vector<1x128xf32>
    %187 = arith.negf %186 : vector<1x128xf32>
    %188 = math.exp %187 : vector<1x128xf32>
    %cst_64 = arith.constant 1.000000e+00 : f32
    %189 = vector.broadcast %cst_64 : f32 to vector<1x128xf32>
    %190 = arith.addf %189, %188 : vector<1x128xf32>
    %191 = arith.divf %189, %190 : vector<1x128xf32>
    %192 = vector.extract_strided_slice %185 {offsets = [0, 128], sizes = [1, 128], strides = [1, 1]} : vector<1x512xf32> to vector<1x128xf32>
    %193 = arith.negf %192 : vector<1x128xf32>
    %194 = math.exp %193 : vector<1x128xf32>
    %cst_65 = arith.constant 1.000000e+00 : f32
    %195 = vector.broadcast %cst_65 : f32 to vector<1x128xf32>
    %196 = arith.addf %195, %194 : vector<1x128xf32>
    %197 = arith.divf %195, %196 : vector<1x128xf32>
    %198 = vector.extract_strided_slice %185 {offsets = [0, 256], sizes = [1, 128], strides = [1, 1]} : vector<1x512xf32> to vector<1x128xf32>
    %199 = math.tanh %198 : vector<1x128xf32>
    %200 = vector.extract_strided_slice %185 {offsets = [0, 384], sizes = [1, 128], strides = [1, 1]} : vector<1x512xf32> to vector<1x128xf32>
    %201 = arith.negf %200 : vector<1x128xf32>
    %202 = math.exp %201 : vector<1x128xf32>
    %cst_66 = arith.constant 1.000000e+00 : f32
    %203 = vector.broadcast %cst_66 : f32 to vector<1x128xf32>
    %204 = arith.addf %203, %202 : vector<1x128xf32>
    %205 = arith.divf %203, %204 : vector<1x128xf32>
    %206 = arith.mulf %197, %151 : vector<1x128xf32>
    %207 = arith.mulf %191, %199 : vector<1x128xf32>
    %208 = arith.addf %206, %207 : vector<1x128xf32>
    %209 = math.tanh %208 : vector<1x128xf32>
    %210 = arith.mulf %205, %209 : vector<1x128xf32>
    %211 = vector.extract_strided_slice %31 {offsets = [3, 0], sizes = [1, 512], strides = [1, 1]} : vector<4x512xf32> to vector<1x512xf32>
    %cst_67 = arith.constant dense<0.000000e+00> : vector<1x512xf32>
    %212 = tpu.matmul %181, %32, %cst_67 {dimension_numbers = #tpu.dot_dimension_numbers<[1], [0], [0], [1], [0, 0, 1, 1], [], []>} : vector<1x128xf32>, vector<128x512xf32>, vector<1x512xf32> -> vector<1x512xf32>
    %213 = arith.addf %211, %212 : vector<1x512xf32>
    %214 = vector.extract_strided_slice %213 {offsets = [0, 0], sizes = [1, 128], strides = [1, 1]} : vector<1x512xf32> to vector<1x128xf32>
    %215 = arith.negf %214 : vector<1x128xf32>
    %216 = math.exp %215 : vector<1x128xf32>
    %cst_68 = arith.constant 1.000000e+00 : f32
    %217 = vector.broadcast %cst_68 : f32 to vector<1x128xf32>
    %218 = arith.addf %217, %216 : vector<1x128xf32>
    %219 = arith.divf %217, %218 : vector<1x128xf32>
    %220 = vector.extract_strided_slice %213 {offsets = [0, 128], sizes = [1, 128], strides = [1, 1]} : vector<1x512xf32> to vector<1x128xf32>
    %221 = arith.negf %220 : vector<1x128xf32>
    %222 = math.exp %221 : vector<1x128xf32>
    %cst_69 = arith.constant 1.000000e+00 : f32
    %223 = vector.broadcast %cst_69 : f32 to vector<1x128xf32>
    %224 = arith.addf %223, %222 : vector<1x128xf32>
    %225 = arith.divf %223, %224 : vector<1x128xf32>
    %226 = vector.extract_strided_slice %213 {offsets = [0, 256], sizes = [1, 128], strides = [1, 1]} : vector<1x512xf32> to vector<1x128xf32>
    %227 = math.tanh %226 : vector<1x128xf32>
    %228 = vector.extract_strided_slice %213 {offsets = [0, 384], sizes = [1, 128], strides = [1, 1]} : vector<1x512xf32> to vector<1x128xf32>
    %229 = arith.negf %228 : vector<1x128xf32>
    %230 = math.exp %229 : vector<1x128xf32>
    %cst_70 = arith.constant 1.000000e+00 : f32
    %231 = vector.broadcast %cst_70 : f32 to vector<1x128xf32>
    %232 = arith.addf %231, %230 : vector<1x128xf32>
    %233 = arith.divf %231, %232 : vector<1x128xf32>
    %234 = arith.mulf %225, %179 : vector<1x128xf32>
    %235 = arith.mulf %219, %227 : vector<1x128xf32>
    %236 = arith.addf %234, %235 : vector<1x128xf32>
    %237 = math.tanh %236 : vector<1x128xf32>
    %238 = arith.mulf %233, %237 : vector<1x128xf32>
    %cst_71 = arith.constant dense<0.000000e+00> : vector<1x512xf32>
    %239 = tpu.matmul %238, %33, %cst_71 {dimension_numbers = #tpu.dot_dimension_numbers<[1], [0], [0], [1], [0, 0, 1, 1], [], []>} : vector<1x128xf32>, vector<128x512xf32>, vector<1x512xf32> -> vector<1x512xf32>
    %cst_72 = arith.constant dense<0.000000e+00> : vector<1x512xf32>
    %240 = tpu.matmul %210, %34, %cst_72 {dimension_numbers = #tpu.dot_dimension_numbers<[1], [0], [0], [1], [0, 0, 1, 1], [], []>} : vector<1x128xf32>, vector<128x512xf32>, vector<1x512xf32> -> vector<1x512xf32>
    %241 = arith.addf %239, %240 : vector<1x512xf32>
    %242 = arith.addf %241, %35 : vector<1x512xf32>
    %243 = vector.extract_strided_slice %242 {offsets = [0, 0], sizes = [1, 128], strides = [1, 1]} : vector<1x512xf32> to vector<1x128xf32>
    %244 = arith.negf %243 : vector<1x128xf32>
    %245 = math.exp %244 : vector<1x128xf32>
    %cst_73 = arith.constant 1.000000e+00 : f32
    %246 = vector.broadcast %cst_73 : f32 to vector<1x128xf32>
    %247 = arith.addf %246, %245 : vector<1x128xf32>
    %248 = arith.divf %246, %247 : vector<1x128xf32>
    %249 = vector.extract_strided_slice %242 {offsets = [0, 128], sizes = [1, 128], strides = [1, 1]} : vector<1x512xf32> to vector<1x128xf32>
    %250 = arith.negf %249 : vector<1x128xf32>
    %251 = math.exp %250 : vector<1x128xf32>
    %cst_74 = arith.constant 1.000000e+00 : f32
    %252 = vector.broadcast %cst_74 : f32 to vector<1x128xf32>
    %253 = arith.addf %252, %251 : vector<1x128xf32>
    %254 = arith.divf %252, %253 : vector<1x128xf32>
    %255 = vector.extract_strided_slice %242 {offsets = [0, 256], sizes = [1, 128], strides = [1, 1]} : vector<1x512xf32> to vector<1x128xf32>
    %256 = math.tanh %255 : vector<1x128xf32>
    %257 = vector.extract_strided_slice %242 {offsets = [0, 384], sizes = [1, 128], strides = [1, 1]} : vector<1x512xf32> to vector<1x128xf32>
    %258 = arith.negf %257 : vector<1x128xf32>
    %259 = math.exp %258 : vector<1x128xf32>
    %cst_75 = arith.constant 1.000000e+00 : f32
    %260 = vector.broadcast %cst_75 : f32 to vector<1x128xf32>
    %261 = arith.addf %260, %259 : vector<1x128xf32>
    %262 = arith.divf %260, %261 : vector<1x128xf32>
    %263 = arith.mulf %254, %208 : vector<1x128xf32>
    %264 = arith.mulf %248, %256 : vector<1x128xf32>
    %265 = arith.addf %263, %264 : vector<1x128xf32>
    %266 = math.tanh %265 : vector<1x128xf32>
    %267 = arith.mulf %262, %266 : vector<1x128xf32>
    %268 = tpu.concatenate %96, %153, %210, %267 in 0 : vector<1x128xf32>, vector<1x128xf32>, vector<1x128xf32>, vector<1x128xf32> -> vector<4x128xf32>
    %c0_76 = arith.constant 0 : index
    %c0_77 = arith.constant 0 : index
    %269 = vector.load %arg15[%c0_76, %c0_77] : memref<128x128xf32, #tpu.memory_space<vmem>>, vector<128x128xf32>
    %cst_78 = arith.constant dense<0.000000e+00> : vector<4x128xf32>
    %270 = tpu.matmul %268, %269, %cst_78 {dimension_numbers = #tpu.dot_dimension_numbers<[1], [0], [0], [1], [0, 0, 1, 1], [], []>} : vector<4x128xf32>, vector<128x128xf32>, vector<4x128xf32> -> vector<4x128xf32>
    %c0_79 = arith.constant 0 : index
    %c0_80 = arith.constant 0 : index
    %271 = vector.load %arg16[%c0_79, %c0_80] : memref<1x128xf32, #tpu.memory_space<vmem>>, vector<1x128xf32>
    %272 = vector.broadcast %271 : vector<1x128xf32> to vector<4x128xf32>
    %273 = arith.addf %270, %272 : vector<4x128xf32>
    %c0_81 = arith.constant 0 : index
    %c0_82 = arith.constant 0 : index
    %274 = vector.load %arg17[%c0_81, %c0_82] : memref<4x128xf32, #tpu.memory_space<vmem>>, vector<4x128xf32>
    tpu.vector_store %arg17[%c0_81, %c0_82], %273 {strides = array<i32>} : memref<4x128xf32, #tpu.memory_space<vmem>>, vector<4x128xf32>,
    return
  }
}

</mosaic_0001>

<llo_original>
// kernel: tpu_custom_call.1
$region0: #{tpu_custom_call.1}
  #allocation0 [shape = 'u32[]', space=smem, size = 0x4, offset = 0x4, fixed_abs, tag = 'smem constant byte address 0x4 - core index']
  #allocation1 [shape = 'u32[72,128]{1,0:T(1,128)}', space=vmem, size = 0x9000, scoped, tag = 'internal scratch']
  %s0 = inlined_call_operand.hbm [shape: f32[4,768], index: 0, kind: input, shape index: {}]
  %s1 = inlined_call_operand.hbm [shape: f32[768,256], index: 1, kind: input, shape index: {}]
  %s2 = inlined_call_operand.hbm [shape: f32[1,256], index: 2, kind: input, shape index: {}]
  %s3 = inlined_call_operand.hbm [shape: f32[256,128], index: 3, kind: input, shape index: {}]
  %s4 = inlined_call_operand.hbm [shape: f32[1,128], index: 4, kind: input, shape index: {}]
  %s5 = inlined_call_operand.hbm [shape: f32[128,128], index: 5, kind: input, shape index: {}]
  %s6 = inlined_call_operand.hbm [shape: f32[1,128], index: 6, kind: input, shape index: {}]
  %s7 = inlined_call_operand.hbm [shape: f32[128,128], index: 7, kind: input, shape index: {}]
  %s8 = inlined_call_operand.hbm [shape: f32[1,128], index: 8, kind: input, shape index: {}]
  %s9 = inlined_call_operand.hbm [shape: f32[128,512], index: 9, kind: input, shape index: {}]
  %s10 = inlined_call_operand.hbm [shape: f32[128,512], index: 10, kind: input, shape index: {}]
  %s11 = inlined_call_operand.vmem [shape: f32[1,512], index: 11, kind: input, shape index: {}]
  %s12 = inlined_call_operand.hbm [shape: f32[128,512], index: 12, kind: input, shape index: {}]
  %s13 = inlined_call_operand.hbm [shape: f32[128,512], index: 13, kind: input, shape index: {}]
  %s14 = inlined_call_operand.vmem [shape: f32[1,512], index: 14, kind: input, shape index: {}]
  %s15 = inlined_call_operand.hbm [shape: f32[128,128], index: 15, kind: input, shape index: {}]
  %s16 = inlined_call_operand.vmem [shape: f32[1,128], index: 16, kind: input, shape index: {}]
  %s17 = inlined_call_operand.hbm [shape: f32[4,128], index: 17, kind: output, shape index: {}]
  %s18 = sld [smem:[#allocation0]]
  $region134: #{tpu_custom_call.1} parent=0
    _
  %s20 = ssub.s32 1, %s18
  %s21 = scalar_select 0, %s20, %s18
  $region1: #{tpu_custom_call.1} parent=0
    #allocation2 [shape = 'u8[12288]{0}', space=vmem, size = 0x3000, scoped, tag = 'input window, operand 0, single buffered']
    #allocation3 [shape = 's32[1]{0}', space=sflag, size = 0x4, scoped, tag = 'scoped memory for tpu_custom_call.1']
    #allocation4 [shape = 's32[1]{0}', space=sflag, size = 0x4, scoped, tag = 'scoped memory for tpu_custom_call.1']
    #allocation5 [shape = 'u8[786432]{0}', space=vmem, size = 0xc0000, scoped, tag = 'input window, operand 1, single buffered']
    #allocation6 [shape = 's32[1]{0}', space=sflag, size = 0x4, scoped, tag = 'scoped memory for tpu_custom_call.1']
    #allocation7 [shape = 'u8[1024]{0}', space=vmem, size = 0x400, scoped, tag = 'input window, operand 2, single buffered']
    #allocation8 [shape = 'u8[131072]{0}', space=vmem, size = 0x20000, scoped, tag = 'input window, operand 3, single buffered']
    #allocation9 [shape = 's32[1]{0}', space=sflag, size = 0x4, scoped, tag = 'scoped memory for tpu_custom_call.1']
    #allocation10 [shape = 'u8[512]{0}', space=vmem, size = 0x400, scoped, tag = 'input window, operand 4, single buffered']
    #allocation11 [shape = 'u8[65536]{0}', space=vmem, size = 0x10000, scoped, tag = 'input window, operand 5, single buffered']
    #allocation12 [shape = 's32[1]{0}', space=sflag, size = 0x4, scoped, tag = 'scoped memory for tpu_custom_call.1']
    #allocation13 [shape = 'u8[512]{0}', space=vmem, size = 0x400, scoped, tag = 'input window, operand 6, single buffered']
    #allocation14 [shape = 'u8[65536]{0}', space=vmem, size = 0x10000, scoped, tag = 'input window, operand 7, single buffered']
    #allocation15 [shape = 's32[1]{0}', space=sflag, size = 0x4, scoped, tag = 'scoped memory for tpu_custom_call.1']
    #allocation16 [shape = 'u8[512]{0}', space=vmem, size = 0x400, scoped, tag = 'input window, operand 8, single buffered']
    #allocation17 [shape = 'u8[262144]{0}', space=vmem, size = 0x40000, scoped, tag = 'input window, operand 9, single buffered']
    #allocation18 [shape = 's32[1]{0}', space=sflag, size = 0x4, scoped, tag = 'scoped memory for tpu_custom_call.1']
    #allocation19 [shape = 'u8[262144]{0}', space=vmem, size = 0x40000, scoped, tag = 'input window, operand 10, single buffered']
    #allocation20 [shape = 'u8[262144]{0}', space=vmem, size = 0x40000, scoped, tag = 'input window, operand 12, single buffered']
    #allocation21 [shape = 's32[1]{0}', space=sflag, size = 0x4, scoped, tag = 'scoped memory for tpu_custom_call.1']
    #allocation22 [shape = 'u8[262144]{0}', space=vmem, size = 0x40000, scoped, tag = 'input window, operand 13, single buffered']
    #allocation23 [shape = 'u8[65536]{0}', space=vmem, size = 0x10000, scoped, tag = 'input window, operand 15, single buffered']
    #allocation24 [shape = 's32[1]{0}', space=sflag, size = 0x4, scoped, tag = 'scoped memory for tpu_custom_call.1']
    #allocation25 [shape = 'u8[2048]{0}', space=vmem, size = 0x800, scoped, tag = 'output window, operand 0, single buffered']
    %22 = vsyncpa [#allocation3], 0
    %23 = vsyncpa [#allocation6], 0
    %24 = vsyncpa [#allocation9], 0
    %25 = vsyncpa [#allocation12], 0
    %26 = vsyncpa [#allocation15], 0
    %27 = vsyncpa [#allocation18], 0
    %28 = vsyncpa [#allocation21], 0
    %29 = vsyncpa [#allocation24], 0
    %30 = vsyncpa [#allocation4], 0
    // Predicated region
    $region2: #{tpu_custom_call.1} parent=1 // pred_check
      _
    $region3: #{tpu_custom_call.1} parent=1 // pred_check_branch
      %32 = sbr.rel (0) target = $region5
    $region4: #{tpu_custom_call.1} parent=1 // pred_region
      %34 = vsyncadd [#allocation3], 0
      %s36 = sshll.u32 %s0, 4
      %s37 = int_to_ptr.hbm [resolvable:$true] %s36
      %s38 = sshll.u32 [#allocation2], 4
      %s39 = int_to_ptr.vmem [resolvable:$true] %s38
      %41 = dma.hbm_to_vmem [thread:$0]  %s37, 384, %s39, [#allocation3]
    $region5: #{tpu_custom_call.1} parent=1 // pred_fallthru
      _
    // Predicated region
    $region6: #{tpu_custom_call.1} parent=1 // pred_check
      _
    $region7: #{tpu_custom_call.1} parent=1 // pred_check_branch
      %43 = sbr.rel (0) target = $region9
    $region8: #{tpu_custom_call.1} parent=1 // pred_region
      %45 = vsyncadd [#allocation6], 0
      %s46 = sshll.u32 %s1, 4
      %s47 = int_to_ptr.hbm [resolvable:$true] %s46
      %s48 = sshll.u32 [#allocation5], 4
      %s49 = int_to_ptr.vmem [resolvable:$true] %s48
      %54 = dma.hbm_to_vmem [thread:$0]  %s47, 24576, %s49, [#allocation6], 256, 256, 16
    $region9: #{tpu_custom_call.1} parent=1 // pred_fallthru
      _
    // Predicated region
    $region10: #{tpu_custom_call.1} parent=1 // pred_check
      _
    $region11: #{tpu_custom_call.1} parent=1 // pred_check_branch
      %56 = sbr.rel (0) target = $region13
    $region12: #{tpu_custom_call.1} parent=1 // pred_region
      %58 = vsyncadd [#allocation6], 0
      %s60 = sshll.u32 %s2, 4
      %s61 = int_to_ptr.hbm [resolvable:$true] %s60
      %s62 = sshll.u32 [#allocation7], 4
      %s63 = int_to_ptr.vmem [resolvable:$true] %s62
      %65 = dma.hbm_to_vmem [thread:$0]  %s61, 32, %s63, [#allocation6]
    $region13: #{tpu_custom_call.1} parent=1 // pred_fallthru
      _
    // Predicated region
    $region14: #{tpu_custom_call.1} parent=1 // pred_check
      _
    $region15: #{tpu_custom_call.1} parent=1 // pred_check_branch
      %67 = sbr.rel (0) target = $region17
    $region16: #{tpu_custom_call.1} parent=1 // pred_region
      %69 = vsyncadd [#allocation9], 0
      %s70 = sshll.u32 %s3, 4
      %s71 = int_to_ptr.hbm [resolvable:$true] %s70
      %s72 = sshll.u32 [#allocation8], 4
      %s73 = int_to_ptr.vmem [resolvable:$true] %s72
      %78 = dma.hbm_to_vmem [thread:$0]  %s71, 4096, %s73, [#allocation9], 128, 128, 8
    $region17: #{tpu_custom_call.1} parent=1 // pred_fallthru
      _
    // Predicated region
    $region18: #{tpu_custom_call.1} parent=1 // pred_check
      _
    $region19: #{tpu_custom_call.1} parent=1 // pred_check_branch
      %80 = sbr.rel (0) target = $region21
    $region20: #{tpu_custom_call.1} parent=1 // pred_region
      %82 = vsyncadd [#allocation9], 0
      %s84 = sshll.u32 %s4, 4
      %s85 = int_to_ptr.hbm [resolvable:$true] %s84
      %s86 = sshll.u32 [#allocation10], 4
      %s87 = int_to_ptr.vmem [resolvable:$true] %s86
      %89 = dma.hbm_to_vmem [thread:$0]  %s85, 16, %s87, [#allocation9]
    $region21: #{tpu_custom_call.1} parent=1 // pred_fallthru
      _
    // Predicated region
    $region22: #{tpu_custom_call.1} parent=1 // pred_check
      _
    $region23: #{tpu_custom_call.1} parent=1 // pred_check_branch
      %91 = sbr.rel (0) target = $region25
    $region24: #{tpu_custom_call.1} parent=1 // pred_region
      %93 = vsyncadd [#allocation12], 0
      %s94 = sshll.u32 %s5, 4
      %s95 = int_to_ptr.hbm [resolvable:$true] %s94
      %s96 = sshll.u32 [#allocation11], 4
      %s97 = int_to_ptr.vmem [resolvable:$true] %s96
      %102 = dma.hbm_to_vmem [thread:$0]  %s95, 2048, %s97, [#allocation12], 128, 128, 8
    $region25: #{tpu_custom_call.1} parent=1 // pred_fallthru
      _
    // Predicated region
    $region26: #{tpu_custom_call.1} parent=1 // pred_check
      _
    $region27: #{tpu_custom_call.1} parent=1 // pred_check_branch
      %104 = sbr.rel (0) target = $region29
    $region28: #{tpu_custom_call.1} parent=1 // pred_region
      %106 = vsyncadd [#allocation12], 0
      %s108 = sshll.u32 %s6, 4
      %s109 = int_to_ptr.hbm [resolvable:$true] %s108
      %s110 = sshll.u32 [#allocation13], 4
      %s111 = int_to_ptr.vmem [resolvable:$true] %s110
      %113 = dma.hbm_to_vmem [thread:$0]  %s109, 16, %s111, [#allocation12]
    $region29: #{tpu_custom_call.1} parent=1 // pred_fallthru
      _
    // Predicated region
    $region30: #{tpu_custom_call.1} parent=1 // pred_check
      _
    $region31: #{tpu_custom_call.1} parent=1 // pred_check_branch
      %115 = sbr.rel (0) target = $region33
    $region32: #{tpu_custom_call.1} parent=1 // pred_region
      %117 = vsyncadd [#allocation15], 0
      %s118 = sshll.u32 %s7, 4
      %s119 = int_to_ptr.hbm [resolvable:$true] %s118
      %s120 = sshll.u32 [#allocation14], 4
      %s121 = int_to_ptr.vmem [resolvable:$true] %s120
      %126 = dma.hbm_to_vmem [thread:$0]  %s119, 2048, %s121, [#allocation15], 128, 128, 8
    $region33: #{tpu_custom_call.1} parent=1 // pred_fallthru
      _
    // Predicated region
    $region34: #{tpu_custom_call.1} parent=1 // pred_check
      _
    $region35: #{tpu_custom_call.1} parent=1 // pred_check_branch
      %128 = sbr.rel (0) target = $region37
    $region36: #{tpu_custom_call.1} parent=1 // pred_region
      %130 = vsyncadd [#allocation15], 0
      %s132 = sshll.u32 %s8, 4
      %s133 = int_to_ptr.hbm [resolvable:$true] %s132
      %s134 = sshll.u32 [#allocation16], 4
      %s135 = int_to_ptr.vmem [resolvable:$true] %s134
      %137 = dma.hbm_to_vmem [thread:$0]  %s133, 16, %s135, [#allocation15]
    $region37: #{tpu_custom_call.1} parent=1 // pred_fallthru
      _
    // Predicated region
    $region38: #{tpu_custom_call.1} parent=1 // pred_check
      _
    $region39: #{tpu_custom_call.1} parent=1 // pred_check_branch
      %139 = sbr.rel (0) target = $region41
    $region40: #{tpu_custom_call.1} parent=1 // pred_region
      %141 = vsyncadd [#allocation18], 0
      %s142 = sshll.u32 %s9, 4
      %s143 = int_to_ptr.hbm [resolvable:$true] %s142
      %s144 = sshll.u32 [#allocation17], 4
      %s145 = int_to_ptr.vmem [resolvable:$true] %s144
      %150 = dma.hbm_to_vmem [thread:$0]  %s143, 8192, %s145, [#allocation18], 512, 512, 32
    $region41: #{tpu_custom_call.1} parent=1 // pred_fallthru
      _
    // Predicated region
    $region42: #{tpu_custom_call.1} parent=1 // pred_check
      _
    $region43: #{tpu_custom_call.1} parent=1 // pred_check_branch
      %152 = sbr.rel (0) target = $region45
    $region44: #{tpu_custom_call.1} parent=1 // pred_region
      %154 = vsyncadd [#allocation18], 0
      %s155 = sshll.u32 %s10, 4
      %s156 = int_to_ptr.hbm [resolvable:$true] %s155
      %s157 = sshll.u32 [#allocation19], 4
      %s158 = int_to_ptr.vmem [resolvable:$true] %s157
      %163 = dma.hbm_to_vmem [thread:$0]  %s156, 8192, %s158, [#allocation18], 512, 512, 32
    $region45: #{tpu_custom_call.1} parent=1 // pred_fallthru
      _
    // Predicated region
    $region46: #{tpu_custom_call.1} parent=1 // pred_check
      _
    $region47: #{tpu_custom_call.1} parent=1 // pred_check_branch
      %165 = sbr.rel (0) target = $region49
    $region48: #{tpu_custom_call.1} parent=1 // pred_region
      _
    $region49: #{tpu_custom_call.1} parent=1 // pred_fallthru
      _
    // Predicated region
    $region50: #{tpu_custom_call.1} parent=1 // pred_check
      _
    $region51: #{tpu_custom_call.1} parent=1 // pred_check_branch
      %167 = sbr.rel (0) target = $region53
    $region52: #{tpu_custom_call.1} parent=1 // pred_region
      %169 = vsyncadd [#allocation21], 0
      %s170 = sshll.u32 %s12, 4
      %s171 = int_to_ptr.hbm [resolvable:$true] %s170
      %s172 = sshll.u32 [#allocation20], 4
      %s173 = int_to_ptr.vmem [resolvable:$true] %s172
      %178 = dma.hbm_to_vmem [thread:$0]  %s171, 8192, %s173, [#allocation21], 512, 512, 32
    $region53: #{tpu_custom_call.1} parent=1 // pred_fallthru
      _
    // Predicated region
    $region54: #{tpu_custom_call.1} parent=1 // pred_check
      _
    $region55: #{tpu_custom_call.1} parent=1 // pred_check_branch
      %180 = sbr.rel (0) target = $region57
    $region56: #{tpu_custom_call.1} parent=1 // pred_region
      %182 = vsyncadd [#allocation21], 0
      %s183 = sshll.u32 %s13, 4
      %s184 = int_to_ptr.hbm [resolvable:$true] %s183
      %s185 = sshll.u32 [#allocation22], 4
      %s186 = int_to_ptr.vmem [resolvable:$true] %s185
      %191 = dma.hbm_to_vmem [thread:$0]  %s184, 8192, %s186, [#allocation21], 512, 512, 32
    $region57: #{tpu_custom_call.1} parent=1 // pred_fallthru
      _
    // Predicated region
    $region58: #{tpu_custom_call.1} parent=1 // pred_check
      _
    $region59: #{tpu_custom_call.1} parent=1 // pred_check_branch
      %193 = sbr.rel (0) target = $region61
    $region60: #{tpu_custom_call.1} parent=1 // pred_region
      _
    $region61: #{tpu_custom_call.1} parent=1 // pred_fallthru
      _
    // Predicated region
    $region62: #{tpu_custom_call.1} parent=1 // pred_check
      _
    $region63: #{tpu_custom_call.1} parent=1 // pred_check_branch
      %195 = sbr.rel (0) target = $region65
    $region64: #{tpu_custom_call.1} parent=1 // pred_region
      %197 = vsyncadd [#allocation24], 0
      %s198 = sshll.u32 %s15, 4
      %s199 = int_to_ptr.hbm [resolvable:$true] %s198
      %s200 = sshll.u32 [#allocation23], 4
      %s201 = int_to_ptr.vmem [resolvable:$true] %s200
      %206 = dma.hbm_to_vmem [thread:$0]  %s199, 2048, %s201, [#allocation24], 128, 128, 8
    $region65: #{tpu_custom_call.1} parent=1 // pred_fallthru
      _
    // Predicated region
    $region66: #{tpu_custom_call.1} parent=1 // pred_check
      _
    $region67: #{tpu_custom_call.1} parent=1 // pred_check_branch
      %208 = sbr.rel (0) target = $region69
    $region68: #{tpu_custom_call.1} parent=1 // pred_region
      _
    $region69: #{tpu_custom_call.1} parent=1 // pred_fallthru
      _
    // Predicated region
    $region70: #{tpu_custom_call.1} parent=1 // pred_check
      _
    $region71: #{tpu_custom_call.1} parent=1 // pred_check_branch
      %210 = sbr.rel (0) target = $region73
    $region72: #{tpu_custom_call.1} parent=1 // pred_region
      %212 = dma.done [#allocation3], 384
    $region73: #{tpu_custom_call.1} parent=1 // pred_fallthru
      _
    // Predicated region
    $region74: #{tpu_custom_call.1} parent=1 // pred_check
      _
    $region75: #{tpu_custom_call.1} parent=1 // pred_check_branch
      %214 = sbr.rel (0) target = $region77
    $region76: #{tpu_custom_call.1} parent=1 // pred_region
      %216 = dma.done [#allocation6], 24576
    $region77: #{tpu_custom_call.1} parent=1 // pred_fallthru
      _
    // Predicated region
    $region78: #{tpu_custom_call.1} parent=1 // pred_check
      _
    $region79: #{tpu_custom_call.1} parent=1 // pred_check_branch
      %218 = sbr.rel (0) target = $region81
    $region80: #{tpu_custom_call.1} parent=1 // pred_region
      %220 = dma.done [#allocation6], 32
    $region81: #{tpu_custom_call.1} parent=1 // pred_fallthru
      _
    // Predicated region
    $region82: #{tpu_custom_call.1} parent=1 // pred_check
      _
    $region83: #{tpu_custom_call.1} parent=1 // pred_check_branch
      %222 = sbr.rel (0) target = $region85
    $region84: #{tpu_custom_call.1} parent=1 // pred_region
      %224 = dma.done [#allocation9], 4096
    $region85: #{tpu_custom_call.1} parent=1 // pred_fallthru
      _
    // Predicated region
    $region86: #{tpu_custom_call.1} parent=1 // pred_check
      _
    $region87: #{tpu_custom_call.1} parent=1 // pred_check_branch
      %226 = sbr.rel (0) target = $region89
    $region88: #{tpu_custom_call.1} parent=1 // pred_region
      %228 = dma.done [#allocation9], 16
    $region89: #{tpu_custom_call.1} parent=1 // pred_fallthru
      _
    // Predicated region
    $region90: #{tpu_custom_call.1} parent=1 // pred_check
      _
    $region91: #{tpu_custom_call.1} parent=1 // pred_check_branch
      %230 = sbr.rel (0) target = $region93
    $region92: #{tpu_custom_call.1} parent=1 // pred_region
      %232 = dma.done [#allocation12], 2048
    $region93: #{tpu_custom_call.1} parent=1 // pred_fallthru
      _
    // Predicated region
    $region94: #{tpu_custom_call.1} parent=1 // pred_check
      _
    $region95: #{tpu_custom_call.1} parent=1 // pred_check_branch
      %234 = sbr.rel (0) target = $region97
    $region96: #{tpu_custom_call.1} parent=1 // pred_region
      %236 = dma.done [#allocation12], 16
    $region97: #{tpu_custom_call.1} parent=1 // pred_fallthru
      _
    // Predicated region
    $region98: #{tpu_custom_call.1} parent=1 // pred_check
      _
    $region99: #{tpu_custom_call.1} parent=1 // pred_check_branch
      %238 = sbr.rel (0) target = $region101
    $region100: #{tpu_custom_call.1} parent=1 // pred_region
      %240 = dma.done [#allocation15], 2048
    $region101: #{tpu_custom_call.1} parent=1 // pred_fallthru
      _
    // Predicated region
    $region102: #{tpu_custom_call.1} parent=1 // pred_check
      _
    $region103: #{tpu_custom_call.1} parent=1 // pred_check_branch
      %242 = sbr.rel (0) target = $region105
    $region104: #{tpu_custom_call.1} parent=1 // pred_region
      %244 = dma.done [#allocation15], 16
    $region105: #{tpu_custom_call.1} parent=1 // pred_fallthru
      _
    // Predicated region
    $region106: #{tpu_custom_call.1} parent=1 // pred_check
      _
    $region107: #{tpu_custom_call.1} parent=1 // pred_check_branch
      %246 = sbr.rel (0) target = $region109
    $region108: #{tpu_custom_call.1} parent=1 // pred_region
      %248 = dma.done [#allocation18], 8192
    $region109: #{tpu_custom_call.1} parent=1 // pred_fallthru
      _
    // Predicated region
    $region110: #{tpu_custom_call.1} parent=1 // pred_check
      _
    $region111: #{tpu_custom_call.1} parent=1 // pred_check_branch
      %250 = sbr.rel (0) target = $region113
    $region112: #{tpu_custom_call.1} parent=1 // pred_region
      %252 = dma.done [#allocation18], 8192
    $region113: #{tpu_custom_call.1} parent=1 // pred_fallthru
      _
    // Predicated region
    $region114: #{tpu_custom_call.1} parent=1 // pred_check
      _
    $region115: #{tpu_custom_call.1} parent=1 // pred_check_branch
      %254 = sbr.rel (0) target = $region117
    $region116: #{tpu_custom_call.1} parent=1 // pred_region
      %256 = dma.done [#allocation21], 8192
    $region117: #{tpu_custom_call.1} parent=1 // pred_fallthru
      _
    // Predicated region
    $region118: #{tpu_custom_call.1} parent=1 // pred_check
      _
    $region119: #{tpu_custom_call.1} parent=1 // pred_check_branch
      %258 = sbr.rel (0) target = $region121
    $region120: #{tpu_custom_call.1} parent=1 // pred_region
      %260 = dma.done [#allocation21], 8192
    $region121: #{tpu_custom_call.1} parent=1 // pred_fallthru
      _
    // Predicated region
    $region122: #{tpu_custom_call.1} parent=1 // pred_check
      _
    $region123: #{tpu_custom_call.1} parent=1 // pred_check_branch
      %262 = sbr.rel (0) target = $region125
    $region124: #{tpu_custom_call.1} parent=1 // pred_region
      %264 = dma.done [#allocation24], 2048
    $region125: #{tpu_custom_call.1} parent=1 // pred_fallthru
      _
    %v265 = vld [vmem:[#allocation2] sm:$0xff]
    %v266 = vld [vmem:[#allocation2 + $0x8] sm:$0xff]
    %v267 = vld [vmem:[#allocation2 + $0x10] sm:$0xff]
    %v268 = vld [vmem:[#allocation5] sm:$0xff]
    %v269 = vld [vmem:[#allocation5 + $0x8] sm:$0xff]
    %v270 = vld [vmem:[#allocation5 + $0x10] sm:$0xff]
    %v271 = vld [vmem:[#allocation5 + $0x18] sm:$0xff]
    %v272 = vld [vmem:[#allocation5 + $0x20] sm:$0xff]
    %v273 = vld [vmem:[#allocation5 + $0x28] sm:$0xff]
    %v274 = vld [vmem:[#allocation5 + $0x30] sm:$0xff]
    %v275 = vld [vmem:[#allocation5 + $0x38] sm:$0xff]
    %v276 = vld [vmem:[#allocation5 + $0x40] sm:$0xff]
    %v277 = vld [vmem:[#allocation5 + $0x48] sm:$0xff]
    %v278 = vld [vmem:[#allocation5 + $0x50] sm:$0xff]
    %v279 = vld [vmem:[#allocation5 + $0x58] sm:$0xff]
    %v280 = vld [vmem:[#allocation5 + $0x60] sm:$0xff]
    %v281 = vld [vmem:[#allocation5 + $0x68] sm:$0xff]
    %v282 = vld [vmem:[#allocation5 + $0x70] sm:$0xff]
    %v283 = vld [vmem:[#allocation5 + $0x78] sm:$0xff]
    %v284 = vld [vmem:[#allocation5 + $0x80] sm:$0xff]
    %v285 = vld [vmem:[#allocation5 + $0x88] sm:$0xff]
    %v286 = vld [vmem:[#allocation5 + $0x90] sm:$0xff]
    %v287 = vld [vmem:[#allocation5 + $0x98] sm:$0xff]
    %v288 = vld [vmem:[#allocation5 + $0xa0] sm:$0xff]
    %v289 = vld [vmem:[#allocation5 + $0xa8] sm:$0xff]
    %v290 = vld [vmem:[#allocation5 + $0xb0] sm:$0xff]
    %v291 = vld [vmem:[#allocation5 + $0xb8] sm:$0xff]
    %v292 = vld [vmem:[#allocation5 + $0xc0] sm:$0xff]
    %v293 = vld [vmem:[#allocation5 + $0xc8] sm:$0xff]
    %v294 = vld [vmem:[#allocation5 + $0xd0] sm:$0xff]
    %v295 = vld [vmem:[#allocation5 + $0xd8] sm:$0xff]
    %v296 = vld [vmem:[#allocation5 + $0xe0] sm:$0xff]
    %v297 = vld [vmem:[#allocation5 + $0xe8] sm:$0xff]
    %v298 = vld [vmem:[#allocation5 + $0xf0] sm:$0xff]
    %v299 = vld [vmem:[#allocation5 + $0xf8] sm:$0xff]
    %v300 = vld [vmem:[#allocation5 + $0x100] sm:$0xff]
    %v301 = vld [vmem:[#allocation5 + $0x108] sm:$0xff]
    %v302 = vld [vmem:[#allocation5 + $0x110] sm:$0xff]
    %v303 = vld [vmem:[#allocation5 + $0x118] sm:$0xff]
    %v304 = vld [vmem:[#allocation5 + $0x120] sm:$0xff]
    %v305 = vld [vmem:[#allocation5 + $0x128] sm:$0xff]
    %v306 = vld [vmem:[#allocation5 + $0x130] sm:$0xff]
    %v307 = vld [vmem:[#allocation5 + $0x138] sm:$0xff]
    %v308 = vld [vmem:[#allocation5 + $0x140] sm:$0xff]
    %v309 = vld [vmem:[#allocation5 + $0x148] sm:$0xff]
    %v310 = vld [vmem:[#allocation5 + $0x150] sm:$0xff]
    %v311 = vld [vmem:[#allocation5 + $0x158] sm:$0xff]
    %v312 = vld [vmem:[#allocation5 + $0x160] sm:$0xff]
    %v313 = vld [vmem:[#allocation5 + $0x168] sm:$0xff]
    %v314 = vld [vmem:[#allocation5 + $0x170] sm:$0xff]
    %v315 = vld [vmem:[#allocation5 + $0x178] sm:$0xff]
    %v316 = vld [vmem:[#allocation5 + $0x180] sm:$0xff]
    %v317 = vld [vmem:[#allocation5 + $0x188] sm:$0xff]
    %v318 = vld [vmem:[#allocation5 + $0x190] sm:$0xff]
    %v319 = vld [vmem:[#allocation5 + $0x198] sm:$0xff]
    %v320 = vld [vmem:[#allocation5 + $0x1a0] sm:$0xff]
    %v321 = vld [vmem:[#allocation5 + $0x1a8] sm:$0xff]
    %v322 = vld [vmem:[#allocation5 + $0x1b0] sm:$0xff]
    %v323 = vld [vmem:[#allocation5 + $0x1b8] sm:$0xff]
    %v324 = vld [vmem:[#allocation5 + $0x1c0] sm:$0xff]
    %v325 = vld [vmem:[#allocation5 + $0x1c8] sm:$0xff]
    %v326 = vld [vmem:[#allocation5 + $0x1d0] sm:$0xff]
    %v327 = vld [vmem:[#allocation5 + $0x1d8] sm:$0xff]
    %v328 = vld [vmem:[#allocation5 + $0x1e0] sm:$0xff]
    %v329 = vld [vmem:[#allocation5 + $0x1e8] sm:$0xff]
    %v330 = vld [vmem:[#allocation5 + $0x1f0] sm:$0xff]
    %v331 = vld [vmem:[#allocation5 + $0x1f8] sm:$0xff]
    %v332 = vld [vmem:[#allocation5 + $0x200] sm:$0xff]
    %v333 = vld [vmem:[#allocation5 + $0x208] sm:$0xff]
    %v334 = vld [vmem:[#allocation5 + $0x210] sm:$0xff]
    %v335 = vld [vmem:[#allocation5 + $0x218] sm:$0xff]
    %v336 = vld [vmem:[#allocation5 + $0x220] sm:$0xff]
    %v337 = vld [vmem:[#allocation5 + $0x228] sm:$0xff]
    %v338 = vld [vmem:[#allocation5 + $0x230] sm:$0xff]
    %v339 = vld [vmem:[#allocation5 + $0x238] sm:$0xff]
    %v340 = vld [vmem:[#allocation5 + $0x240] sm:$0xff]
    %v341 = vld [vmem:[#allocation5 + $0x248] sm:$0xff]
    %v342 = vld [vmem:[#allocation5 + $0x250] sm:$0xff]
    %v343 = vld [vmem:[#allocation5 + $0x258] sm:$0xff]
    %v344 = vld [vmem:[#allocation5 + $0x260] sm:$0xff]
    %v345 = vld [vmem:[#allocation5 + $0x268] sm:$0xff]
    %v346 = vld [vmem:[#allocation5 + $0x270] sm:$0xff]
    %v347 = vld [vmem:[#allocation5 + $0x278] sm:$0xff]
    %v348 = vld [vmem:[#allocation5 + $0x280] sm:$0xff]
    %v349 = vld [vmem:[#allocation5 + $0x288] sm:$0xff]
    %v350 = vld [vmem:[#allocation5 + $0x290] sm:$0xff]
    %v351 = vld [vmem:[#allocation5 + $0x298] sm:$0xff]
    %v352 = vld [vmem:[#allocation5 + $0x2a0] sm:$0xff]
    %v353 = vld [vmem:[#allocation5 + $0x2a8] sm:$0xff]
    %v354 = vld [vmem:[#allocation5 + $0x2b0] sm:$0xff]
    %v355 = vld [vmem:[#allocation5 + $0x2b8] sm:$0xff]
    %v356 = vld [vmem:[#allocation5 + $0x2c0] sm:$0xff]
    %v357 = vld [vmem:[#allocation5 + $0x2c8] sm:$0xff]
    %v358 = vld [vmem:[#allocation5 + $0x2d0] sm:$0xff]
    %v359 = vld [vmem:[#allocation5 + $0x2d8] sm:$0xff]
    %v360 = vld [vmem:[#allocation5 + $0x2e0] sm:$0xff]
    %v361 = vld [vmem:[#allocation5 + $0x2e8] sm:$0xff]
    %v362 = vld [vmem:[#allocation5 + $0x2f0] sm:$0xff]
    %v363 = vld [vmem:[#allocation5 + $0x2f8] sm:$0xff]
    %v364 = vld [vmem:[#allocation5 + $0x300] sm:$0xff]
    %v365 = vld [vmem:[#allocation5 + $0x308] sm:$0xff]
    %v366 = vld [vmem:[#allocation5 + $0x310] sm:$0xff]
    %v367 = vld [vmem:[#allocation5 + $0x318] sm:$0xff]
    %v368 = vld [vmem:[#allocation5 + $0x320] sm:$0xff]
    %v369 = vld [vmem:[#allocation5 + $0x328] sm:$0xff]
    %v370 = vld [vmem:[#allocation5 + $0x330] sm:$0xff]
    %v371 = vld [vmem:[#allocation5 + $0x338] sm:$0xff]
    %v372 = vld [vmem:[#allocation5 + $0x340] sm:$0xff]
    %v373 = vld [vmem:[#allocation5 + $0x348] sm:$0xff]
    %v374 = vld [vmem:[#allocation5 + $0x350] sm:$0xff]
    %v375 = vld [vmem:[#allocation5 + $0x358] sm:$0xff]
    %v376 = vld [vmem:[#allocation5 + $0x360] sm:$0xff]
    %v377 = vld [vmem:[#allocation5 + $0x368] sm:$0xff]
    %v378 = vld [vmem:[#allocation5 + $0x370] sm:$0xff]
    %v379 = vld [vmem:[#allocation5 + $0x378] sm:$0xff]
    %v380 = vld [vmem:[#allocation5 + $0x380] sm:$0xff]
    %v381 = vld [vmem:[#allocation5 + $0x388] sm:$0xff]
    %v382 = vld [vmem:[#allocation5 + $0x390] sm:$0xff]
    %v383 = vld [vmem:[#allocation5 + $0x398] sm:$0xff]
    %v384 = vld [vmem:[#allocation5 + $0x3a0] sm:$0xff]
    %v385 = vld [vmem:[#allocation5 + $0x3a8] sm:$0xff]
    %v386 = vld [vmem:[#allocation5 + $0x3b0] sm:$0xff]
    %v387 = vld [vmem:[#allocation5 + $0x3b8] sm:$0xff]
    %v388 = vld [vmem:[#allocation5 + $0x3c0] sm:$0xff]
    %v389 = vld [vmem:[#allocation5 + $0x3c8] sm:$0xff]
    %v390 = vld [vmem:[#allocation5 + $0x3d0] sm:$0xff]
    %v391 = vld [vmem:[#allocation5 + $0x3d8] sm:$0xff]
    %v392 = vld [vmem:[#allocation5 + $0x3e0] sm:$0xff]
    %v393 = vld [vmem:[#allocation5 + $0x3e8] sm:$0xff]
    %v394 = vld [vmem:[#allocation5 + $0x3f0] sm:$0xff]
    %v395 = vld [vmem:[#allocation5 + $0x3f8] sm:$0xff]
    %v396 = vld [vmem:[#allocation5 + $0x400] sm:$0xff]
    %v397 = vld [vmem:[#allocation5 + $0x408] sm:$0xff]
    %v398 = vld [vmem:[#allocation5 + $0x410] sm:$0xff]
    %v399 = vld [vmem:[#allocation5 + $0x418] sm:$0xff]
    %v400 = vld [vmem:[#allocation5 + $0x420] sm:$0xff]
    %v401 = vld [vmem:[#allocation5 + $0x428] sm:$0xff]
    %v402 = vld [vmem:[#allocation5 + $0x430] sm:$0xff]
    %v403 = vld [vmem:[#allocation5 + $0x438] sm:$0xff]
    %v404 = vld [vmem:[#allocation5 + $0x440] sm:$0xff]
    %v405 = vld [vmem:[#allocation5 + $0x448] sm:$0xff]
    %v406 = vld [vmem:[#allocation5 + $0x450] sm:$0xff]
    %v407 = vld [vmem:[#allocation5 + $0x458] sm:$0xff]
    %v408 = vld [vmem:[#allocation5 + $0x460] sm:$0xff]
    %v409 = vld [vmem:[#allocation5 + $0x468] sm:$0xff]
    %v410 = vld [vmem:[#allocation5 + $0x470] sm:$0xff]
    %v411 = vld [vmem:[#allocation5 + $0x478] sm:$0xff]
    %v412 = vld [vmem:[#allocation5 + $0x480] sm:$0xff]
    %v413 = vld [vmem:[#allocation5 + $0x488] sm:$0xff]
    %v414 = vld [vmem:[#allocation5 + $0x490] sm:$0xff]
    %v415 = vld [vmem:[#allocation5 + $0x498] sm:$0xff]
    %v416 = vld [vmem:[#allocation5 + $0x4a0] sm:$0xff]
    %v417 = vld [vmem:[#allocation5 + $0x4a8] sm:$0xff]
    %v418 = vld [vmem:[#allocation5 + $0x4b0] sm:$0xff]
    %v419 = vld [vmem:[#allocation5 + $0x4b8] sm:$0xff]
    %v420 = vld [vmem:[#allocation5 + $0x4c0] sm:$0xff]
    %v421 = vld [vmem:[#allocation5 + $0x4c8] sm:$0xff]
    %v422 = vld [vmem:[#allocation5 + $0x4d0] sm:$0xff]
    %v423 = vld [vmem:[#allocation5 + $0x4d8] sm:$0xff]
    %v424 = vld [vmem:[#allocation5 + $0x4e0] sm:$0xff]
    %v425 = vld [vmem:[#allocation5 + $0x4e8] sm:$0xff]
    %v426 = vld [vmem:[#allocation5 + $0x4f0] sm:$0xff]
    %v427 = vld [vmem:[#allocation5 + $0x4f8] sm:$0xff]
    %v428 = vld [vmem:[#allocation5 + $0x500] sm:$0xff]
    %v429 = vld [vmem:[#allocation5 + $0x508] sm:$0xff]
    %v430 = vld [vmem:[#allocation5 + $0x510] sm:$0xff]
    %v431 = vld [vmem:[#allocation5 + $0x518] sm:$0xff]
    %v432 = vld [vmem:[#allocation5 + $0x520] sm:$0xff]
    %v433 = vld [vmem:[#allocation5 + $0x528] sm:$0xff]
    %v434 = vld [vmem:[#allocation5 + $0x530] sm:$0xff]
    %v435 = vld [vmem:[#allocation5 + $0x538] sm:$0xff]
    %v436 = vld [vmem:[#allocation5 + $0x540] sm:$0xff]
    %v437 = vld [vmem:[#allocation5 + $0x548] sm:$0xff]
    %v438 = vld [vmem:[#allocation5 + $0x550] sm:$0xff]
    %v439 = vld [vmem:[#allocation5 + $0x558] sm:$0xff]
    %v440 = vld [vmem:[#allocation5 + $0x560] sm:$0xff]
    %v441 = vld [vmem:[#allocation5 + $0x568] sm:$0xff]
    %v442 = vld [vmem:[#allocation5 + $0x570] sm:$0xff]
    %v443 = vld [vmem:[#allocation5 + $0x578] sm:$0xff]
    %v444 = vld [vmem:[#allocation5 + $0x580] sm:$0xff]
    %v445 = vld [vmem:[#allocation5 + $0x588] sm:$0xff]
    %v446 = vld [vmem:[#allocation5 + $0x590] sm:$0xff]
    %v447 = vld [vmem:[#allocation5 + $0x598] sm:$0xff]
    %v448 = vld [vmem:[#allocation5 + $0x5a0] sm:$0xff]
    %v449 = vld [vmem:[#allocation5 + $0x5a8] sm:$0xff]
    %v450 = vld [vmem:[#allocation5 + $0x5b0] sm:$0xff]
    %v451 = vld [vmem:[#allocation5 + $0x5b8] sm:$0xff]
    %v452 = vld [vmem:[#allocation5 + $0x5c0] sm:$0xff]
    %v453 = vld [vmem:[#allocation5 + $0x5c8] sm:$0xff]
    %v454 = vld [vmem:[#allocation5 + $0x5d0] sm:$0xff]
    %v455 = vld [vmem:[#allocation5 + $0x5d8] sm:$0xff]
    %v456 = vld [vmem:[#allocation5 + $0x5e0] sm:$0xff]
    %v457 = vld [vmem:[#allocation5 + $0x5e8] sm:$0xff]
    %v458 = vld [vmem:[#allocation5 + $0x5f0] sm:$0xff]
    %v459 = vld [vmem:[#allocation5 + $0x5f8] sm:$0xff]
    %v460 = vld [vmem:[#allocation7] sm:$0x3]
    %v462 = vperm.slane %v460, 0
    %v463 = vperm.slane %v460, 1
    %469 = vst [vmem:[#allocation1] ss:$2 sm:$0xff] %v265
    %s470 = scalar_lea.vmem [#allocation1], 16
    %471 = vst [vmem:[%s470] ss:$2 sm:$0xff] %v266
    %s472 = scalar_lea.vmem [#allocation1], 32
    %473 = vst [vmem:[%s472] ss:$2 sm:$0xff] %v267
    %v474 = vld.sshfl [vmem:[#allocation1] sm:$0xff pattern:$0x75316420]
    %v475 = vld.sshfl [vmem:[#allocation1 + $0x8] sm:$0xff pattern:$0x75316420]
    %v476 = vld.sshfl [vmem:[#allocation1 + $0x10] sm:$0xff pattern:$0x75316420]
    %v477 = vld.sshfl [vmem:[#allocation1 + $0x18] sm:$0xff pattern:$0x75316420]
    %v478 = vld.sshfl [vmem:[#allocation1 + $0x20] sm:$0xff pattern:$0x75316420]
    %v479 = vld.sshfl [vmem:[#allocation1 + $0x28] sm:$0xff pattern:$0x75316420]
    %486 = vmatpush.msra.mxu0 %v298
    %487 = vmatpush.msra.mxu0 %v296
    %488 = vmatpush.msra.mxu0 %v294
    %489 = vmatpush.msra.mxu0 %v292
    %490 = vmatpush.msra.mxu0 %v290
    %491 = vmatpush.msra.mxu0 %v288
    %492 = vmatpush.msra.mxu0 %v286
    %493 = vmatpush.msra.mxu0 %v284
    %494 = vmatpush.msra.mxu0 %v282
    %495 = vmatpush.msra.mxu0 %v280
    %496 = vmatpush.msra.mxu0 %v278
    %497 = vmatpush.msra.mxu0 %v276
    %498 = vmatpush.msra.mxu0 %v274
    %499 = vmatpush.msra.mxu0 %v272
    %500 = vmatpush.msra.mxu0 %v270
    %501 = vmatpush.msra.mxu0 %v268
    %502 = vmatmul.f32.gmra.mxu0 %v474
    %v503 = vpop.f32.mrf.mxu0
    %v504 = vadd.f32 %v462, %v503
    %505 = vdwg.mxu0
    %506 = vmatpush.msra.mxu0 %v330
    %507 = vmatpush.msra.mxu0 %v328
    %508 = vmatpush.msra.mxu0 %v326
    %509 = vmatpush.msra.mxu0 %v324
    %510 = vmatpush.msra.mxu0 %v322
    %511 = vmatpush.msra.mxu0 %v320
    %512 = vmatpush.msra.mxu0 %v318
    %513 = vmatpush.msra.mxu0 %v316
    %514 = vmatpush.msra.mxu0 %v314
    %515 = vmatpush.msra.mxu0 %v312
    %516 = vmatpush.msra.mxu0 %v310
    %517 = vmatpush.msra.mxu0 %v308
    %518 = vmatpush.msra.mxu0 %v306
    %519 = vmatpush.msra.mxu0 %v304
    %520 = vmatpush.msra.mxu0 %v302
    %521 = vmatpush.msra.mxu0 %v300
    %522 = vmatmul.f32.gmra.mxu0 %v475
    %v523 = vpop.f32.mrf.mxu0
    %v524 = vadd.f32 %v504, %v523
    %525 = vdwg.mxu0
    %526 = vmatpush.msra.mxu0 %v362
    %527 = vmatpush.msra.mxu0 %v360
    %528 = vmatpush.msra.mxu0 %v358
    %529 = vmatpush.msra.mxu0 %v356
    %530 = vmatpush.msra.mxu0 %v354
    %531 = vmatpush.msra.mxu0 %v352
    %532 = vmatpush.msra.mxu0 %v350
    %533 = vmatpush.msra.mxu0 %v348
    %534 = vmatpush.msra.mxu0 %v346
    %535 = vmatpush.msra.mxu0 %v344
    %536 = vmatpush.msra.mxu0 %v342
    %537 = vmatpush.msra.mxu0 %v340
    %538 = vmatpush.msra.mxu0 %v338
    %539 = vmatpush.msra.mxu0 %v336
    %540 = vmatpush.msra.mxu0 %v334
    %541 = vmatpush.msra.mxu0 %v332
    %542 = vmatmul.f32.gmra.mxu0 %v476
    %v543 = vpop.f32.mrf.mxu0
    %v544 = vadd.f32 %v524, %v543
    %545 = vdwg.mxu0
    %546 = vmatpush.msra.mxu0 %v394
    %547 = vmatpush.msra.mxu0 %v392
    %548 = vmatpush.msra.mxu0 %v390
    %549 = vmatpush.msra.mxu0 %v388
    %550 = vmatpush.msra.mxu0 %v386
    %551 = vmatpush.msra.mxu0 %v384
    %552 = vmatpush.msra.mxu0 %v382
    %553 = vmatpush.msra.mxu0 %v380
    %554 = vmatpush.msra.mxu0 %v378
    %555 = vmatpush.msra.mxu0 %v376
    %556 = vmatpush.msra.mxu0 %v374
    %557 = vmatpush.msra.mxu0 %v372
    %558 = vmatpush.msra.mxu0 %v370
    %559 = vmatpush.msra.mxu0 %v368
    %560 = vmatpush.msra.mxu0 %v366
    %561 = vmatpush.msra.mxu0 %v364
    %562 = vmatmul.f32.gmra.mxu0 %v477
    %v563 = vpop.f32.mrf.mxu0
    %v564 = vadd.f32 %v544, %v563
    %565 = vdwg.mxu0
    %566 = vmatpush.msra.mxu0 %v426
    %567 = vmatpush.msra.mxu0 %v424
    %568 = vmatpush.msra.mxu0 %v422
    %569 = vmatpush.msra.mxu0 %v420
    %570 = vmatpush.msra.mxu0 %v418
    %571 = vmatpush.msra.mxu0 %v416
    %572 = vmatpush.msra.mxu0 %v414
    %573 = vmatpush.msra.mxu0 %v412
    %574 = vmatpush.msra.mxu0 %v410
    %575 = vmatpush.msra.mxu0 %v408
    %576 = vmatpush.msra.mxu0 %v406
    %577 = vmatpush.msra.mxu0 %v404
    %578 = vmatpush.msra.mxu0 %v402
    %579 = vmatpush.msra.mxu0 %v400
    %580 = vmatpush.msra.mxu0 %v398
    %581 = vmatpush.msra.mxu0 %v396
    %582 = vmatmul.f32.gmra.mxu0 %v478
    %v583 = vpop.f32.mrf.mxu0
    %v584 = vadd.f32 %v564, %v583
    %585 = vdwg.mxu0
    %586 = vmatpush.msra.mxu0 %v458
    %587 = vmatpush.msra.mxu0 %v456
    %588 = vmatpush.msra.mxu0 %v454
    %589 = vmatpush.msra.mxu0 %v452
    %590 = vmatpush.msra.mxu0 %v450
    %591 = vmatpush.msra.mxu0 %v448
    %592 = vmatpush.msra.mxu0 %v446
    %593 = vmatpush.msra.mxu0 %v444
    %594 = vmatpush.msra.mxu0 %v442
    %595 = vmatpush.msra.mxu0 %v440
    %596 = vmatpush.msra.mxu0 %v438
    %597 = vmatpush.msra.mxu0 %v436
    %598 = vmatpush.msra.mxu0 %v434
    %599 = vmatpush.msra.mxu0 %v432
    %600 = vmatpush.msra.mxu0 %v430
    %601 = vmatpush.msra.mxu0 %v428
    %602 = vmatmul.f32.gmra.mxu0 %v479
    %v603 = vpop.f32.mrf.mxu0
    %v604 = vadd.f32 %v584, %v603
    %605 = vdwg.mxu0
    %606 = vmatpush.msra.mxu0 %v299
    %607 = vmatpush.msra.mxu0 %v297
    %608 = vmatpush.msra.mxu0 %v295
    %609 = vmatpush.msra.mxu0 %v293
    %610 = vmatpush.msra.mxu0 %v291
    %611 = vmatpush.msra.mxu0 %v289
    %612 = vmatpush.msra.mxu0 %v287
    %613 = vmatpush.msra.mxu0 %v285
    %614 = vmatpush.msra.mxu0 %v283
    %615 = vmatpush.msra.mxu0 %v281
    %616 = vmatpush.msra.mxu0 %v279
    %617 = vmatpush.msra.mxu0 %v277
    %618 = vmatpush.msra.mxu0 %v275
    %619 = vmatpush.msra.mxu0 %v273
    %620 = vmatpush.msra.mxu0 %v271
    %621 = vmatpush.msra.mxu0 %v269
    %622 = vmatmul.f32.gmra.mxu0 %v474
    %v623 = vpop.f32.mrf.mxu0
    %v624 = vadd.f32 %v463, %v623
    %625 = vdwg.mxu0
    %626 = vmatpush.msra.mxu0 %v331
    %627 = vmatpush.msra.mxu0 %v329
    %628 = vmatpush.msra.mxu0 %v327
    %629 = vmatpush.msra.mxu0 %v325
    %630 = vmatpush.msra.mxu0 %v323
    %631 = vmatpush.msra.mxu0 %v321
    %632 = vmatpush.msra.mxu0 %v319
    %633 = vmatpush.msra.mxu0 %v317
    %634 = vmatpush.msra.mxu0 %v315
    %635 = vmatpush.msra.mxu0 %v313
    %636 = vmatpush.msra.mxu0 %v311
    %637 = vmatpush.msra.mxu0 %v309
    %638 = vmatpush.msra.mxu0 %v307
    %639 = vmatpush.msra.mxu0 %v305
    %640 = vmatpush.msra.mxu0 %v303
    %641 = vmatpush.msra.mxu0 %v301
    %642 = vmatmul.f32.gmra.mxu0 %v475
    %v643 = vpop.f32.mrf.mxu0
    %v644 = vadd.f32 %v624, %v643
    %645 = vdwg.mxu0
    %646 = vmatpush.msra.mxu0 %v363
    %647 = vmatpush.msra.mxu0 %v361
    %648 = vmatpush.msra.mxu0 %v359
    %649 = vmatpush.msra.mxu0 %v357
    %650 = vmatpush.msra.mxu0 %v355
    %651 = vmatpush.msra.mxu0 %v353
    %652 = vmatpush.msra.mxu0 %v351
    %653 = vmatpush.msra.mxu0 %v349
    %654 = vmatpush.msra.mxu0 %v347
    %655 = vmatpush.msra.mxu0 %v345
    %656 = vmatpush.msra.mxu0 %v343
    %657 = vmatpush.msra.mxu0 %v341
    %658 = vmatpush.msra.mxu0 %v339
    %659 = vmatpush.msra.mxu0 %v337
    %660 = vmatpush.msra.mxu0 %v335
    %661 = vmatpush.msra.mxu0 %v333
    %662 = vmatmul.f32.gmra.mxu0 %v476
    %v663 = vpop.f32.mrf.mxu0
    %v664 = vadd.f32 %v644, %v663
    %665 = vdwg.mxu0
    %666 = vmatpush.msra.mxu0 %v395
    %667 = vmatpush.msra.mxu0 %v393
    %668 = vmatpush.msra.mxu0 %v391
    %669 = vmatpush.msra.mxu0 %v389
    %670 = vmatpush.msra.mxu0 %v387
    %671 = vmatpush.msra.mxu0 %v385
    %672 = vmatpush.msra.mxu0 %v383
    %673 = vmatpush.msra.mxu0 %v381
    %674 = vmatpush.msra.mxu0 %v379
    %675 = vmatpush.msra.mxu0 %v377
    %676 = vmatpush.msra.mxu0 %v375
    %677 = vmatpush.msra.mxu0 %v373
    %678 = vmatpush.msra.mxu0 %v371
    %679 = vmatpush.msra.mxu0 %v369
    %680 = vmatpush.msra.mxu0 %v367
    %681 = vmatpush.msra.mxu0 %v365
    %682 = vmatmul.f32.gmra.mxu0 %v477
    %v683 = vpop.f32.mrf.mxu0
    %v684 = vadd.f32 %v664, %v683
    %685 = vdwg.mxu0
    %686 = vmatpush.msra.mxu0 %v427
    %687 = vmatpush.msra.mxu0 %v425
    %688 = vmatpush.msra.mxu0 %v423
    %689 = vmatpush.msra.mxu0 %v421
    %690 = vmatpush.msra.mxu0 %v419
    %691 = vmatpush.msra.mxu0 %v417
    %692 = vmatpush.msra.mxu0 %v415
    %693 = vmatpush.msra.mxu0 %v413
    %694 = vmatpush.msra.mxu0 %v411
    %695 = vmatpush.msra.mxu0 %v409
    %696 = vmatpush.msra.mxu0 %v407
    %697 = vmatpush.msra.mxu0 %v405
    %698 = vmatpush.msra.mxu0 %v403
    %699 = vmatpush.msra.mxu0 %v401
    %700 = vmatpush.msra.mxu0 %v399
    %701 = vmatpush.msra.mxu0 %v397
    %702 = vmatmul.f32.gmra.mxu0 %v478
    %v703 = vpop.f32.mrf.mxu0
    %v704 = vadd.f32 %v684, %v703
    %705 = vdwg.mxu0
    %706 = vmatpush.msra.mxu0 %v459
    %707 = vmatpush.msra.mxu0 %v457
    %708 = vmatpush.msra.mxu0 %v455
    %709 = vmatpush.msra.mxu0 %v453
    %710 = vmatpush.msra.mxu0 %v451
    %711 = vmatpush.msra.mxu0 %v449
    %712 = vmatpush.msra.mxu0 %v447
    %713 = vmatpush.msra.mxu0 %v445
    %714 = vmatpush.msra.mxu0 %v443
    %715 = vmatpush.msra.mxu0 %v441
    %716 = vmatpush.msra.mxu0 %v439
    %717 = vmatpush.msra.mxu0 %v437
    %718 = vmatpush.msra.mxu0 %v435
    %719 = vmatpush.msra.mxu0 %v433
    %720 = vmatpush.msra.mxu0 %v431
    %721 = vmatpush.msra.mxu0 %v429
    %722 = vmatmul.f32.gmra.mxu0 %v479
    %v723 = vpop.f32.mrf.mxu0
    %v724 = vadd.f32 %v704, %v723
    %725 = vdwg.mxu0
    %v726 = vld [vmem:[#allocation8] sm:$0xff]
    %v727 = vld [vmem:[#allocation8 + $0x8] sm:$0xff]
    %v728 = vld [vmem:[#allocation8 + $0x10] sm:$0xff]
    %v729 = vld [vmem:[#allocation8 + $0x18] sm:$0xff]
    %v730 = vld [vmem:[#allocation8 + $0x20] sm:$0xff]
    %v731 = vld [vmem:[#allocation8 + $0x28] sm:$0xff]
    %v732 = vld [vmem:[#allocation8 + $0x30] sm:$0xff]
    %v733 = vld [vmem:[#allocation8 + $0x38] sm:$0xff]
    %v734 = vld [vmem:[#allocation8 + $0x40] sm:$0xff]
    %v735 = vld [vmem:[#allocation8 + $0x48] sm:$0xff]
    %v736 = vld [vmem:[#allocation8 + $0x50] sm:$0xff]
    %v737 = vld [vmem:[#allocation8 + $0x58] sm:$0xff]
    %v738 = vld [vmem:[#allocation8 + $0x60] sm:$0xff]
    %v739 = vld [vmem:[#allocation8 + $0x68] sm:$0xff]
    %v740 = vld [vmem:[#allocation8 + $0x70] sm:$0xff]
    %v741 = vld [vmem:[#allocation8 + $0x78] sm:$0xff]
    %v742 = vld [vmem:[#allocation8 + $0x80] sm:$0xff]
    %v743 = vld [vmem:[#allocation8 + $0x88] sm:$0xff]
    %v744 = vld [vmem:[#allocation8 + $0x90] sm:$0xff]
    %v745 = vld [vmem:[#allocation8 + $0x98] sm:$0xff]
    %v746 = vld [vmem:[#allocation8 + $0xa0] sm:$0xff]
    %v747 = vld [vmem:[#allocation8 + $0xa8] sm:$0xff]
    %v748 = vld [vmem:[#allocation8 + $0xb0] sm:$0xff]
    %v749 = vld [vmem:[#allocation8 + $0xb8] sm:$0xff]
    %v750 = vld [vmem:[#allocation8 + $0xc0] sm:$0xff]
    %v751 = vld [vmem:[#allocation8 + $0xc8] sm:$0xff]
    %v752 = vld [vmem:[#allocation8 + $0xd0] sm:$0xff]
    %v753 = vld [vmem:[#allocation8 + $0xd8] sm:$0xff]
    %v754 = vld [vmem:[#allocation8 + $0xe0] sm:$0xff]
    %v755 = vld [vmem:[#allocation8 + $0xe8] sm:$0xff]
    %v756 = vld [vmem:[#allocation8 + $0xf0] sm:$0xff]
    %v757 = vld [vmem:[#allocation8 + $0xf8] sm:$0xff]
    %v758 = vld [vmem:[#allocation10] sm:$0x1]
    %v760 = vperm.slane %v758, 0
    %762 = vmatpush.msra.mxu0 %v741
    %763 = vmatpush.msra.mxu0 %v740
    %764 = vmatpush.msra.mxu0 %v739
    %765 = vmatpush.msra.mxu0 %v738
    %766 = vmatpush.msra.mxu0 %v737
    %767 = vmatpush.msra.mxu0 %v736
    %768 = vmatpush.msra.mxu0 %v735
    %769 = vmatpush.msra.mxu0 %v734
    %770 = vmatpush.msra.mxu0 %v733
    %771 = vmatpush.msra.mxu0 %v732
    %772 = vmatpush.msra.mxu0 %v731
    %773 = vmatpush.msra.mxu0 %v730
    %774 = vmatpush.msra.mxu0 %v729
    %775 = vmatpush.msra.mxu0 %v728
    %776 = vmatpush.msra.mxu0 %v727
    %777 = vmatpush.msra.mxu0 %v726
    %778 = vmatmul.f32.gmra.mxu0 %v604
    %v779 = vpop.f32.mrf.mxu0
    %v780 = vadd.f32 %v760, %v779
    %781 = vdwg.mxu0
    %782 = vmatpush.msra.mxu0 %v757
    %783 = vmatpush.msra.mxu0 %v756
    %784 = vmatpush.msra.mxu0 %v755
    %785 = vmatpush.msra.mxu0 %v754
    %786 = vmatpush.msra.mxu0 %v753
    %787 = vmatpush.msra.mxu0 %v752
    %788 = vmatpush.msra.mxu0 %v751
    %789 = vmatpush.msra.mxu0 %v750
    %790 = vmatpush.msra.mxu0 %v749
    %791 = vmatpush.msra.mxu0 %v748
    %792 = vmatpush.msra.mxu0 %v747
    %793 = vmatpush.msra.mxu0 %v746
    %794 = vmatpush.msra.mxu0 %v745
    %795 = vmatpush.msra.mxu0 %v744
    %796 = vmatpush.msra.mxu0 %v743
    %797 = vmatpush.msra.mxu0 %v742
    %798 = vmatmul.f32.gmra.mxu0 %v724
    %v799 = vpop.f32.mrf.mxu0
    %v800 = vadd.f32 %v780, %v799
    %801 = vdwg.mxu0
    %v802 = vmax.f32 %v800, 0.0
    %v803 = vld [vmem:[#allocation11] sm:$0xff]
    %v804 = vld [vmem:[#allocation11 + $0x8] sm:$0xff]
    %v805 = vld [vmem:[#allocation11 + $0x10] sm:$0xff]
    %v806 = vld [vmem:[#allocation11 + $0x18] sm:$0xff]
    %v807 = vld [vmem:[#allocation11 + $0x20] sm:$0xff]
    %v808 = vld [vmem:[#allocation11 + $0x28] sm:$0xff]
    %v809 = vld [vmem:[#allocation11 + $0x30] sm:$0xff]
    %v810 = vld [vmem:[#allocation11 + $0x38] sm:$0xff]
    %v811 = vld [vmem:[#allocation11 + $0x40] sm:$0xff]
    %v812 = vld [vmem:[#allocation11 + $0x48] sm:$0xff]
    %v813 = vld [vmem:[#allocation11 + $0x50] sm:$0xff]
    %v814 = vld [vmem:[#allocation11 + $0x58] sm:$0xff]
    %v815 = vld [vmem:[#allocation11 + $0x60] sm:$0xff]
    %v816 = vld [vmem:[#allocation11 + $0x68] sm:$0xff]
    %v817 = vld [vmem:[#allocation11 + $0x70] sm:$0xff]
    %v818 = vld [vmem:[#allocation11 + $0x78] sm:$0xff]
    %v819 = vld [vmem:[#allocation13] sm:$0x1]
    %v821 = vperm.slane %v819, 0
    %823 = vmatpush.msra.mxu0 %v818
    %824 = vmatpush.msra.mxu0 %v817
    %825 = vmatpush.msra.mxu0 %v816
    %826 = vmatpush.msra.mxu0 %v815
    %827 = vmatpush.msra.mxu0 %v814
    %828 = vmatpush.msra.mxu0 %v813
    %829 = vmatpush.msra.mxu0 %v812
    %830 = vmatpush.msra.mxu0 %v811
    %831 = vmatpush.msra.mxu0 %v810
    %832 = vmatpush.msra.mxu0 %v809
    %833 = vmatpush.msra.mxu0 %v808
    %834 = vmatpush.msra.mxu0 %v807
    %835 = vmatpush.msra.mxu0 %v806
    %836 = vmatpush.msra.mxu0 %v805
    %837 = vmatpush.msra.mxu0 %v804
    %838 = vmatpush.msra.mxu0 %v803
    %839 = vmatmul.f32.gmra.mxu0 %v802
    %v840 = vpop.f32.mrf.mxu0
    %v841 = vadd.f32 %v821, %v840
    %842 = vdwg.mxu0
    %v843 = vmax.f32 %v841, 0.0
    %v844 = vld [vmem:[#allocation14] sm:$0xff]
    %v845 = vld [vmem:[#allocation14 + $0x8] sm:$0xff]
    %v846 = vld [vmem:[#allocation14 + $0x10] sm:$0xff]
    %v847 = vld [vmem:[#allocation14 + $0x18] sm:$0xff]
    %v848 = vld [vmem:[#allocation14 + $0x20] sm:$0xff]
    %v849 = vld [vmem:[#allocation14 + $0x28] sm:$0xff]
    %v850 = vld [vmem:[#allocation14 + $0x30] sm:$0xff]
    %v851 = vld [vmem:[#allocation14 + $0x38] sm:$0xff]
    %v852 = vld [vmem:[#allocation14 + $0x40] sm:$0xff]
    %v853 = vld [vmem:[#allocation14 + $0x48] sm:$0xff]
    %v854 = vld [vmem:[#allocation14 + $0x50] sm:$0xff]
    %v855 = vld [vmem:[#allocation14 + $0x58] sm:$0xff]
    %v856 = vld [vmem:[#allocation14 + $0x60] sm:$0xff]
    %v857 = vld [vmem:[#allocation14 + $0x68] sm:$0xff]
    %v858 = vld [vmem:[#allocation14 + $0x70] sm:$0xff]
    %v859 = vld [vmem:[#allocation14 + $0x78] sm:$0xff]
    %v860 = vld [vmem:[#allocation16] sm:$0x1]
    %v862 = vperm.slane %v860, 0
    %864 = vmatpush.msra.mxu0 %v859
    %865 = vmatpush.msra.mxu0 %v858
    %866 = vmatpush.msra.mxu0 %v857
    %867 = vmatpush.msra.mxu0 %v856
    %868 = vmatpush.msra.mxu0 %v855
    %869 = vmatpush.msra.mxu0 %v854
    %870 = vmatpush.msra.mxu0 %v853
    %871 = vmatpush.msra.mxu0 %v852
    %872 = vmatpush.msra.mxu0 %v851
    %873 = vmatpush.msra.mxu0 %v850
    %874 = vmatpush.msra.mxu0 %v849
    %875 = vmatpush.msra.mxu0 %v848
    %876 = vmatpush.msra.mxu0 %v847
    %877 = vmatpush.msra.mxu0 %v846
    %878 = vmatpush.msra.mxu0 %v845
    %879 = vmatpush.msra.mxu0 %v844
    %880 = vmatmul.f32.gmra.mxu0 %v843
    %v881 = vpop.f32.mrf.mxu0
    %v882 = vadd.f32 %v862, %v881
    %883 = vdwg.mxu0
    %v884 = vmax.f32 %v882, 0.0
    %v885 = vld [vmem:[#allocation17] sm:$0xff]
    %v886 = vld [vmem:[#allocation17 + $0x8] sm:$0xff]
    %v887 = vld [vmem:[#allocation17 + $0x10] sm:$0xff]
    %v888 = vld [vmem:[#allocation17 + $0x18] sm:$0xff]
    %v889 = vld [vmem:[#allocation17 + $0x20] sm:$0xff]
    %v890 = vld [vmem:[#allocation17 + $0x28] sm:$0xff]
    %v891 = vld [vmem:[#allocation17 + $0x30] sm:$0xff]
    %v892 = vld [vmem:[#allocation17 + $0x38] sm:$0xff]
    %v893 = vld [vmem:[#allocation17 + $0x40] sm:$0xff]
    %v894 = vld [vmem:[#allocation17 + $0x48] sm:$0xff]
    %v895 = vld [vmem:[#allocation17 + $0x50] sm:$0xff]
    %v896 = vld [vmem:[#allocation17 + $0x58] sm:$0xff]
    %v897 = vld [vmem:[#allocation17 + $0x60] sm:$0xff]
    %v898 = vld [vmem:[#allocation17 + $0x68] sm:$0xff]
    %v899 = vld [vmem:[#allocation17 + $0x70] sm:$0xff]
    %v900 = vld [vmem:[#allocation17 + $0x78] sm:$0xff]
    %v901 = vld [vmem:[#allocation17 + $0x80] sm:$0xff]
    %v902 = vld [vmem:[#allocation17 + $0x88] sm:$0xff]
    %v903 = vld [vmem:[#allocation17 + $0x90] sm:$0xff]
    %v904 = vld [vmem:[#allocation17 + $0x98] sm:$0xff]
    %v905 = vld [vmem:[#allocation17 + $0xa0] sm:$0xff]
    %v906 = vld [vmem:[#allocation17 + $0xa8] sm:$0xff]
    %v907 = vld [vmem:[#allocation17 + $0xb0] sm:$0xff]
    %v908 = vld [vmem:[#allocation17 + $0xb8] sm:$0xff]
    %v909 = vld [vmem:[#allocation17 + $0xc0] sm:$0xff]
    %v910 = vld [vmem:[#allocation17 + $0xc8] sm:$0xff]
    %v911 = vld [vmem:[#allocation17 + $0xd0] sm:$0xff]
    %v912 = vld [vmem:[#allocation17 + $0xd8] sm:$0xff]
    %v913 = vld [vmem:[#allocation17 + $0xe0] sm:$0xff]
    %v914 = vld [vmem:[#allocation17 + $0xe8] sm:$0xff]
    %v915 = vld [vmem:[#allocation17 + $0xf0] sm:$0xff]
    %v916 = vld [vmem:[#allocation17 + $0xf8] sm:$0xff]
    %v917 = vld [vmem:[#allocation17 + $0x100] sm:$0xff]
    %v918 = vld [vmem:[#allocation17 + $0x108] sm:$0xff]
    %v919 = vld [vmem:[#allocation17 + $0x110] sm:$0xff]
    %v920 = vld [vmem:[#allocation17 + $0x118] sm:$0xff]
    %v921 = vld [vmem:[#allocation17 + $0x120] sm:$0xff]
    %v922 = vld [vmem:[#allocation17 + $0x128] sm:$0xff]
    %v923 = vld [vmem:[#allocation17 + $0x130] sm:$0xff]
    %v924 = vld [vmem:[#allocation17 + $0x138] sm:$0xff]
    %v925 = vld [vmem:[#allocation17 + $0x140] sm:$0xff]
    %v926 = vld [vmem:[#allocation17 + $0x148] sm:$0xff]
    %v927 = vld [vmem:[#allocation17 + $0x150] sm:$0xff]
    %v928 = vld [vmem:[#allocation17 + $0x158] sm:$0xff]
    %v929 = vld [vmem:[#allocation17 + $0x160] sm:$0xff]
    %v930 = vld [vmem:[#allocation17 + $0x168] sm:$0xff]
    %v931 = vld [vmem:[#allocation17 + $0x170] sm:$0xff]
    %v932 = vld [vmem:[#allocation17 + $0x178] sm:$0xff]
    %v933 = vld [vmem:[#allocation17 + $0x180] sm:$0xff]
    %v934 = vld [vmem:[#allocation17 + $0x188] sm:$0xff]
    %v935 = vld [vmem:[#allocation17 + $0x190] sm:$0xff]
    %v936 = vld [vmem:[#allocation17 + $0x198] sm:$0xff]
    %v937 = vld [vmem:[#allocation17 + $0x1a0] sm:$0xff]
    %v938 = vld [vmem:[#allocation17 + $0x1a8] sm:$0xff]
    %v939 = vld [vmem:[#allocation17 + $0x1b0] sm:$0xff]
    %v940 = vld [vmem:[#allocation17 + $0x1b8] sm:$0xff]
    %v941 = vld [vmem:[#allocation17 + $0x1c0] sm:$0xff]
    %v942 = vld [vmem:[#allocation17 + $0x1c8] sm:$0xff]
    %v943 = vld [vmem:[#allocation17 + $0x1d0] sm:$0xff]
    %v944 = vld [vmem:[#allocation17 + $0x1d8] sm:$0xff]
    %v945 = vld [vmem:[#allocation17 + $0x1e0] sm:$0xff]
    %v946 = vld [vmem:[#allocation17 + $0x1e8] sm:$0xff]
    %v947 = vld [vmem:[#allocation17 + $0x1f0] sm:$0xff]
    %v948 = vld [vmem:[#allocation17 + $0x1f8] sm:$0xff]
    %v949 = vld [vmem:[%s11] sm:$0xf]
    %v951 = vperm.slane %v949, 0
    %v952 = vperm.slane %v949, 1
    %v953 = vperm.slane %v949, 2
    %v954 = vperm.slane %v949, 3
    %959 = vmatpush.msra.mxu0 %v945
    %960 = vmatpush.msra.mxu0 %v941
    %961 = vmatpush.msra.mxu0 %v937
    %962 = vmatpush.msra.mxu0 %v933
    %963 = vmatpush.msra.mxu0 %v929
    %964 = vmatpush.msra.mxu0 %v925
    %965 = vmatpush.msra.mxu0 %v921
    %966 = vmatpush.msra.mxu0 %v917
    %967 = vmatpush.msra.mxu0 %v913
    %968 = vmatpush.msra.mxu0 %v909
    %969 = vmatpush.msra.mxu0 %v905
    %970 = vmatpush.msra.mxu0 %v901
    %971 = vmatpush.msra.mxu0 %v897
    %972 = vmatpush.msra.mxu0 %v893
    %973 = vmatpush.msra.mxu0 %v889
    %974 = vmatpush.msra.mxu0 %v885
    %975 = vmatmul.f32.gmra.mxu0 %v884
    %v976 = vpop.f32.mrf.mxu0
    %v977 = vadd.f32 %v951, %v976
    %978 = vdwg.mxu0
    %979 = vmatpush.msra.mxu0 %v946
    %980 = vmatpush.msra.mxu0 %v942
    %981 = vmatpush.msra.mxu0 %v938
    %982 = vmatpush.msra.mxu0 %v934
    %983 = vmatpush.msra.mxu0 %v930
    %984 = vmatpush.msra.mxu0 %v926
    %985 = vmatpush.msra.mxu0 %v922
    %986 = vmatpush.msra.mxu0 %v918
    %987 = vmatpush.msra.mxu0 %v914
    %988 = vmatpush.msra.mxu0 %v910
    %989 = vmatpush.msra.mxu0 %v906
    %990 = vmatpush.msra.mxu0 %v902
    %991 = vmatpush.msra.mxu0 %v898
    %992 = vmatpush.msra.mxu0 %v894
    %993 = vmatpush.msra.mxu0 %v890
    %994 = vmatpush.msra.mxu0 %v886
    %995 = vmatmul.f32.gmra.mxu0 %v884
    %v996 = vpop.f32.mrf.mxu0
    %v997 = vadd.f32 %v952, %v996
    %998 = vdwg.mxu0
    %999 = vmatpush.msra.mxu0 %v947
    %1000 = vmatpush.msra.mxu0 %v943
    %1001 = vmatpush.msra.mxu0 %v939
    %1002 = vmatpush.msra.mxu0 %v935
    %1003 = vmatpush.msra.mxu0 %v931
    %1004 = vmatpush.msra.mxu0 %v927
    %1005 = vmatpush.msra.mxu0 %v923
    %1006 = vmatpush.msra.mxu0 %v919
    %1007 = vmatpush.msra.mxu0 %v915
    %1008 = vmatpush.msra.mxu0 %v911
    %1009 = vmatpush.msra.mxu0 %v907
    %1010 = vmatpush.msra.mxu0 %v903
    %1011 = vmatpush.msra.mxu0 %v899
    %1012 = vmatpush.msra.mxu0 %v895
    %1013 = vmatpush.msra.mxu0 %v891
    %1014 = vmatpush.msra.mxu0 %v887
    %1015 = vmatmul.f32.gmra.mxu0 %v884
    %v1016 = vpop.f32.mrf.mxu0
    %v1017 = vadd.f32 %v953, %v1016
    %1018 = vdwg.mxu0
    %1019 = vmatpush.msra.mxu0 %v948
    %1020 = vmatpush.msra.mxu0 %v944
    %1021 = vmatpush.msra.mxu0 %v940
    %1022 = vmatpush.msra.mxu0 %v936
    %1023 = vmatpush.msra.mxu0 %v932
    %1024 = vmatpush.msra.mxu0 %v928
    %1025 = vmatpush.msra.mxu0 %v924
    %1026 = vmatpush.msra.mxu0 %v920
    %1027 = vmatpush.msra.mxu0 %v916
    %1028 = vmatpush.msra.mxu0 %v912
    %1029 = vmatpush.msra.mxu0 %v908
    %1030 = vmatpush.msra.mxu0 %v904
    %1031 = vmatpush.msra.mxu0 %v900
    %1032 = vmatpush.msra.mxu0 %v896
    %1033 = vmatpush.msra.mxu0 %v892
    %1034 = vmatpush.msra.mxu0 %v888
    %1035 = vmatmul.f32.gmra.mxu0 %v884
    %v1036 = vpop.f32.mrf.mxu0
    %v1037 = vadd.f32 %v954, %v1036
    %1038 = vdwg.mxu0
    %v1039 = vld [vmem:[#allocation19] sm:$0xff]
    %v1040 = vld [vmem:[#allocation19 + $0x8] sm:$0xff]
    %v1041 = vld [vmem:[#allocation19 + $0x10] sm:$0xff]
    %v1042 = vld [vmem:[#allocation19 + $0x18] sm:$0xff]
    %v1043 = vld [vmem:[#allocation19 + $0x20] sm:$0xff]
    %v1044 = vld [vmem:[#allocation19 + $0x28] sm:$0xff]
    %v1045 = vld [vmem:[#allocation19 + $0x30] sm:$0xff]
    %v1046 = vld [vmem:[#allocation19 + $0x38] sm:$0xff]
    %v1047 = vld [vmem:[#allocation19 + $0x40] sm:$0xff]
    %v1048 = vld [vmem:[#allocation19 + $0x48] sm:$0xff]
    %v1049 = vld [vmem:[#allocation19 + $0x50] sm:$0xff]
    %v1050 = vld [vmem:[#allocation19 + $0x58] sm:$0xff]
    %v1051 = vld [vmem:[#allocation19 + $0x60] sm:$0xff]
    %v1052 = vld [vmem:[#allocation19 + $0x68] sm:$0xff]
    %v1053 = vld [vmem:[#allocation19 + $0x70] sm:$0xff]
    %v1054 = vld [vmem:[#allocation19 + $0x78] sm:$0xff]
    %v1055 = vld [vmem:[#allocation19 + $0x80] sm:$0xff]
    %v1056 = vld [vmem:[#allocation19 + $0x88] sm:$0xff]
    %v1057 = vld [vmem:[#allocation19 + $0x90] sm:$0xff]
    %v1058 = vld [vmem:[#allocation19 + $0x98] sm:$0xff]
    %v1059 = vld [vmem:[#allocation19 + $0xa0] sm:$0xff]
    %v1060 = vld [vmem:[#allocation19 + $0xa8] sm:$0xff]
    %v1061 = vld [vmem:[#allocation19 + $0xb0] sm:$0xff]
    %v1062 = vld [vmem:[#allocation19 + $0xb8] sm:$0xff]
    %v1063 = vld [vmem:[#allocation19 + $0xc0] sm:$0xff]
    %v1064 = vld [vmem:[#allocation19 + $0xc8] sm:$0xff]
    %v1065 = vld [vmem:[#allocation19 + $0xd0] sm:$0xff]
    %v1066 = vld [vmem:[#allocation19 + $0xd8] sm:$0xff]
    %v1067 = vld [vmem:[#allocation19 + $0xe0] sm:$0xff]
    %v1068 = vld [vmem:[#allocation19 + $0xe8] sm:$0xff]
    %v1069 = vld [vmem:[#allocation19 + $0xf0] sm:$0xff]
    %v1070 = vld [vmem:[#allocation19 + $0xf8] sm:$0xff]
    %v1071 = vld [vmem:[#allocation19 + $0x100] sm:$0xff]
    %v1072 = vld [vmem:[#allocation19 + $0x108] sm:$0xff]
    %v1073 = vld [vmem:[#allocation19 + $0x110] sm:$0xff]
    %v1074 = vld [vmem:[#allocation19 + $0x118] sm:$0xff]
    %v1075 = vld [vmem:[#allocation19 + $0x120] sm:$0xff]
    %v1076 = vld [vmem:[#allocation19 + $0x128] sm:$0xff]
    %v1077 = vld [vmem:[#allocation19 + $0x130] sm:$0xff]
    %v1078 = vld [vmem:[#allocation19 + $0x138] sm:$0xff]
    %v1079 = vld [vmem:[#allocation19 + $0x140] sm:$0xff]
    %v1080 = vld [vmem:[#allocation19 + $0x148] sm:$0xff]
    %v1081 = vld [vmem:[#allocation19 + $0x150] sm:$0xff]
    %v1082 = vld [vmem:[#allocation19 + $0x158] sm:$0xff]
    %v1083 = vld [vmem:[#allocation19 + $0x160] sm:$0xff]
    %v1084 = vld [vmem:[#allocation19 + $0x168] sm:$0xff]
    %v1085 = vld [vmem:[#allocation19 + $0x170] sm:$0xff]
    %v1086 = vld [vmem:[#allocation19 + $0x178] sm:$0xff]
    %v1087 = vld [vmem:[#allocation19 + $0x180] sm:$0xff]
    %v1088 = vld [vmem:[#allocation19 + $0x188] sm:$0xff]
    %v1089 = vld [vmem:[#allocation19 + $0x190] sm:$0xff]
    %v1090 = vld [vmem:[#allocation19 + $0x198] sm:$0xff]
    %v1091 = vld [vmem:[#allocation19 + $0x1a0] sm:$0xff]
    %v1092 = vld [vmem:[#allocation19 + $0x1a8] sm:$0xff]
    %v1093 = vld [vmem:[#allocation19 + $0x1b0] sm:$0xff]
    %v1094 = vld [vmem:[#allocation19 + $0x1b8] sm:$0xff]
    %v1095 = vld [vmem:[#allocation19 + $0x1c0] sm:$0xff]
    %v1096 = vld [vmem:[#allocation19 + $0x1c8] sm:$0xff]
    %v1097 = vld [vmem:[#allocation19 + $0x1d0] sm:$0xff]
    %v1098 = vld [vmem:[#allocation19 + $0x1d8] sm:$0xff]
    %v1099 = vld [vmem:[#allocation19 + $0x1e0] sm:$0xff]
    %v1100 = vld [vmem:[#allocation19 + $0x1e8] sm:$0xff]
    %v1101 = vld [vmem:[#allocation19 + $0x1f0] sm:$0xff]
    %v1102 = vld [vmem:[#allocation19 + $0x1f8] sm:$0xff]
    %v1103 = vld [vmem:[#allocation20] sm:$0xff]
    %v1104 = vld [vmem:[#allocation20 + $0x8] sm:$0xff]
    %v1105 = vld [vmem:[#allocation20 + $0x10] sm:$0xff]
    %v1106 = vld [vmem:[#allocation20 + $0x18] sm:$0xff]
    %v1107 = vld [vmem:[#allocation20 + $0x20] sm:$0xff]
    %v1108 = vld [vmem:[#allocation20 + $0x28] sm:$0xff]
    %v1109 = vld [vmem:[#allocation20 + $0x30] sm:$0xff]
    %v1110 = vld [vmem:[#allocation20 + $0x38] sm:$0xff]
    %v1111 = vld [vmem:[#allocation20 + $0x40] sm:$0xff]
    %v1112 = vld [vmem:[#allocation20 + $0x48] sm:$0xff]
    %v1113 = vld [vmem:[#allocation20 + $0x50] sm:$0xff]
    %v1114 = vld [vmem:[#allocation20 + $0x58] sm:$0xff]
    %v1115 = vld [vmem:[#allocation20 + $0x60] sm:$0xff]
    %v1116 = vld [vmem:[#allocation20 + $0x68] sm:$0xff]
    %v1117 = vld [vmem:[#allocation20 + $0x70] sm:$0xff]
    %v1118 = vld [vmem:[#allocation20 + $0x78] sm:$0xff]
    %v1119 = vld [vmem:[#allocation20 + $0x80] sm:$0xff]
    %v1120 = vld [vmem:[#allocation20 + $0x88] sm:$0xff]
    %v1121 = vld [vmem:[#allocation20 + $0x90] sm:$0xff]
    %v1122 = vld [vmem:[#allocation20 + $0x98] sm:$0xff]
    %v1123 = vld [vmem:[#allocation20 + $0xa0] sm:$0xff]
    %v1124 = vld [vmem:[#allocation20 + $0xa8] sm:$0xff]
    %v1125 = vld [vmem:[#allocation20 + $0xb0] sm:$0xff]
    %v1126 = vld [vmem:[#allocation20 + $0xb8] sm:$0xff]
    %v1127 = vld [vmem:[#allocation20 + $0xc0] sm:$0xff]
    %v1128 = vld [vmem:[#allocation20 + $0xc8] sm:$0xff]
    %v1129 = vld [vmem:[#allocation20 + $0xd0] sm:$0xff]
    %v1130 = vld [vmem:[#allocation20 + $0xd8] sm:$0xff]
    %v1131 = vld [vmem:[#allocation20 + $0xe0] sm:$0xff]
    %v1132 = vld [vmem:[#allocation20 + $0xe8] sm:$0xff]
    %v1133 = vld [vmem:[#allocation20 + $0xf0] sm:$0xff]
    %v1134 = vld [vmem:[#allocation20 + $0xf8] sm:$0xff]
    %v1135 = vld [vmem:[#allocation20 + $0x100] sm:$0xff]
    %v1136 = vld [vmem:[#allocation20 + $0x108] sm:$0xff]
    %v1137 = vld [vmem:[#allocation20 + $0x110] sm:$0xff]
    %v1138 = vld [vmem:[#allocation20 + $0x118] sm:$0xff]
    %v1139 = vld [vmem:[#allocation20 + $0x120] sm:$0xff]
    %v1140 = vld [vmem:[#allocation20 + $0x128] sm:$0xff]
    %v1141 = vld [vmem:[#allocation20 + $0x130] sm:$0xff]
    %v1142 = vld [vmem:[#allocation20 + $0x138] sm:$0xff]
    %v1143 = vld [vmem:[#allocation20 + $0x140] sm:$0xff]
    %v1144 = vld [vmem:[#allocation20 + $0x148] sm:$0xff]
    %v1145 = vld [vmem:[#allocation20 + $0x150] sm:$0xff]
    %v1146 = vld [vmem:[#allocation20 + $0x158] sm:$0xff]
    %v1147 = vld [vmem:[#allocation20 + $0x160] sm:$0xff]
    %v1148 = vld [vmem:[#allocation20 + $0x168] sm:$0xff]
    %v1149 = vld [vmem:[#allocation20 + $0x170] sm:$0xff]
    %v1150 = vld [vmem:[#allocation20 + $0x178] sm:$0xff]
    %v1151 = vld [vmem:[#allocation20 + $0x180] sm:$0xff]
    %v1152 = vld [vmem:[#allocation20 + $0x188] sm:$0xff]
    %v1153 = vld [vmem:[#allocation20 + $0x190] sm:$0xff]
    %v1154 = vld [vmem:[#allocation20 + $0x198] sm:$0xff]
    %v1155 = vld [vmem:[#allocation20 + $0x1a0] sm:$0xff]
    %v1156 = vld [vmem:[#allocation20 + $0x1a8] sm:$0xff]
    %v1157 = vld [vmem:[#allocation20 + $0x1b0] sm:$0xff]
    %v1158 = vld [vmem:[#allocation20 + $0x1b8] sm:$0xff]
    %v1159 = vld [vmem:[#allocation20 + $0x1c0] sm:$0xff]
    %v1160 = vld [vmem:[#allocation20 + $0x1c8] sm:$0xff]
    %v1161 = vld [vmem:[#allocation20 + $0x1d0] sm:$0xff]
    %v1162 = vld [vmem:[#allocation20 + $0x1d8] sm:$0xff]
    %v1163 = vld [vmem:[#allocation20 + $0x1e0] sm:$0xff]
    %v1164 = vld [vmem:[#allocation20 + $0x1e8] sm:$0xff]
    %v1165 = vld [vmem:[#allocation20 + $0x1f0] sm:$0xff]
    %v1166 = vld [vmem:[#allocation20 + $0x1f8] sm:$0xff]
    %v1167 = vld [vmem:[#allocation22] sm:$0xff]
    %v1168 = vld [vmem:[#allocation22 + $0x8] sm:$0xff]
    %v1169 = vld [vmem:[#allocation22 + $0x10] sm:$0xff]
    %v1170 = vld [vmem:[#allocation22 + $0x18] sm:$0xff]
    %v1171 = vld [vmem:[#allocation22 + $0x20] sm:$0xff]
    %v1172 = vld [vmem:[#allocation22 + $0x28] sm:$0xff]
    %v1173 = vld [vmem:[#allocation22 + $0x30] sm:$0xff]
    %v1174 = vld [vmem:[#allocation22 + $0x38] sm:$0xff]
    %v1175 = vld [vmem:[#allocation22 + $0x40] sm:$0xff]
    %v1176 = vld [vmem:[#allocation22 + $0x48] sm:$0xff]
    %v1177 = vld [vmem:[#allocation22 + $0x50] sm:$0xff]
    %v1178 = vld [vmem:[#allocation22 + $0x58] sm:$0xff]
    %v1179 = vld [vmem:[#allocation22 + $0x60] sm:$0xff]
    %v1180 = vld [vmem:[#allocation22 + $0x68] sm:$0xff]
    %v1181 = vld [vmem:[#allocation22 + $0x70] sm:$0xff]
    %v1182 = vld [vmem:[#allocation22 + $0x78] sm:$0xff]
    %v1183 = vld [vmem:[#allocation22 + $0x80] sm:$0xff]
    %v1184 = vld [vmem:[#allocation22 + $0x88] sm:$0xff]
    %v1185 = vld [vmem:[#allocation22 + $0x90] sm:$0xff]
    %v1186 = vld [vmem:[#allocation22 + $0x98] sm:$0xff]
    %v1187 = vld [vmem:[#allocation22 + $0xa0] sm:$0xff]
    %v1188 = vld [vmem:[#allocation22 + $0xa8] sm:$0xff]
    %v1189 = vld [vmem:[#allocation22 + $0xb0] sm:$0xff]
    %v1190 = vld [vmem:[#allocation22 + $0xb8] sm:$0xff]
    %v1191 = vld [vmem:[#allocation22 + $0xc0] sm:$0xff]
    %v1192 = vld [vmem:[#allocation22 + $0xc8] sm:$0xff]
    %v1193 = vld [vmem:[#allocation22 + $0xd0] sm:$0xff]
    %v1194 = vld [vmem:[#allocation22 + $0xd8] sm:$0xff]
    %v1195 = vld [vmem:[#allocation22 + $0xe0] sm:$0xff]
    %v1196 = vld [vmem:[#allocation22 + $0xe8] sm:$0xff]
    %v1197 = vld [vmem:[#allocation22 + $0xf0] sm:$0xff]
    %v1198 = vld [vmem:[#allocation22 + $0xf8] sm:$0xff]
    %v1199 = vld [vmem:[#allocation22 + $0x100] sm:$0xff]
    %v1200 = vld [vmem:[#allocation22 + $0x108] sm:$0xff]
    %v1201 = vld [vmem:[#allocation22 + $0x110] sm:$0xff]
    %v1202 = vld [vmem:[#allocation22 + $0x118] sm:$0xff]
    %v1203 = vld [vmem:[#allocation22 + $0x120] sm:$0xff]
    %v1204 = vld [vmem:[#allocation22 + $0x128] sm:$0xff]
    %v1205 = vld [vmem:[#allocation22 + $0x130] sm:$0xff]
    %v1206 = vld [vmem:[#allocation22 + $0x138] sm:$0xff]
    %v1207 = vld [vmem:[#allocation22 + $0x140] sm:$0xff]
    %v1208 = vld [vmem:[#allocation22 + $0x148] sm:$0xff]
    %v1209 = vld [vmem:[#allocation22 + $0x150] sm:$0xff]
    %v1210 = vld [vmem:[#allocation22 + $0x158] sm:$0xff]
    %v1211 = vld [vmem:[#allocation22 + $0x160] sm:$0xff]
    %v1212 = vld [vmem:[#allocation22 + $0x168] sm:$0xff]
    %v1213 = vld [vmem:[#allocation22 + $0x170] sm:$0xff]
    %v1214 = vld [vmem:[#allocation22 + $0x178] sm:$0xff]
    %v1215 = vld [vmem:[#allocation22 + $0x180] sm:$0xff]
    %v1216 = vld [vmem:[#allocation22 + $0x188] sm:$0xff]
    %v1217 = vld [vmem:[#allocation22 + $0x190] sm:$0xff]
    %v1218 = vld [vmem:[#allocation22 + $0x198] sm:$0xff]
    %v1219 = vld [vmem:[#allocation22 + $0x1a0] sm:$0xff]
    %v1220 = vld [vmem:[#allocation22 + $0x1a8] sm:$0xff]
    %v1221 = vld [vmem:[#allocation22 + $0x1b0] sm:$0xff]
    %v1222 = vld [vmem:[#allocation22 + $0x1b8] sm:$0xff]
    %v1223 = vld [vmem:[#allocation22 + $0x1c0] sm:$0xff]
    %v1224 = vld [vmem:[#allocation22 + $0x1c8] sm:$0xff]
    %v1225 = vld [vmem:[#allocation22 + $0x1d0] sm:$0xff]
    %v1226 = vld [vmem:[#allocation22 + $0x1d8] sm:$0xff]
    %v1227 = vld [vmem:[#allocation22 + $0x1e0] sm:$0xff]
    %v1228 = vld [vmem:[#allocation22 + $0x1e8] sm:$0xff]
    %v1229 = vld [vmem:[#allocation22 + $0x1f0] sm:$0xff]
    %v1230 = vld [vmem:[#allocation22 + $0x1f8] sm:$0xff]
    %v1231 = vld [vmem:[%s14] sm:$0xf]
    %1232 = vmatpush.msra.mxu0 %v1099
    %1233 = vmatpush.msra.mxu0 %v1095
    %1234 = vmatpush.msra.mxu0 %v1091
    %1235 = vmatpush.msra.mxu0 %v1087
    %1236 = vmatpush.msra.mxu0 %v1083
    %1237 = vmatpush.msra.mxu0 %v1079
    %1238 = vmatpush.msra.mxu0 %v1075
    %1239 = vmatpush.msra.mxu0 %v1071
    %1240 = vmatpush.msra.mxu0 %v1067
    %1241 = vmatpush.msra.mxu0 %v1063
    %1242 = vmatpush.msra.mxu0 %v1059
    %1243 = vmatpush.msra.mxu0 %v1055
    %1244 = vmatpush.msra.mxu0 %v1051
    %1245 = vmatpush.msra.mxu0 %v1047
    %1246 = vmatpush.msra.mxu0 %v1043
    %1247 = vmatpush.msra.mxu0 %v1039
    %1248 = vmatmul.f32.gmra.mxu0 0.0
    %v1249 = vpop.f32.mrf.mxu0
    %v1250 = vadd.f32 0.0, %v1249
    %1251 = vdwg.mxu0
    %1252 = vmatpush.msra.mxu0 %v1100
    %1253 = vmatpush.msra.mxu0 %v1096
    %1254 = vmatpush.msra.mxu0 %v1092
    %1255 = vmatpush.msra.mxu0 %v1088
    %1256 = vmatpush.msra.mxu0 %v1084
    %1257 = vmatpush.msra.mxu0 %v1080
    %1258 = vmatpush.msra.mxu0 %v1076
    %1259 = vmatpush.msra.mxu0 %v1072
    %1260 = vmatpush.msra.mxu0 %v1068
    %1261 = vmatpush.msra.mxu0 %v1064
    %1262 = vmatpush.msra.mxu0 %v1060
    %1263 = vmatpush.msra.mxu0 %v1056
    %1264 = vmatpush.msra.mxu0 %v1052
    %1265 = vmatpush.msra.mxu0 %v1048
    %1266 = vmatpush.msra.mxu0 %v1044
    %1267 = vmatpush.msra.mxu0 %v1040
    %1268 = vmatmul.f32.gmra.mxu0 0.0
    %v1269 = vpop.f32.mrf.mxu0
    %v1270 = vadd.f32 0.0, %v1269
    %1271 = vdwg.mxu0
    %1272 = vmatpush.msra.mxu0 %v1101
    %1273 = vmatpush.msra.mxu0 %v1097
    %1274 = vmatpush.msra.mxu0 %v1093
    %1275 = vmatpush.msra.mxu0 %v1089
    %1276 = vmatpush.msra.mxu0 %v1085
    %1277 = vmatpush.msra.mxu0 %v1081
    %1278 = vmatpush.msra.mxu0 %v1077
    %1279 = vmatpush.msra.mxu0 %v1073
    %1280 = vmatpush.msra.mxu0 %v1069
    %1281 = vmatpush.msra.mxu0 %v1065
    %1282 = vmatpush.msra.mxu0 %v1061
    %1283 = vmatpush.msra.mxu0 %v1057
    %1284 = vmatpush.msra.mxu0 %v1053
    %1285 = vmatpush.msra.mxu0 %v1049
    %1286 = vmatpush.msra.mxu0 %v1045
    %1287 = vmatpush.msra.mxu0 %v1041
    %1288 = vmatmul.f32.gmra.mxu0 0.0
    %v1289 = vpop.f32.mrf.mxu0
    %v1290 = vadd.f32 0.0, %v1289
    %1291 = vdwg.mxu0
    %1292 = vmatpush.msra.mxu0 %v1102
    %1293 = vmatpush.msra.mxu0 %v1098
    %1294 = vmatpush.msra.mxu0 %v1094
    %1295 = vmatpush.msra.mxu0 %v1090
    %1296 = vmatpush.msra.mxu0 %v1086
    %1297 = vmatpush.msra.mxu0 %v1082
    %1298 = vmatpush.msra.mxu0 %v1078
    %1299 = vmatpush.msra.mxu0 %v1074
    %1300 = vmatpush.msra.mxu0 %v1070
    %1301 = vmatpush.msra.mxu0 %v1066
    %1302 = vmatpush.msra.mxu0 %v1062
    %1303 = vmatpush.msra.mxu0 %v1058
    %1304 = vmatpush.msra.mxu0 %v1054
    %1305 = vmatpush.msra.mxu0 %v1050
    %1306 = vmatpush.msra.mxu0 %v1046
    %1307 = vmatpush.msra.mxu0 %v1042
    %1308 = vmatmul.f32.gmra.mxu0 0.0
    %v1309 = vpop.f32.mrf.mxu0
    %v1310 = vadd.f32 0.0, %v1309
    %1311 = vdwg.mxu0
    %v1312 = vadd.f32 %v977, %v1250
    %v1313 = vadd.f32 %v997, %v1270
    %v1314 = vadd.f32 %v1017, %v1290
    %v1315 = vadd.f32 %v1037, %v1310
    %v1316 = vxor.u32 %v1312, 2147483648
    %v1317 = vmul.f32 %v1316, 1.442695
    %v1318 = vpow.pop %v1317
    %v1319 = vadd.f32 %v1318, 1.0
    %v1320 = vrcp.pop %v1319
    %v1321 = vmul.f32 %v1319, %v1320
    %v1322 = vsub.f32 1.0, %v1321
    %v1323 = vmul.f32 %v1320, %v1322
    %v1324 = vadd.f32 %v1320, %v1323
    %vm1325 = vweird.f32 %v1319
    %vm1326 = vweird.f32 %v1320
    %vm1327 = vmor %vm1325, %vm1326
    %v1328 = vsel %vm1327, %v1320, %v1324
    %v1329 = vand.u32 2147483647, %v1319
    %vm1330 = vcmp.eq.f32.partialorder %v1329, 8.507059e+37
    %v1331 = vand.u32 %v1319, 2147483648
    %v1332 = vor.u32 1.1754944e-38, %v1331
    %v1333 = vsel %vm1330, %v1332, %v1328
    %v1334 = vmul.f32 1.0, %v1333
    %v1335 = vxor.u32 %v1313, 2147483648
    %v1336 = vmul.f32 %v1335, 1.442695
    %v1337 = vpow.pop %v1336
    %v1338 = vadd.f32 %v1337, 1.0
    %v1339 = vrcp.pop %v1338
    %v1340 = vmul.f32 %v1338, %v1339
    %v1341 = vsub.f32 1.0, %v1340
    %v1342 = vmul.f32 %v1339, %v1341
    %v1343 = vadd.f32 %v1339, %v1342
    %vm1344 = vweird.f32 %v1338
    %vm1345 = vweird.f32 %v1339
    %vm1346 = vmor %vm1344, %vm1345
    %v1347 = vsel %vm1346, %v1339, %v1343
    %v1348 = vand.u32 2147483647, %v1338
    %vm1349 = vcmp.eq.f32.partialorder %v1348, 8.507059e+37
    %v1350 = vand.u32 %v1338, 2147483648
    %v1351 = vor.u32 1.1754944e-38, %v1350
    %v1352 = vsel %vm1349, %v1351, %v1347
    %v1353 = vmul.f32 1.0, %v1352
    %v1354 = vtanh.pop %v1314
    %v1355 = vxor.u32 %v1315, 2147483648
    %v1356 = vmul.f32 %v1355, 1.442695
    %v1357 = vpow.pop %v1356
    %v1358 = vadd.f32 %v1357, 1.0
    %v1359 = vrcp.pop %v1358
    %v1360 = vmul.f32 %v1358, %v1359
    %v1361 = vsub.f32 1.0, %v1360
    %v1362 = vmul.f32 %v1359, %v1361
    %v1363 = vadd.f32 %v1359, %v1362
    %vm1364 = vweird.f32 %v1358
    %vm1365 = vweird.f32 %v1359
    %vm1366 = vmor %vm1364, %vm1365
    %v1367 = vsel %vm1366, %v1359, %v1363
    %v1368 = vand.u32 2147483647, %v1358
    %vm1369 = vcmp.eq.f32.partialorder %v1368, 8.507059e+37
    %v1370 = vand.u32 %v1358, 2147483648
    %v1371 = vor.u32 1.1754944e-38, %v1370
    %v1372 = vsel %vm1369, %v1371, %v1367
    %v1373 = vmul.f32 1.0, %v1372
    %v1374 = vmul.f32 %v1353, 0.0
    %v1375 = vmul.f32 %v1334, %v1354
    %v1376 = vadd.f32 %v1374, %v1375
    %v1377 = vtanh.pop %v1376
    %v1378 = vmul.f32 %v1373, %v1377
    %1379 = vmatpush.msra.mxu0 %v1227
    %1380 = vmatpush.msra.mxu0 %v1223
    %1381 = vmatpush.msra.mxu0 %v1219
    %1382 = vmatpush.msra.mxu0 %v1215
    %1383 = vmatpush.msra.mxu0 %v1211
    %1384 = vmatpush.msra.mxu0 %v1207
    %1385 = vmatpush.msra.mxu0 %v1203
    %1386 = vmatpush.msra.mxu0 %v1199
    %1387 = vmatpush.msra.mxu0 %v1195
    %1388 = vmatpush.msra.mxu0 %v1191
    %1389 = vmatpush.msra.mxu0 %v1187
    %1390 = vmatpush.msra.mxu0 %v1183
    %1391 = vmatpush.msra.mxu0 %v1179
    %1392 = vmatpush.msra.mxu0 %v1175
    %1393 = vmatpush.msra.mxu0 %v1171
    %1394 = vmatpush.msra.mxu0 %v1167
    %1395 = vmatmul.f32.gmra.mxu0 0.0
    %v1396 = vpop.f32.mrf.mxu0
    %v1397 = vadd.f32 0.0, %v1396
    %1398 = vdwg.mxu0
    %1399 = vmatpush.msra.mxu0 %v1228
    %1400 = vmatpush.msra.mxu0 %v1224
    %1401 = vmatpush.msra.mxu0 %v1220
    %1402 = vmatpush.msra.mxu0 %v1216
    %1403 = vmatpush.msra.mxu0 %v1212
    %1404 = vmatpush.msra.mxu0 %v1208
    %1405 = vmatpush.msra.mxu0 %v1204
    %1406 = vmatpush.msra.mxu0 %v1200
    %1407 = vmatpush.msra.mxu0 %v1196
    %1408 = vmatpush.msra.mxu0 %v1192
    %1409 = vmatpush.msra.mxu0 %v1188
    %1410 = vmatpush.msra.mxu0 %v1184
    %1411 = vmatpush.msra.mxu0 %v1180
    %1412 = vmatpush.msra.mxu0 %v1176
    %1413 = vmatpush.msra.mxu0 %v1172
    %1414 = vmatpush.msra.mxu0 %v1168
    %1415 = vmatmul.f32.gmra.mxu0 0.0
    %v1416 = vpop.f32.mrf.mxu0
    %v1417 = vadd.f32 0.0, %v1416
    %1418 = vdwg.mxu0
    %1419 = vmatpush.msra.mxu0 %v1229
    %1420 = vmatpush.msra.mxu0 %v1225
    %1421 = vmatpush.msra.mxu0 %v1221
    %1422 = vmatpush.msra.mxu0 %v1217
    %1423 = vmatpush.msra.mxu0 %v1213
    %1424 = vmatpush.msra.mxu0 %v1209
    %1425 = vmatpush.msra.mxu0 %v1205
    %1426 = vmatpush.msra.mxu0 %v1201
    %1427 = vmatpush.msra.mxu0 %v1197
    %1428 = vmatpush.msra.mxu0 %v1193
    %1429 = vmatpush.msra.mxu0 %v1189
    %1430 = vmatpush.msra.mxu0 %v1185
    %1431 = vmatpush.msra.mxu0 %v1181
    %1432 = vmatpush.msra.mxu0 %v1177
    %1433 = vmatpush.msra.mxu0 %v1173
    %1434 = vmatpush.msra.mxu0 %v1169
    %1435 = vmatmul.f32.gmra.mxu0 0.0
    %v1436 = vpop.f32.mrf.mxu0
    %v1437 = vadd.f32 0.0, %v1436
    %1438 = vdwg.mxu0
    %1439 = vmatpush.msra.mxu0 %v1230
    %1440 = vmatpush.msra.mxu0 %v1226
    %1441 = vmatpush.msra.mxu0 %v1222
    %1442 = vmatpush.msra.mxu0 %v1218
    %1443 = vmatpush.msra.mxu0 %v1214
    %1444 = vmatpush.msra.mxu0 %v1210
    %1445 = vmatpush.msra.mxu0 %v1206
    %1446 = vmatpush.msra.mxu0 %v1202
    %1447 = vmatpush.msra.mxu0 %v1198
    %1448 = vmatpush.msra.mxu0 %v1194
    %1449 = vmatpush.msra.mxu0 %v1190
    %1450 = vmatpush.msra.mxu0 %v1186
    %1451 = vmatpush.msra.mxu0 %v1182
    %1452 = vmatpush.msra.mxu0 %v1178
    %1453 = vmatpush.msra.mxu0 %v1174
    %1454 = vmatpush.msra.mxu0 %v1170
    %1455 = vmatmul.f32.gmra.mxu0 0.0
    %v1456 = vpop.f32.mrf.mxu0
    %v1457 = vadd.f32 0.0, %v1456
    %1458 = vdwg.mxu0
    %1459 = vmatpush.msra.mxu0 %v1163
    %1460 = vmatpush.msra.mxu0 %v1159
    %1461 = vmatpush.msra.mxu0 %v1155
    %1462 = vmatpush.msra.mxu0 %v1151
    %1463 = vmatpush.msra.mxu0 %v1147
    %1464 = vmatpush.msra.mxu0 %v1143
    %1465 = vmatpush.msra.mxu0 %v1139
    %1466 = vmatpush.msra.mxu0 %v1135
    %1467 = vmatpush.msra.mxu0 %v1131
    %1468 = vmatpush.msra.mxu0 %v1127
    %1469 = vmatpush.msra.mxu0 %v1123
    %1470 = vmatpush.msra.mxu0 %v1119
    %1471 = vmatpush.msra.mxu0 %v1115
    %1472 = vmatpush.msra.mxu0 %v1111
    %1473 = vmatpush.msra.mxu0 %v1107
    %1474 = vmatpush.msra.mxu0 %v1103
    %1475 = vmatmul.f32.gmra.mxu0 %v1378
    %v1476 = vpop.f32.mrf.mxu0
    %v1477 = vadd.f32 %v1397, %v1476
    %1478 = vdwg.mxu0
    %1479 = vmatpush.msra.mxu0 %v1164
    %1480 = vmatpush.msra.mxu0 %v1160
    %1481 = vmatpush.msra.mxu0 %v1156
    %1482 = vmatpush.msra.mxu0 %v1152
    %1483 = vmatpush.msra.mxu0 %v1148
    %1484 = vmatpush.msra.mxu0 %v1144
    %1485 = vmatpush.msra.mxu0 %v1140
    %1486 = vmatpush.msra.mxu0 %v1136
    %1487 = vmatpush.msra.mxu0 %v1132
    %1488 = vmatpush.msra.mxu0 %v1128
    %1489 = vmatpush.msra.mxu0 %v1124
    %1490 = vmatpush.msra.mxu0 %v1120
    %1491 = vmatpush.msra.mxu0 %v1116
    %1492 = vmatpush.msra.mxu0 %v1112
    %1493 = vmatpush.msra.mxu0 %v1108
    %1494 = vmatpush.msra.mxu0 %v1104
    %1495 = vmatmul.f32.gmra.mxu0 %v1378
    %v1496 = vpop.f32.mrf.mxu0
    %v1497 = vadd.f32 %v1417, %v1496
    %1498 = vdwg.mxu0
    %1499 = vmatpush.msra.mxu0 %v1165
    %1500 = vmatpush.msra.mxu0 %v1161
    %1501 = vmatpush.msra.mxu0 %v1157
    %1502 = vmatpush.msra.mxu0 %v1153
    %1503 = vmatpush.msra.mxu0 %v1149
    %1504 = vmatpush.msra.mxu0 %v1145
    %1505 = vmatpush.msra.mxu0 %v1141
    %1506 = vmatpush.msra.mxu0 %v1137
    %1507 = vmatpush.msra.mxu0 %v1133
    %1508 = vmatpush.msra.mxu0 %v1129
    %1509 = vmatpush.msra.mxu0 %v1125
    %1510 = vmatpush.msra.mxu0 %v1121
    %1511 = vmatpush.msra.mxu0 %v1117
    %1512 = vmatpush.msra.mxu0 %v1113
    %1513 = vmatpush.msra.mxu0 %v1109
    %1514 = vmatpush.msra.mxu0 %v1105
    %1515 = vmatmul.f32.gmra.mxu0 %v1378
    %v1516 = vpop.f32.mrf.mxu0
    %v1517 = vadd.f32 %v1437, %v1516
    %1518 = vdwg.mxu0
    %1519 = vmatpush.msra.mxu0 %v1166
    %1520 = vmatpush.msra.mxu0 %v1162
    %1521 = vmatpush.msra.mxu0 %v1158
    %1522 = vmatpush.msra.mxu0 %v1154
    %1523 = vmatpush.msra.mxu0 %v1150
    %1524 = vmatpush.msra.mxu0 %v1146
    %1525 = vmatpush.msra.mxu0 %v1142
    %1526 = vmatpush.msra.mxu0 %v1138
    %1527 = vmatpush.msra.mxu0 %v1134
    %1528 = vmatpush.msra.mxu0 %v1130
    %1529 = vmatpush.msra.mxu0 %v1126
    %1530 = vmatpush.msra.mxu0 %v1122
    %1531 = vmatpush.msra.mxu0 %v1118
    %1532 = vmatpush.msra.mxu0 %v1114
    %1533 = vmatpush.msra.mxu0 %v1110
    %1534 = vmatpush.msra.mxu0 %v1106
    %1535 = vmatmul.f32.gmra.mxu0 %v1378
    %v1536 = vpop.f32.mrf.mxu0
    %v1537 = vadd.f32 %v1457, %v1536
    %1538 = vdwg.mxu0
    %v1540 = vperm.slane %v1231, 0
    %v1541 = vperm.slane %v1231, 1
    %v1542 = vperm.slane %v1231, 2
    %v1543 = vperm.slane %v1231, 3
    %v1548 = vadd.f32 %v1477, %v1540
    %v1549 = vadd.f32 %v1497, %v1541
    %v1550 = vadd.f32 %v1517, %v1542
    %v1551 = vadd.f32 %v1537, %v1543
    %v1552 = vxor.u32 %v1548, 2147483648
    %v1553 = vmul.f32 %v1552, 1.442695
    %v1554 = vpow.pop %v1553
    %v1555 = vadd.f32 %v1554, 1.0
    %v1556 = vrcp.pop %v1555
    %v1557 = vmul.f32 %v1555, %v1556
    %v1558 = vsub.f32 1.0, %v1557
    %v1559 = vmul.f32 %v1556, %v1558
    %v1560 = vadd.f32 %v1556, %v1559
    %vm1561 = vweird.f32 %v1555
    %vm1562 = vweird.f32 %v1556
    %vm1563 = vmor %vm1561, %vm1562
    %v1564 = vsel %vm1563, %v1556, %v1560
    %v1565 = vand.u32 2147483647, %v1555
    %vm1566 = vcmp.eq.f32.partialorder %v1565, 8.507059e+37
    %v1567 = vand.u32 %v1555, 2147483648
    %v1568 = vor.u32 1.1754944e-38, %v1567
    %v1569 = vsel %vm1566, %v1568, %v1564
    %v1570 = vmul.f32 1.0, %v1569
    %v1571 = vxor.u32 %v1549, 2147483648
    %v1572 = vmul.f32 %v1571, 1.442695
    %v1573 = vpow.pop %v1572
    %v1574 = vadd.f32 %v1573, 1.0
    %v1575 = vrcp.pop %v1574
    %v1576 = vmul.f32 %v1574, %v1575
    %v1577 = vsub.f32 1.0, %v1576
    %v1578 = vmul.f32 %v1575, %v1577
    %v1579 = vadd.f32 %v1575, %v1578
    %vm1580 = vweird.f32 %v1574
    %vm1581 = vweird.f32 %v1575
    %vm1582 = vmor %vm1580, %vm1581
    %v1583 = vsel %vm1582, %v1575, %v1579
    %v1584 = vand.u32 2147483647, %v1574
    %vm1585 = vcmp.eq.f32.partialorder %v1584, 8.507059e+37
    %v1586 = vand.u32 %v1574, 2147483648
    %v1587 = vor.u32 1.1754944e-38, %v1586
    %v1588 = vsel %vm1585, %v1587, %v1583
    %v1589 = vmul.f32 1.0, %v1588
    %v1590 = vtanh.pop %v1550
    %v1591 = vxor.u32 %v1551, 2147483648
    %v1592 = vmul.f32 %v1591, 1.442695
    %v1593 = vpow.pop %v1592
    %v1594 = vadd.f32 %v1593, 1.0
    %v1595 = vrcp.pop %v1594
    %v1596 = vmul.f32 %v1594, %v1595
    %v1597 = vsub.f32 1.0, %v1596
    %v1598 = vmul.f32 %v1595, %v1597
    %v1599 = vadd.f32 %v1595, %v1598
    %vm1600 = vweird.f32 %v1594
    %vm1601 = vweird.f32 %v1595
    %vm1602 = vmor %vm1600, %vm1601
    %v1603 = vsel %vm1602, %v1595, %v1599
    %v1604 = vand.u32 2147483647, %v1594
    %vm1605 = vcmp.eq.f32.partialorder %v1604, 8.507059e+37
    %v1606 = vand.u32 %v1594, 2147483648
    %v1607 = vor.u32 1.1754944e-38, %v1606
    %v1608 = vsel %vm1605, %v1607, %v1603
    %v1609 = vmul.f32 1.0, %v1608
    %v1610 = vmul.f32 %v1589, 0.0
    %v1611 = vmul.f32 %v1570, %v1590
    %v1612 = vadd.f32 %v1610, %v1611
    %v1613 = vtanh.pop %v1612
    %v1614 = vmul.f32 %v1609, %v1613
    %1615 = vmatpush.msra.mxu0 %v1099
    %1616 = vmatpush.msra.mxu0 %v1095
    %1617 = vmatpush.msra.mxu0 %v1091
    %1618 = vmatpush.msra.mxu0 %v1087
    %1619 = vmatpush.msra.mxu0 %v1083
    %1620 = vmatpush.msra.mxu0 %v1079
    %1621 = vmatpush.msra.mxu0 %v1075
    %1622 = vmatpush.msra.mxu0 %v1071
    %1623 = vmatpush.msra.mxu0 %v1067
    %1624 = vmatpush.msra.mxu0 %v1063
    %1625 = vmatpush.msra.mxu0 %v1059
    %1626 = vmatpush.msra.mxu0 %v1055
    %1627 = vmatpush.msra.mxu0 %v1051
    %1628 = vmatpush.msra.mxu0 %v1047
    %1629 = vmatpush.msra.mxu0 %v1043
    %1630 = vmatpush.msra.mxu0 %v1039
    %1631 = vmatmul.f32.gmra.mxu0 %v1378
    %v1632 = vpop.f32.mrf.mxu0
    %v1633 = vadd.f32 0.0, %v1632
    %1634 = vdwg.mxu0
    %1635 = vmatpush.msra.mxu0 %v1100
    %1636 = vmatpush.msra.mxu0 %v1096
    %1637 = vmatpush.msra.mxu0 %v1092
    %1638 = vmatpush.msra.mxu0 %v1088
    %1639 = vmatpush.msra.mxu0 %v1084
    %1640 = vmatpush.msra.mxu0 %v1080
    %1641 = vmatpush.msra.mxu0 %v1076
    %1642 = vmatpush.msra.mxu0 %v1072
    %1643 = vmatpush.msra.mxu0 %v1068
    %1644 = vmatpush.msra.mxu0 %v1064
    %1645 = vmatpush.msra.mxu0 %v1060
    %1646 = vmatpush.msra.mxu0 %v1056
    %1647 = vmatpush.msra.mxu0 %v1052
    %1648 = vmatpush.msra.mxu0 %v1048
    %1649 = vmatpush.msra.mxu0 %v1044
    %1650 = vmatpush.msra.mxu0 %v1040
    %1651 = vmatmul.f32.gmra.mxu0 %v1378
    %v1652 = vpop.f32.mrf.mxu0
    %v1653 = vadd.f32 0.0, %v1652
    %1654 = vdwg.mxu0
    %1655 = vmatpush.msra.mxu0 %v1101
    %1656 = vmatpush.msra.mxu0 %v1097
    %1657 = vmatpush.msra.mxu0 %v1093
    %1658 = vmatpush.msra.mxu0 %v1089
    %1659 = vmatpush.msra.mxu0 %v1085
    %1660 = vmatpush.msra.mxu0 %v1081
    %1661 = vmatpush.msra.mxu0 %v1077
    %1662 = vmatpush.msra.mxu0 %v1073
    %1663 = vmatpush.msra.mxu0 %v1069
    %1664 = vmatpush.msra.mxu0 %v1065
    %1665 = vmatpush.msra.mxu0 %v1061
    %1666 = vmatpush.msra.mxu0 %v1057
    %1667 = vmatpush.msra.mxu0 %v1053
    %1668 = vmatpush.msra.mxu0 %v1049
    %1669 = vmatpush.msra.mxu0 %v1045
    %1670 = vmatpush.msra.mxu0 %v1041
    %1671 = vmatmul.f32.gmra.mxu0 %v1378
    %v1672 = vpop.f32.mrf.mxu0
    %v1673 = vadd.f32 0.0, %v1672
    %1674 = vdwg.mxu0
    %1675 = vmatpush.msra.mxu0 %v1102
    %1676 = vmatpush.msra.mxu0 %v1098
    %1677 = vmatpush.msra.mxu0 %v1094
    %1678 = vmatpush.msra.mxu0 %v1090
    %1679 = vmatpush.msra.mxu0 %v1086
    %1680 = vmatpush.msra.mxu0 %v1082
    %1681 = vmatpush.msra.mxu0 %v1078
    %1682 = vmatpush.msra.mxu0 %v1074
    %1683 = vmatpush.msra.mxu0 %v1070
    %1684 = vmatpush.msra.mxu0 %v1066
    %1685 = vmatpush.msra.mxu0 %v1062
    %1686 = vmatpush.msra.mxu0 %v1058
    %1687 = vmatpush.msra.mxu0 %v1054
    %1688 = vmatpush.msra.mxu0 %v1050
    %1689 = vmatpush.msra.mxu0 %v1046
    %1690 = vmatpush.msra.mxu0 %v1042
    %1691 = vmatmul.f32.gmra.mxu0 %v1378
    %v1692 = vpop.f32.mrf.mxu0
    %v1693 = vadd.f32 0.0, %v1692
    %1694 = vdwg.mxu0
    %v1699 = vrot.slane %v1633, 7
    %v1700 = vrot.slane %v1653, 7
    %v1701 = vrot.slane %v1673, 7
    %v1702 = vrot.slane %v1693, 7
    %v1707 = vadd.f32 %v977, %v1699
    %v1708 = vadd.f32 %v997, %v1700
    %v1709 = vadd.f32 %v1017, %v1701
    %v1710 = vadd.f32 %v1037, %v1702
    %v1711 = vxor.u32 %v1707, 2147483648
    %v1712 = vmul.f32 %v1711, 1.442695
    %v1713 = vpow.pop %v1712
    %v1714 = vadd.f32 %v1713, 1.0
    %v1715 = vrcp.pop %v1714
    %v1716 = vmul.f32 %v1714, %v1715
    %v1717 = vsub.f32 1.0, %v1716
    %v1718 = vmul.f32 %v1715, %v1717
    %v1719 = vadd.f32 %v1715, %v1718
    %vm1720 = vweird.f32 %v1714
    %vm1721 = vweird.f32 %v1715
    %vm1722 = vmor %vm1720, %vm1721
    %v1723 = vsel %vm1722, %v1715, %v1719
    %v1724 = vand.u32 2147483647, %v1714
    %vm1725 = vcmp.eq.f32.partialorder %v1724, 8.507059e+37
    %v1726 = vand.u32 %v1714, 2147483648
    %v1727 = vor.u32 1.1754944e-38, %v1726
    %v1728 = vsel %vm1725, %v1727, %v1723
    %v1729 = vmul.f32 1.0, %v1728
    %v1730 = vxor.u32 %v1708, 2147483648
    %v1731 = vmul.f32 %v1730, 1.442695
    %v1732 = vpow.pop %v1731
    %v1733 = vadd.f32 %v1732, 1.0
    %v1734 = vrcp.pop %v1733
    %v1735 = vmul.f32 %v1733, %v1734
    %v1736 = vsub.f32 1.0, %v1735
    %v1737 = vmul.f32 %v1734, %v1736
    %v1738 = vadd.f32 %v1734, %v1737
    %vm1739 = vweird.f32 %v1733
    %vm1740 = vweird.f32 %v1734
    %vm1741 = vmor %vm1739, %vm1740
    %v1742 = vsel %vm1741, %v1734, %v1738
    %v1743 = vand.u32 2147483647, %v1733
    %vm1744 = vcmp.eq.f32.partialorder %v1743, 8.507059e+37
    %v1745 = vand.u32 %v1733, 2147483648
    %v1746 = vor.u32 1.1754944e-38, %v1745
    %v1747 = vsel %vm1744, %v1746, %v1742
    %v1748 = vmul.f32 1.0, %v1747
    %v1749 = vtanh.pop %v1709
    %v1750 = vxor.u32 %v1710, 2147483648
    %v1751 = vmul.f32 %v1750, 1.442695
    %v1752 = vpow.pop %v1751
    %v1753 = vadd.f32 %v1752, 1.0
    %v1754 = vrcp.pop %v1753
    %v1755 = vmul.f32 %v1753, %v1754
    %v1756 = vsub.f32 1.0, %v1755
    %v1757 = vmul.f32 %v1754, %v1756
    %v1758 = vadd.f32 %v1754, %v1757
    %vm1759 = vweird.f32 %v1753
    %vm1760 = vweird.f32 %v1754
    %vm1761 = vmor %vm1759, %vm1760
    %v1762 = vsel %vm1761, %v1754, %v1758
    %v1763 = vand.u32 2147483647, %v1753
    %vm1764 = vcmp.eq.f32.partialorder %v1763, 8.507059e+37
    %v1765 = vand.u32 %v1753, 2147483648
    %v1766 = vor.u32 1.1754944e-38, %v1765
    %v1767 = vsel %vm1764, %v1766, %v1762
    %v1768 = vmul.f32 1.0, %v1767
    %v1770 = vrot.slane %v1376, 7
    %v1772 = vmul.f32 %v1748, %v1770
    %v1773 = vmul.f32 %v1729, %v1749
    %v1774 = vadd.f32 %v1772, %v1773
    %v1775 = vtanh.pop %v1774
    %v1776 = vmul.f32 %v1768, %v1775
    %1777 = vmatpush.msra.mxu0 %v1227
    %1778 = vmatpush.msra.mxu0 %v1223
    %1779 = vmatpush.msra.mxu0 %v1219
    %1780 = vmatpush.msra.mxu0 %v1215
    %1781 = vmatpush.msra.mxu0 %v1211
    %1782 = vmatpush.msra.mxu0 %v1207
    %1783 = vmatpush.msra.mxu0 %v1203
    %1784 = vmatpush.msra.mxu0 %v1199
    %1785 = vmatpush.msra.mxu0 %v1195
    %1786 = vmatpush.msra.mxu0 %v1191
    %1787 = vmatpush.msra.mxu0 %v1187
    %1788 = vmatpush.msra.mxu0 %v1183
    %1789 = vmatpush.msra.mxu0 %v1179
    %1790 = vmatpush.msra.mxu0 %v1175
    %1791 = vmatpush.msra.mxu0 %v1171
    %1792 = vmatpush.msra.mxu0 %v1167
    %1793 = vmatmul.f32.gmra.mxu0 %v1614
    %v1794 = vpop.f32.mrf.mxu0
    %v1795 = vadd.f32 0.0, %v1794
    %1796 = vdwg.mxu0
    %1797 = vmatpush.msra.mxu0 %v1228
    %1798 = vmatpush.msra.mxu0 %v1224
    %1799 = vmatpush.msra.mxu0 %v1220
    %1800 = vmatpush.msra.mxu0 %v1216
    %1801 = vmatpush.msra.mxu0 %v1212
    %1802 = vmatpush.msra.mxu0 %v1208
    %1803 = vmatpush.msra.mxu0 %v1204
    %1804 = vmatpush.msra.mxu0 %v1200
    %1805 = vmatpush.msra.mxu0 %v1196
    %1806 = vmatpush.msra.mxu0 %v1192
    %1807 = vmatpush.msra.mxu0 %v1188
    %1808 = vmatpush.msra.mxu0 %v1184
    %1809 = vmatpush.msra.mxu0 %v1180
    %1810 = vmatpush.msra.mxu0 %v1176
    %1811 = vmatpush.msra.mxu0 %v1172
    %1812 = vmatpush.msra.mxu0 %v1168
    %1813 = vmatmul.f32.gmra.mxu0 %v1614
    %v1814 = vpop.f32.mrf.mxu0
    %v1815 = vadd.f32 0.0, %v1814
    %1816 = vdwg.mxu0
    %1817 = vmatpush.msra.mxu0 %v1229
    %1818 = vmatpush.msra.mxu0 %v1225
    %1819 = vmatpush.msra.mxu0 %v1221
    %1820 = vmatpush.msra.mxu0 %v1217
    %1821 = vmatpush.msra.mxu0 %v1213
    %1822 = vmatpush.msra.mxu0 %v1209
    %1823 = vmatpush.msra.mxu0 %v1205
    %1824 = vmatpush.msra.mxu0 %v1201
    %1825 = vmatpush.msra.mxu0 %v1197
    %1826 = vmatpush.msra.mxu0 %v1193
    %1827 = vmatpush.msra.mxu0 %v1189
    %1828 = vmatpush.msra.mxu0 %v1185
    %1829 = vmatpush.msra.mxu0 %v1181
    %1830 = vmatpush.msra.mxu0 %v1177
    %1831 = vmatpush.msra.mxu0 %v1173
    %1832 = vmatpush.msra.mxu0 %v1169
    %1833 = vmatmul.f32.gmra.mxu0 %v1614
    %v1834 = vpop.f32.mrf.mxu0
    %v1835 = vadd.f32 0.0, %v1834
    %1836 = vdwg.mxu0
    %1837 = vmatpush.msra.mxu0 %v1230
    %1838 = vmatpush.msra.mxu0 %v1226
    %1839 = vmatpush.msra.mxu0 %v1222
    %1840 = vmatpush.msra.mxu0 %v1218
    %1841 = vmatpush.msra.mxu0 %v1214
    %1842 = vmatpush.msra.mxu0 %v1210
    %1843 = vmatpush.msra.mxu0 %v1206
    %1844 = vmatpush.msra.mxu0 %v1202
    %1845 = vmatpush.msra.mxu0 %v1198
    %1846 = vmatpush.msra.mxu0 %v1194
    %1847 = vmatpush.msra.mxu0 %v1190
    %1848 = vmatpush.msra.mxu0 %v1186
    %1849 = vmatpush.msra.mxu0 %v1182
    %1850 = vmatpush.msra.mxu0 %v1178
    %1851 = vmatpush.msra.mxu0 %v1174
    %1852 = vmatpush.msra.mxu0 %v1170
    %1853 = vmatmul.f32.gmra.mxu0 %v1614
    %v1854 = vpop.f32.mrf.mxu0
    %v1855 = vadd.f32 0.0, %v1854
    %1856 = vdwg.mxu0
    %v1858 = vrot.slane %v1776, 1
    %1860 = vmatpush.msra.mxu0 %v1163
    %1861 = vmatpush.msra.mxu0 %v1159
    %1862 = vmatpush.msra.mxu0 %v1155
    %1863 = vmatpush.msra.mxu0 %v1151
    %1864 = vmatpush.msra.mxu0 %v1147
    %1865 = vmatpush.msra.mxu0 %v1143
    %1866 = vmatpush.msra.mxu0 %v1139
    %1867 = vmatpush.msra.mxu0 %v1135
    %1868 = vmatpush.msra.mxu0 %v1131
    %1869 = vmatpush.msra.mxu0 %v1127
    %1870 = vmatpush.msra.mxu0 %v1123
    %1871 = vmatpush.msra.mxu0 %v1119
    %1872 = vmatpush.msra.mxu0 %v1115
    %1873 = vmatpush.msra.mxu0 %v1111
    %1874 = vmatpush.msra.mxu0 %v1107
    %1875 = vmatpush.msra.mxu0 %v1103
    %1876 = vmatmul.f32.gmra.mxu0 %v1858
    %v1877 = vpop.f32.mrf.mxu0
    %v1878 = vadd.f32 %v1795, %v1877
    %1879 = vdwg.mxu0
    %1880 = vmatpush.msra.mxu0 %v1164
    %1881 = vmatpush.msra.mxu0 %v1160
    %1882 = vmatpush.msra.mxu0 %v1156
    %1883 = vmatpush.msra.mxu0 %v1152
    %1884 = vmatpush.msra.mxu0 %v1148
    %1885 = vmatpush.msra.mxu0 %v1144
    %1886 = vmatpush.msra.mxu0 %v1140
    %1887 = vmatpush.msra.mxu0 %v1136
    %1888 = vmatpush.msra.mxu0 %v1132
    %1889 = vmatpush.msra.mxu0 %v1128
    %1890 = vmatpush.msra.mxu0 %v1124
    %1891 = vmatpush.msra.mxu0 %v1120
    %1892 = vmatpush.msra.mxu0 %v1116
    %1893 = vmatpush.msra.mxu0 %v1112
    %1894 = vmatpush.msra.mxu0 %v1108
    %1895 = vmatpush.msra.mxu0 %v1104
    %1896 = vmatmul.f32.gmra.mxu0 %v1858
    %v1897 = vpop.f32.mrf.mxu0
    %v1898 = vadd.f32 %v1815, %v1897
    %1899 = vdwg.mxu0
    %1900 = vmatpush.msra.mxu0 %v1165
    %1901 = vmatpush.msra.mxu0 %v1161
    %1902 = vmatpush.msra.mxu0 %v1157
    %1903 = vmatpush.msra.mxu0 %v1153
    %1904 = vmatpush.msra.mxu0 %v1149
    %1905 = vmatpush.msra.mxu0 %v1145
    %1906 = vmatpush.msra.mxu0 %v1141
    %1907 = vmatpush.msra.mxu0 %v1137
    %1908 = vmatpush.msra.mxu0 %v1133
    %1909 = vmatpush.msra.mxu0 %v1129
    %1910 = vmatpush.msra.mxu0 %v1125
    %1911 = vmatpush.msra.mxu0 %v1121
    %1912 = vmatpush.msra.mxu0 %v1117
    %1913 = vmatpush.msra.mxu0 %v1113
    %1914 = vmatpush.msra.mxu0 %v1109
    %1915 = vmatpush.msra.mxu0 %v1105
    %1916 = vmatmul.f32.gmra.mxu0 %v1858
    %v1917 = vpop.f32.mrf.mxu0
    %v1918 = vadd.f32 %v1835, %v1917
    %1919 = vdwg.mxu0
    %1920 = vmatpush.msra.mxu0 %v1166
    %1921 = vmatpush.msra.mxu0 %v1162
    %1922 = vmatpush.msra.mxu0 %v1158
    %1923 = vmatpush.msra.mxu0 %v1154
    %1924 = vmatpush.msra.mxu0 %v1150
    %1925 = vmatpush.msra.mxu0 %v1146
    %1926 = vmatpush.msra.mxu0 %v1142
    %1927 = vmatpush.msra.mxu0 %v1138
    %1928 = vmatpush.msra.mxu0 %v1134
    %1929 = vmatpush.msra.mxu0 %v1130
    %1930 = vmatpush.msra.mxu0 %v1126
    %1931 = vmatpush.msra.mxu0 %v1122
    %1932 = vmatpush.msra.mxu0 %v1118
    %1933 = vmatpush.msra.mxu0 %v1114
    %1934 = vmatpush.msra.mxu0 %v1110
    %1935 = vmatpush.msra.mxu0 %v1106
    %1936 = vmatmul.f32.gmra.mxu0 %v1858
    %v1937 = vpop.f32.mrf.mxu0
    %v1938 = vadd.f32 %v1855, %v1937
    %1939 = vdwg.mxu0
    %v1940 = vadd.f32 %v1878, %v1540
    %v1941 = vadd.f32 %v1898, %v1541
    %v1942 = vadd.f32 %v1918, %v1542
    %v1943 = vadd.f32 %v1938, %v1543
    %v1944 = vxor.u32 %v1940, 2147483648
    %v1945 = vmul.f32 %v1944, 1.442695
    %v1946 = vpow.pop %v1945
    %v1947 = vadd.f32 %v1946, 1.0
    %v1948 = vrcp.pop %v1947
    %v1949 = vmul.f32 %v1947, %v1948
    %v1950 = vsub.f32 1.0, %v1949
    %v1951 = vmul.f32 %v1948, %v1950
    %v1952 = vadd.f32 %v1948, %v1951
    %vm1953 = vweird.f32 %v1947
    %vm1954 = vweird.f32 %v1948
    %vm1955 = vmor %vm1953, %vm1954
    %v1956 = vsel %vm1955, %v1948, %v1952
    %v1957 = vand.u32 2147483647, %v1947
    %vm1958 = vcmp.eq.f32.partialorder %v1957, 8.507059e+37
    %v1959 = vand.u32 %v1947, 2147483648
    %v1960 = vor.u32 1.1754944e-38, %v1959
    %v1961 = vsel %vm1958, %v1960, %v1956
    %v1962 = vmul.f32 1.0, %v1961
    %v1963 = vxor.u32 %v1941, 2147483648
    %v1964 = vmul.f32 %v1963, 1.442695
    %v1965 = vpow.pop %v1964
    %v1966 = vadd.f32 %v1965, 1.0
    %v1967 = vrcp.pop %v1966
    %v1968 = vmul.f32 %v1966, %v1967
    %v1969 = vsub.f32 1.0, %v1968
    %v1970 = vmul.f32 %v1967, %v1969
    %v1971 = vadd.f32 %v1967, %v1970
    %vm1972 = vweird.f32 %v1966
    %vm1973 = vweird.f32 %v1967
    %vm1974 = vmor %vm1972, %vm1973
    %v1975 = vsel %vm1974, %v1967, %v1971
    %v1976 = vand.u32 2147483647, %v1966
    %vm1977 = vcmp.eq.f32.partialorder %v1976, 8.507059e+37
    %v1978 = vand.u32 %v1966, 2147483648
    %v1979 = vor.u32 1.1754944e-38, %v1978
    %v1980 = vsel %vm1977, %v1979, %v1975
    %v1981 = vmul.f32 1.0, %v1980
    %v1982 = vtanh.pop %v1942
    %v1983 = vxor.u32 %v1943, 2147483648
    %v1984 = vmul.f32 %v1983, 1.442695
    %v1985 = vpow.pop %v1984
    %v1986 = vadd.f32 %v1985, 1.0
    %v1987 = vrcp.pop %v1986
    %v1988 = vmul.f32 %v1986, %v1987
    %v1989 = vsub.f32 1.0, %v1988
    %v1990 = vmul.f32 %v1987, %v1989
    %v1991 = vadd.f32 %v1987, %v1990
    %vm1992 = vweird.f32 %v1986
    %vm1993 = vweird.f32 %v1987
    %vm1994 = vmor %vm1992, %vm1993
    %v1995 = vsel %vm1994, %v1987, %v1991
    %v1996 = vand.u32 2147483647, %v1986
    %vm1997 = vcmp.eq.f32.partialorder %v1996, 8.507059e+37
    %v1998 = vand.u32 %v1986, 2147483648
    %v1999 = vor.u32 1.1754944e-38, %v1998
    %v2000 = vsel %vm1997, %v1999, %v1995
    %v2001 = vmul.f32 1.0, %v2000
    %v2002 = vmul.f32 %v1981, %v1612
    %v2003 = vmul.f32 %v1962, %v1982
    %v2004 = vadd.f32 %v2002, %v2003
    %v2005 = vtanh.pop %v2004
    %v2006 = vmul.f32 %v2001, %v2005
    %2007 = vmatpush.msra.mxu0 %v1099
    %2008 = vmatpush.msra.mxu0 %v1095
    %2009 = vmatpush.msra.mxu0 %v1091
    %2010 = vmatpush.msra.mxu0 %v1087
    %2011 = vmatpush.msra.mxu0 %v1083
    %2012 = vmatpush.msra.mxu0 %v1079
    %2013 = vmatpush.msra.mxu0 %v1075
    %2014 = vmatpush.msra.mxu0 %v1071
    %2015 = vmatpush.msra.mxu0 %v1067
    %2016 = vmatpush.msra.mxu0 %v1063
    %2017 = vmatpush.msra.mxu0 %v1059
    %2018 = vmatpush.msra.mxu0 %v1055
    %2019 = vmatpush.msra.mxu0 %v1051
    %2020 = vmatpush.msra.mxu0 %v1047
    %2021 = vmatpush.msra.mxu0 %v1043
    %2022 = vmatpush.msra.mxu0 %v1039
    %2023 = vmatmul.f32.gmra.mxu0 %v1858
    %v2024 = vpop.f32.mrf.mxu0
    %v2025 = vadd.f32 0.0, %v2024
    %2026 = vdwg.mxu0
    %2027 = vmatpush.msra.mxu0 %v1100
    %2028 = vmatpush.msra.mxu0 %v1096
    %2029 = vmatpush.msra.mxu0 %v1092
    %2030 = vmatpush.msra.mxu0 %v1088
    %2031 = vmatpush.msra.mxu0 %v1084
    %2032 = vmatpush.msra.mxu0 %v1080
    %2033 = vmatpush.msra.mxu0 %v1076
    %2034 = vmatpush.msra.mxu0 %v1072
    %2035 = vmatpush.msra.mxu0 %v1068
    %2036 = vmatpush.msra.mxu0 %v1064
    %2037 = vmatpush.msra.mxu0 %v1060
    %2038 = vmatpush.msra.mxu0 %v1056
    %2039 = vmatpush.msra.mxu0 %v1052
    %2040 = vmatpush.msra.mxu0 %v1048
    %2041 = vmatpush.msra.mxu0 %v1044
    %2042 = vmatpush.msra.mxu0 %v1040
    %2043 = vmatmul.f32.gmra.mxu0 %v1858
    %v2044 = vpop.f32.mrf.mxu0
    %v2045 = vadd.f32 0.0, %v2044
    %2046 = vdwg.mxu0
    %2047 = vmatpush.msra.mxu0 %v1101
    %2048 = vmatpush.msra.mxu0 %v1097
    %2049 = vmatpush.msra.mxu0 %v1093
    %2050 = vmatpush.msra.mxu0 %v1089
    %2051 = vmatpush.msra.mxu0 %v1085
    %2052 = vmatpush.msra.mxu0 %v1081
    %2053 = vmatpush.msra.mxu0 %v1077
    %2054 = vmatpush.msra.mxu0 %v1073
    %2055 = vmatpush.msra.mxu0 %v1069
    %2056 = vmatpush.msra.mxu0 %v1065
    %2057 = vmatpush.msra.mxu0 %v1061
    %2058 = vmatpush.msra.mxu0 %v1057
    %2059 = vmatpush.msra.mxu0 %v1053
    %2060 = vmatpush.msra.mxu0 %v1049
    %2061 = vmatpush.msra.mxu0 %v1045
    %2062 = vmatpush.msra.mxu0 %v1041
    %2063 = vmatmul.f32.gmra.mxu0 %v1858
    %v2064 = vpop.f32.mrf.mxu0
    %v2065 = vadd.f32 0.0, %v2064
    %2066 = vdwg.mxu0
    %2067 = vmatpush.msra.mxu0 %v1102
    %2068 = vmatpush.msra.mxu0 %v1098
    %2069 = vmatpush.msra.mxu0 %v1094
    %2070 = vmatpush.msra.mxu0 %v1090
    %2071 = vmatpush.msra.mxu0 %v1086
    %2072 = vmatpush.msra.mxu0 %v1082
    %2073 = vmatpush.msra.mxu0 %v1078
    %2074 = vmatpush.msra.mxu0 %v1074
    %2075 = vmatpush.msra.mxu0 %v1070
    %2076 = vmatpush.msra.mxu0 %v1066
    %2077 = vmatpush.msra.mxu0 %v1062
    %2078 = vmatpush.msra.mxu0 %v1058
    %2079 = vmatpush.msra.mxu0 %v1054
    %2080 = vmatpush.msra.mxu0 %v1050
    %2081 = vmatpush.msra.mxu0 %v1046
    %2082 = vmatpush.msra.mxu0 %v1042
    %2083 = vmatmul.f32.gmra.mxu0 %v1858
    %v2084 = vpop.f32.mrf.mxu0
    %v2085 = vadd.f32 0.0, %v2084
    %2086 = vdwg.mxu0
    %v2091 = vrot.slane %v2025, 6
    %v2092 = vrot.slane %v2045, 6
    %v2093 = vrot.slane %v2065, 6
    %v2094 = vrot.slane %v2085, 6
    %v2099 = vadd.f32 %v977, %v2091
    %v2100 = vadd.f32 %v997, %v2092
    %v2101 = vadd.f32 %v1017, %v2093
    %v2102 = vadd.f32 %v1037, %v2094
    %v2103 = vxor.u32 %v2099, 2147483648
    %v2104 = vmul.f32 %v2103, 1.442695
    %v2105 = vpow.pop %v2104
    %v2106 = vadd.f32 %v2105, 1.0
    %v2107 = vrcp.pop %v2106
    %v2108 = vmul.f32 %v2106, %v2107
    %v2109 = vsub.f32 1.0, %v2108
    %v2110 = vmul.f32 %v2107, %v2109
    %v2111 = vadd.f32 %v2107, %v2110
    %vm2112 = vweird.f32 %v2106
    %vm2113 = vweird.f32 %v2107
    %vm2114 = vmor %vm2112, %vm2113
    %v2115 = vsel %vm2114, %v2107, %v2111
    %v2116 = vand.u32 2147483647, %v2106
    %vm2117 = vcmp.eq.f32.partialorder %v2116, 8.507059e+37
    %v2118 = vand.u32 %v2106, 2147483648
    %v2119 = vor.u32 1.1754944e-38, %v2118
    %v2120 = vsel %vm2117, %v2119, %v2115
    %v2121 = vmul.f32 1.0, %v2120
    %v2122 = vxor.u32 %v2100, 2147483648
    %v2123 = vmul.f32 %v2122, 1.442695
    %v2124 = vpow.pop %v2123
    %v2125 = vadd.f32 %v2124, 1.0
    %v2126 = vrcp.pop %v2125
    %v2127 = vmul.f32 %v2125, %v2126
    %v2128 = vsub.f32 1.0, %v2127
    %v2129 = vmul.f32 %v2126, %v2128
    %v2130 = vadd.f32 %v2126, %v2129
    %vm2131 = vweird.f32 %v2125
    %vm2132 = vweird.f32 %v2126
    %vm2133 = vmor %vm2131, %vm2132
    %v2134 = vsel %vm2133, %v2126, %v2130
    %v2135 = vand.u32 2147483647, %v2125
    %vm2136 = vcmp.eq.f32.partialorder %v2135, 8.507059e+37
    %v2137 = vand.u32 %v2125, 2147483648
    %v2138 = vor.u32 1.1754944e-38, %v2137
    %v2139 = vsel %vm2136, %v2138, %v2134
    %v2140 = vmul.f32 1.0, %v2139
    %v2141 = vtanh.pop %v2101
    %v2142 = vxor.u32 %v2102, 2147483648
    %v2143 = vmul.f32 %v2142, 1.442695
    %v2144 = vpow.pop %v2143
    %v2145 = vadd.f32 %v2144, 1.0
    %v2146 = vrcp.pop %v2145
    %v2147 = vmul.f32 %v2145, %v2146
    %v2148 = vsub.f32 1.0, %v2147
    %v2149 = vmul.f32 %v2146, %v2148
    %v2150 = vadd.f32 %v2146, %v2149
    %vm2151 = vweird.f32 %v2145
    %vm2152 = vweird.f32 %v2146
    %vm2153 = vmor %vm2151, %vm2152
    %v2154 = vsel %vm2153, %v2146, %v2150
    %v2155 = vand.u32 2147483647, %v2145
    %vm2156 = vcmp.eq.f32.partialorder %v2155, 8.507059e+37
    %v2157 = vand.u32 %v2145, 2147483648
    %v2158 = vor.u32 1.1754944e-38, %v2157
    %v2159 = vsel %vm2156, %v2158, %v2154
    %v2160 = vmul.f32 1.0, %v2159
    %v2162 = vrot.slane %v1774, 7
    %v2164 = vmul.f32 %v2140, %v2162
    %v2165 = vmul.f32 %v2121, %v2141
    %v2166 = vadd.f32 %v2164, %v2165
    %v2167 = vtanh.pop %v2166
    %v2168 = vmul.f32 %v2160, %v2167
    %2169 = vmatpush.msra.mxu0 %v1227
    %2170 = vmatpush.msra.mxu0 %v1223
    %2171 = vmatpush.msra.mxu0 %v1219
    %2172 = vmatpush.msra.mxu0 %v1215
    %2173 = vmatpush.msra.mxu0 %v1211
    %2174 = vmatpush.msra.mxu0 %v1207
    %2175 = vmatpush.msra.mxu0 %v1203
    %2176 = vmatpush.msra.mxu0 %v1199
    %2177 = vmatpush.msra.mxu0 %v1195
    %2178 = vmatpush.msra.mxu0 %v1191
    %2179 = vmatpush.msra.mxu0 %v1187
    %2180 = vmatpush.msra.mxu0 %v1183
    %2181 = vmatpush.msra.mxu0 %v1179
    %2182 = vmatpush.msra.mxu0 %v1175
    %2183 = vmatpush.msra.mxu0 %v1171
    %2184 = vmatpush.msra.mxu0 %v1167
    %2185 = vmatmul.f32.gmra.mxu0 %v2006
    %v2186 = vpop.f32.mrf.mxu0
    %v2187 = vadd.f32 0.0, %v2186
    %2188 = vdwg.mxu0
    %2189 = vmatpush.msra.mxu0 %v1228
    %2190 = vmatpush.msra.mxu0 %v1224
    %2191 = vmatpush.msra.mxu0 %v1220
    %2192 = vmatpush.msra.mxu0 %v1216
    %2193 = vmatpush.msra.mxu0 %v1212
    %2194 = vmatpush.msra.mxu0 %v1208
    %2195 = vmatpush.msra.mxu0 %v1204
    %2196 = vmatpush.msra.mxu0 %v1200
    %2197 = vmatpush.msra.mxu0 %v1196
    %2198 = vmatpush.msra.mxu0 %v1192
    %2199 = vmatpush.msra.mxu0 %v1188
    %2200 = vmatpush.msra.mxu0 %v1184
    %2201 = vmatpush.msra.mxu0 %v1180
    %2202 = vmatpush.msra.mxu0 %v1176
    %2203 = vmatpush.msra.mxu0 %v1172
    %2204 = vmatpush.msra.mxu0 %v1168
    %2205 = vmatmul.f32.gmra.mxu0 %v2006
    %v2206 = vpop.f32.mrf.mxu0
    %v2207 = vadd.f32 0.0, %v2206
    %2208 = vdwg.mxu0
    %2209 = vmatpush.msra.mxu0 %v1229
    %2210 = vmatpush.msra.mxu0 %v1225
    %2211 = vmatpush.msra.mxu0 %v1221
    %2212 = vmatpush.msra.mxu0 %v1217
    %2213 = vmatpush.msra.mxu0 %v1213
    %2214 = vmatpush.msra.mxu0 %v1209
    %2215 = vmatpush.msra.mxu0 %v1205
    %2216 = vmatpush.msra.mxu0 %v1201
    %2217 = vmatpush.msra.mxu0 %v1197
    %2218 = vmatpush.msra.mxu0 %v1193
    %2219 = vmatpush.msra.mxu0 %v1189
    %2220 = vmatpush.msra.mxu0 %v1185
    %2221 = vmatpush.msra.mxu0 %v1181
    %2222 = vmatpush.msra.mxu0 %v1177
    %2223 = vmatpush.msra.mxu0 %v1173
    %2224 = vmatpush.msra.mxu0 %v1169
    %2225 = vmatmul.f32.gmra.mxu0 %v2006
    %v2226 = vpop.f32.mrf.mxu0
    %v2227 = vadd.f32 0.0, %v2226
    %2228 = vdwg.mxu0
    %2229 = vmatpush.msra.mxu0 %v1230
    %2230 = vmatpush.msra.mxu0 %v1226
    %2231 = vmatpush.msra.mxu0 %v1222
    %2232 = vmatpush.msra.mxu0 %v1218
    %2233 = vmatpush.msra.mxu0 %v1214
    %2234 = vmatpush.msra.mxu0 %v1210
    %2235 = vmatpush.msra.mxu0 %v1206
    %2236 = vmatpush.msra.mxu0 %v1202
    %2237 = vmatpush.msra.mxu0 %v1198
    %2238 = vmatpush.msra.mxu0 %v1194
    %2239 = vmatpush.msra.mxu0 %v1190
    %2240 = vmatpush.msra.mxu0 %v1186
    %2241 = vmatpush.msra.mxu0 %v1182
    %2242 = vmatpush.msra.mxu0 %v1178
    %2243 = vmatpush.msra.mxu0 %v1174
    %2244 = vmatpush.msra.mxu0 %v1170
    %2245 = vmatmul.f32.gmra.mxu0 %v2006
    %v2246 = vpop.f32.mrf.mxu0
    %v2247 = vadd.f32 0.0, %v2246
    %2248 = vdwg.mxu0
    %v2250 = vrot.slane %v2168, 2
    %2252 = vmatpush.msra.mxu0 %v1163
    %2253 = vmatpush.msra.mxu0 %v1159
    %2254 = vmatpush.msra.mxu0 %v1155
    %2255 = vmatpush.msra.mxu0 %v1151
    %2256 = vmatpush.msra.mxu0 %v1147
    %2257 = vmatpush.msra.mxu0 %v1143
    %2258 = vmatpush.msra.mxu0 %v1139
    %2259 = vmatpush.msra.mxu0 %v1135
    %2260 = vmatpush.msra.mxu0 %v1131
    %2261 = vmatpush.msra.mxu0 %v1127
    %2262 = vmatpush.msra.mxu0 %v1123
    %2263 = vmatpush.msra.mxu0 %v1119
    %2264 = vmatpush.msra.mxu0 %v1115
    %2265 = vmatpush.msra.mxu0 %v1111
    %2266 = vmatpush.msra.mxu0 %v1107
    %2267 = vmatpush.msra.mxu0 %v1103
    %2268 = vmatmul.f32.gmra.mxu0 %v2250
    %v2269 = vpop.f32.mrf.mxu0
    %v2270 = vadd.f32 %v2187, %v2269
    %2271 = vdwg.mxu0
    %2272 = vmatpush.msra.mxu0 %v1164
    %2273 = vmatpush.msra.mxu0 %v1160
    %2274 = vmatpush.msra.mxu0 %v1156
    %2275 = vmatpush.msra.mxu0 %v1152
    %2276 = vmatpush.msra.mxu0 %v1148
    %2277 = vmatpush.msra.mxu0 %v1144
    %2278 = vmatpush.msra.mxu0 %v1140
    %2279 = vmatpush.msra.mxu0 %v1136
    %2280 = vmatpush.msra.mxu0 %v1132
    %2281 = vmatpush.msra.mxu0 %v1128
    %2282 = vmatpush.msra.mxu0 %v1124
    %2283 = vmatpush.msra.mxu0 %v1120
    %2284 = vmatpush.msra.mxu0 %v1116
    %2285 = vmatpush.msra.mxu0 %v1112
    %2286 = vmatpush.msra.mxu0 %v1108
    %2287 = vmatpush.msra.mxu0 %v1104
    %2288 = vmatmul.f32.gmra.mxu0 %v2250
    %v2289 = vpop.f32.mrf.mxu0
    %v2290 = vadd.f32 %v2207, %v2289
    %2291 = vdwg.mxu0
    %2292 = vmatpush.msra.mxu0 %v1165
    %2293 = vmatpush.msra.mxu0 %v1161
    %2294 = vmatpush.msra.mxu0 %v1157
    %2295 = vmatpush.msra.mxu0 %v1153
    %2296 = vmatpush.msra.mxu0 %v1149
    %2297 = vmatpush.msra.mxu0 %v1145
    %2298 = vmatpush.msra.mxu0 %v1141
    %2299 = vmatpush.msra.mxu0 %v1137
    %2300 = vmatpush.msra.mxu0 %v1133
    %2301 = vmatpush.msra.mxu0 %v1129
    %2302 = vmatpush.msra.mxu0 %v1125
    %2303 = vmatpush.msra.mxu0 %v1121
    %2304 = vmatpush.msra.mxu0 %v1117
    %2305 = vmatpush.msra.mxu0 %v1113
    %2306 = vmatpush.msra.mxu0 %v1109
    %2307 = vmatpush.msra.mxu0 %v1105
    %2308 = vmatmul.f32.gmra.mxu0 %v2250
    %v2309 = vpop.f32.mrf.mxu0
    %v2310 = vadd.f32 %v2227, %v2309
    %2311 = vdwg.mxu0
    %2312 = vmatpush.msra.mxu0 %v1166
    %2313 = vmatpush.msra.mxu0 %v1162
    %2314 = vmatpush.msra.mxu0 %v1158
    %2315 = vmatpush.msra.mxu0 %v1154
    %2316 = vmatpush.msra.mxu0 %v1150
    %2317 = vmatpush.msra.mxu0 %v1146
    %2318 = vmatpush.msra.mxu0 %v1142
    %2319 = vmatpush.msra.mxu0 %v1138
    %2320 = vmatpush.msra.mxu0 %v1134
    %2321 = vmatpush.msra.mxu0 %v1130
    %2322 = vmatpush.msra.mxu0 %v1126
    %2323 = vmatpush.msra.mxu0 %v1122
    %2324 = vmatpush.msra.mxu0 %v1118
    %2325 = vmatpush.msra.mxu0 %v1114
    %2326 = vmatpush.msra.mxu0 %v1110
    %2327 = vmatpush.msra.mxu0 %v1106
    %2328 = vmatmul.f32.gmra.mxu0 %v2250
    %v2329 = vpop.f32.mrf.mxu0
    %v2330 = vadd.f32 %v2247, %v2329
    %2331 = vdwg.mxu0
    %v2332 = vadd.f32 %v2270, %v1540
    %v2333 = vadd.f32 %v2290, %v1541
    %v2334 = vadd.f32 %v2310, %v1542
    %v2335 = vadd.f32 %v2330, %v1543
    %v2336 = vxor.u32 %v2332, 2147483648
    %v2337 = vmul.f32 %v2336, 1.442695
    %v2338 = vpow.pop %v2337
    %v2339 = vadd.f32 %v2338, 1.0
    %v2340 = vrcp.pop %v2339
    %v2341 = vmul.f32 %v2339, %v2340
    %v2342 = vsub.f32 1.0, %v2341
    %v2343 = vmul.f32 %v2340, %v2342
    %v2344 = vadd.f32 %v2340, %v2343
    %vm2345 = vweird.f32 %v2339
    %vm2346 = vweird.f32 %v2340
    %vm2347 = vmor %vm2345, %vm2346
    %v2348 = vsel %vm2347, %v2340, %v2344
    %v2349 = vand.u32 2147483647, %v2339
    %vm2350 = vcmp.eq.f32.partialorder %v2349, 8.507059e+37
    %v2351 = vand.u32 %v2339, 2147483648
    %v2352 = vor.u32 1.1754944e-38, %v2351
    %v2353 = vsel %vm2350, %v2352, %v2348
    %v2354 = vmul.f32 1.0, %v2353
    %v2355 = vxor.u32 %v2333, 2147483648
    %v2356 = vmul.f32 %v2355, 1.442695
    %v2357 = vpow.pop %v2356
    %v2358 = vadd.f32 %v2357, 1.0
    %v2359 = vrcp.pop %v2358
    %v2360 = vmul.f32 %v2358, %v2359
    %v2361 = vsub.f32 1.0, %v2360
    %v2362 = vmul.f32 %v2359, %v2361
    %v2363 = vadd.f32 %v2359, %v2362
    %vm2364 = vweird.f32 %v2358
    %vm2365 = vweird.f32 %v2359
    %vm2366 = vmor %vm2364, %vm2365
    %v2367 = vsel %vm2366, %v2359, %v2363
    %v2368 = vand.u32 2147483647, %v2358
    %vm2369 = vcmp.eq.f32.partialorder %v2368, 8.507059e+37
    %v2370 = vand.u32 %v2358, 2147483648
    %v2371 = vor.u32 1.1754944e-38, %v2370
    %v2372 = vsel %vm2369, %v2371, %v2367
    %v2373 = vmul.f32 1.0, %v2372
    %v2374 = vtanh.pop %v2334
    %v2375 = vxor.u32 %v2335, 2147483648
    %v2376 = vmul.f32 %v2375, 1.442695
    %v2377 = vpow.pop %v2376
    %v2378 = vadd.f32 %v2377, 1.0
    %v2379 = vrcp.pop %v2378
    %v2380 = vmul.f32 %v2378, %v2379
    %v2381 = vsub.f32 1.0, %v2380
    %v2382 = vmul.f32 %v2379, %v2381
    %v2383 = vadd.f32 %v2379, %v2382
    %vm2384 = vweird.f32 %v2378
    %vm2385 = vweird.f32 %v2379
    %vm2386 = vmor %vm2384, %vm2385
    %v2387 = vsel %vm2386, %v2379, %v2383
    %v2388 = vand.u32 2147483647, %v2378
    %vm2389 = vcmp.eq.f32.partialorder %v2388, 8.507059e+37
    %v2390 = vand.u32 %v2378, 2147483648
    %v2391 = vor.u32 1.1754944e-38, %v2390
    %v2392 = vsel %vm2389, %v2391, %v2387
    %v2393 = vmul.f32 1.0, %v2392
    %v2394 = vmul.f32 %v2373, %v2004
    %v2395 = vmul.f32 %v2354, %v2374
    %v2396 = vadd.f32 %v2394, %v2395
    %v2397 = vtanh.pop %v2396
    %v2398 = vmul.f32 %v2393, %v2397
    %2399 = vmatpush.msra.mxu0 %v1099
    %2400 = vmatpush.msra.mxu0 %v1095
    %2401 = vmatpush.msra.mxu0 %v1091
    %2402 = vmatpush.msra.mxu0 %v1087
    %2403 = vmatpush.msra.mxu0 %v1083
    %2404 = vmatpush.msra.mxu0 %v1079
    %2405 = vmatpush.msra.mxu0 %v1075
    %2406 = vmatpush.msra.mxu0 %v1071
    %2407 = vmatpush.msra.mxu0 %v1067
    %2408 = vmatpush.msra.mxu0 %v1063
    %2409 = vmatpush.msra.mxu0 %v1059
    %2410 = vmatpush.msra.mxu0 %v1055
    %2411 = vmatpush.msra.mxu0 %v1051
    %2412 = vmatpush.msra.mxu0 %v1047
    %2413 = vmatpush.msra.mxu0 %v1043
    %2414 = vmatpush.msra.mxu0 %v1039
    %2415 = vmatmul.f32.gmra.mxu0 %v2250
    %v2416 = vpop.f32.mrf.mxu0
    %v2417 = vadd.f32 0.0, %v2416
    %2418 = vdwg.mxu0
    %2419 = vmatpush.msra.mxu0 %v1100
    %2420 = vmatpush.msra.mxu0 %v1096
    %2421 = vmatpush.msra.mxu0 %v1092
    %2422 = vmatpush.msra.mxu0 %v1088
    %2423 = vmatpush.msra.mxu0 %v1084
    %2424 = vmatpush.msra.mxu0 %v1080
    %2425 = vmatpush.msra.mxu0 %v1076
    %2426 = vmatpush.msra.mxu0 %v1072
    %2427 = vmatpush.msra.mxu0 %v1068
    %2428 = vmatpush.msra.mxu0 %v1064
    %2429 = vmatpush.msra.mxu0 %v1060
    %2430 = vmatpush.msra.mxu0 %v1056
    %2431 = vmatpush.msra.mxu0 %v1052
    %2432 = vmatpush.msra.mxu0 %v1048
    %2433 = vmatpush.msra.mxu0 %v1044
    %2434 = vmatpush.msra.mxu0 %v1040
    %2435 = vmatmul.f32.gmra.mxu0 %v2250
    %v2436 = vpop.f32.mrf.mxu0
    %v2437 = vadd.f32 0.0, %v2436
    %2438 = vdwg.mxu0
    %2439 = vmatpush.msra.mxu0 %v1101
    %2440 = vmatpush.msra.mxu0 %v1097
    %2441 = vmatpush.msra.mxu0 %v1093
    %2442 = vmatpush.msra.mxu0 %v1089
    %2443 = vmatpush.msra.mxu0 %v1085
    %2444 = vmatpush.msra.mxu0 %v1081
    %2445 = vmatpush.msra.mxu0 %v1077
    %2446 = vmatpush.msra.mxu0 %v1073
    %2447 = vmatpush.msra.mxu0 %v1069
    %2448 = vmatpush.msra.mxu0 %v1065
    %2449 = vmatpush.msra.mxu0 %v1061
    %2450 = vmatpush.msra.mxu0 %v1057
    %2451 = vmatpush.msra.mxu0 %v1053
    %2452 = vmatpush.msra.mxu0 %v1049
    %2453 = vmatpush.msra.mxu0 %v1045
    %2454 = vmatpush.msra.mxu0 %v1041
    %2455 = vmatmul.f32.gmra.mxu0 %v2250
    %v2456 = vpop.f32.mrf.mxu0
    %v2457 = vadd.f32 0.0, %v2456
    %2458 = vdwg.mxu0
    %2459 = vmatpush.msra.mxu0 %v1102
    %2460 = vmatpush.msra.mxu0 %v1098
    %2461 = vmatpush.msra.mxu0 %v1094
    %2462 = vmatpush.msra.mxu0 %v1090
    %2463 = vmatpush.msra.mxu0 %v1086
    %2464 = vmatpush.msra.mxu0 %v1082
    %2465 = vmatpush.msra.mxu0 %v1078
    %2466 = vmatpush.msra.mxu0 %v1074
    %2467 = vmatpush.msra.mxu0 %v1070
    %2468 = vmatpush.msra.mxu0 %v1066
    %2469 = vmatpush.msra.mxu0 %v1062
    %2470 = vmatpush.msra.mxu0 %v1058
    %2471 = vmatpush.msra.mxu0 %v1054
    %2472 = vmatpush.msra.mxu0 %v1050
    %2473 = vmatpush.msra.mxu0 %v1046
    %2474 = vmatpush.msra.mxu0 %v1042
    %2475 = vmatmul.f32.gmra.mxu0 %v2250
    %v2476 = vpop.f32.mrf.mxu0
    %v2477 = vadd.f32 0.0, %v2476
    %2478 = vdwg.mxu0
    %v2483 = vrot.slane %v2417, 5
    %v2484 = vrot.slane %v2437, 5
    %v2485 = vrot.slane %v2457, 5
    %v2486 = vrot.slane %v2477, 5
    %v2491 = vadd.f32 %v977, %v2483
    %v2492 = vadd.f32 %v997, %v2484
    %v2493 = vadd.f32 %v1017, %v2485
    %v2494 = vadd.f32 %v1037, %v2486
    %v2495 = vxor.u32 %v2491, 2147483648
    %v2496 = vmul.f32 %v2495, 1.442695
    %v2497 = vpow.pop %v2496
    %v2498 = vadd.f32 %v2497, 1.0
    %v2499 = vrcp.pop %v2498
    %v2500 = vmul.f32 %v2498, %v2499
    %v2501 = vsub.f32 1.0, %v2500
    %v2502 = vmul.f32 %v2499, %v2501
    %v2503 = vadd.f32 %v2499, %v2502
    %vm2504 = vweird.f32 %v2498
    %vm2505 = vweird.f32 %v2499
    %vm2506 = vmor %vm2504, %vm2505
    %v2507 = vsel %vm2506, %v2499, %v2503
    %v2508 = vand.u32 2147483647, %v2498
    %vm2509 = vcmp.eq.f32.partialorder %v2508, 8.507059e+37
    %v2510 = vand.u32 %v2498, 2147483648
    %v2511 = vor.u32 1.1754944e-38, %v2510
    %v2512 = vsel %vm2509, %v2511, %v2507
    %v2513 = vmul.f32 1.0, %v2512
    %v2514 = vxor.u32 %v2492, 2147483648
    %v2515 = vmul.f32 %v2514, 1.442695
    %v2516 = vpow.pop %v2515
    %v2517 = vadd.f32 %v2516, 1.0
    %v2518 = vrcp.pop %v2517
    %v2519 = vmul.f32 %v2517, %v2518
    %v2520 = vsub.f32 1.0, %v2519
    %v2521 = vmul.f32 %v2518, %v2520
    %v2522 = vadd.f32 %v2518, %v2521
    %vm2523 = vweird.f32 %v2517
    %vm2524 = vweird.f32 %v2518
    %vm2525 = vmor %vm2523, %vm2524
    %v2526 = vsel %vm2525, %v2518, %v2522
    %v2527 = vand.u32 2147483647, %v2517
    %vm2528 = vcmp.eq.f32.partialorder %v2527, 8.507059e+37
    %v2529 = vand.u32 %v2517, 2147483648
    %v2530 = vor.u32 1.1754944e-38, %v2529
    %v2531 = vsel %vm2528, %v2530, %v2526
    %v2532 = vmul.f32 1.0, %v2531
    %v2533 = vtanh.pop %v2493
    %v2534 = vxor.u32 %v2494, 2147483648
    %v2535 = vmul.f32 %v2534, 1.442695
    %v2536 = vpow.pop %v2535
    %v2537 = vadd.f32 %v2536, 1.0
    %v2538 = vrcp.pop %v2537
    %v2539 = vmul.f32 %v2537, %v2538
    %v2540 = vsub.f32 1.0, %v2539
    %v2541 = vmul.f32 %v2538, %v2540
    %v2542 = vadd.f32 %v2538, %v2541
    %vm2543 = vweird.f32 %v2537
    %vm2544 = vweird.f32 %v2538
    %vm2545 = vmor %vm2543, %vm2544
    %v2546 = vsel %vm2545, %v2538, %v2542
    %v2547 = vand.u32 2147483647, %v2537
    %vm2548 = vcmp.eq.f32.partialorder %v2547, 8.507059e+37
    %v2549 = vand.u32 %v2537, 2147483648
    %v2550 = vor.u32 1.1754944e-38, %v2549
    %v2551 = vsel %vm2548, %v2550, %v2546
    %v2552 = vmul.f32 1.0, %v2551
    %v2554 = vrot.slane %v2166, 7
    %v2556 = vmul.f32 %v2532, %v2554
    %v2557 = vmul.f32 %v2513, %v2533
    %v2558 = vadd.f32 %v2556, %v2557
    %v2559 = vtanh.pop %v2558
    %v2560 = vmul.f32 %v2552, %v2559
    %2561 = vmatpush.msra.mxu0 %v1227
    %2562 = vmatpush.msra.mxu0 %v1223
    %2563 = vmatpush.msra.mxu0 %v1219
    %2564 = vmatpush.msra.mxu0 %v1215
    %2565 = vmatpush.msra.mxu0 %v1211
    %2566 = vmatpush.msra.mxu0 %v1207
    %2567 = vmatpush.msra.mxu0 %v1203
    %2568 = vmatpush.msra.mxu0 %v1199
    %2569 = vmatpush.msra.mxu0 %v1195
    %2570 = vmatpush.msra.mxu0 %v1191
    %2571 = vmatpush.msra.mxu0 %v1187
    %2572 = vmatpush.msra.mxu0 %v1183
    %2573 = vmatpush.msra.mxu0 %v1179
    %2574 = vmatpush.msra.mxu0 %v1175
    %2575 = vmatpush.msra.mxu0 %v1171
    %2576 = vmatpush.msra.mxu0 %v1167
    %2577 = vmatmul.f32.gmra.mxu0 %v2398
    %v2578 = vpop.f32.mrf.mxu0
    %v2579 = vadd.f32 0.0, %v2578
    %2580 = vdwg.mxu0
    %2581 = vmatpush.msra.mxu0 %v1228
    %2582 = vmatpush.msra.mxu0 %v1224
    %2583 = vmatpush.msra.mxu0 %v1220
    %2584 = vmatpush.msra.mxu0 %v1216
    %2585 = vmatpush.msra.mxu0 %v1212
    %2586 = vmatpush.msra.mxu0 %v1208
    %2587 = vmatpush.msra.mxu0 %v1204
    %2588 = vmatpush.msra.mxu0 %v1200
    %2589 = vmatpush.msra.mxu0 %v1196
    %2590 = vmatpush.msra.mxu0 %v1192
    %2591 = vmatpush.msra.mxu0 %v1188
    %2592 = vmatpush.msra.mxu0 %v1184
    %2593 = vmatpush.msra.mxu0 %v1180
    %2594 = vmatpush.msra.mxu0 %v1176
    %2595 = vmatpush.msra.mxu0 %v1172
    %2596 = vmatpush.msra.mxu0 %v1168
    %2597 = vmatmul.f32.gmra.mxu0 %v2398
    %v2598 = vpop.f32.mrf.mxu0
    %v2599 = vadd.f32 0.0, %v2598
    %2600 = vdwg.mxu0
    %2601 = vmatpush.msra.mxu0 %v1229
    %2602 = vmatpush.msra.mxu0 %v1225
    %2603 = vmatpush.msra.mxu0 %v1221
    %2604 = vmatpush.msra.mxu0 %v1217
    %2605 = vmatpush.msra.mxu0 %v1213
    %2606 = vmatpush.msra.mxu0 %v1209
    %2607 = vmatpush.msra.mxu0 %v1205
    %2608 = vmatpush.msra.mxu0 %v1201
    %2609 = vmatpush.msra.mxu0 %v1197
    %2610 = vmatpush.msra.mxu0 %v1193
    %2611 = vmatpush.msra.mxu0 %v1189
    %2612 = vmatpush.msra.mxu0 %v1185
    %2613 = vmatpush.msra.mxu0 %v1181
    %2614 = vmatpush.msra.mxu0 %v1177
    %2615 = vmatpush.msra.mxu0 %v1173
    %2616 = vmatpush.msra.mxu0 %v1169
    %2617 = vmatmul.f32.gmra.mxu0 %v2398
    %v2618 = vpop.f32.mrf.mxu0
    %v2619 = vadd.f32 0.0, %v2618
    %2620 = vdwg.mxu0
    %2621 = vmatpush.msra.mxu0 %v1230
    %2622 = vmatpush.msra.mxu0 %v1226
    %2623 = vmatpush.msra.mxu0 %v1222
    %2624 = vmatpush.msra.mxu0 %v1218
    %2625 = vmatpush.msra.mxu0 %v1214
    %2626 = vmatpush.msra.mxu0 %v1210
    %2627 = vmatpush.msra.mxu0 %v1206
    %2628 = vmatpush.msra.mxu0 %v1202
    %2629 = vmatpush.msra.mxu0 %v1198
    %2630 = vmatpush.msra.mxu0 %v1194
    %2631 = vmatpush.msra.mxu0 %v1190
    %2632 = vmatpush.msra.mxu0 %v1186
    %2633 = vmatpush.msra.mxu0 %v1182
    %2634 = vmatpush.msra.mxu0 %v1178
    %2635 = vmatpush.msra.mxu0 %v1174
    %2636 = vmatpush.msra.mxu0 %v1170
    %2637 = vmatmul.f32.gmra.mxu0 %v2398
    %v2638 = vpop.f32.mrf.mxu0
    %v2639 = vadd.f32 0.0, %v2638
    %2640 = vdwg.mxu0
    %v2642 = vrot.slane %v2560, 3
    %2644 = vmatpush.msra.mxu0 %v1163
    %2645 = vmatpush.msra.mxu0 %v1159
    %2646 = vmatpush.msra.mxu0 %v1155
    %2647 = vmatpush.msra.mxu0 %v1151
    %2648 = vmatpush.msra.mxu0 %v1147
    %2649 = vmatpush.msra.mxu0 %v1143
    %2650 = vmatpush.msra.mxu0 %v1139
    %2651 = vmatpush.msra.mxu0 %v1135
    %2652 = vmatpush.msra.mxu0 %v1131
    %2653 = vmatpush.msra.mxu0 %v1127
    %2654 = vmatpush.msra.mxu0 %v1123
    %2655 = vmatpush.msra.mxu0 %v1119
    %2656 = vmatpush.msra.mxu0 %v1115
    %2657 = vmatpush.msra.mxu0 %v1111
    %2658 = vmatpush.msra.mxu0 %v1107
    %2659 = vmatpush.msra.mxu0 %v1103
    %2660 = vmatmul.f32.gmra.mxu0 %v2642
    %v2661 = vpop.f32.mrf.mxu0
    %v2662 = vadd.f32 %v2579, %v2661
    %2663 = vdwg.mxu0
    %2664 = vmatpush.msra.mxu0 %v1164
    %2665 = vmatpush.msra.mxu0 %v1160
    %2666 = vmatpush.msra.mxu0 %v1156
    %2667 = vmatpush.msra.mxu0 %v1152
    %2668 = vmatpush.msra.mxu0 %v1148
    %2669 = vmatpush.msra.mxu0 %v1144
    %2670 = vmatpush.msra.mxu0 %v1140
    %2671 = vmatpush.msra.mxu0 %v1136
    %2672 = vmatpush.msra.mxu0 %v1132
    %2673 = vmatpush.msra.mxu0 %v1128
    %2674 = vmatpush.msra.mxu0 %v1124
    %2675 = vmatpush.msra.mxu0 %v1120
    %2676 = vmatpush.msra.mxu0 %v1116
    %2677 = vmatpush.msra.mxu0 %v1112
    %2678 = vmatpush.msra.mxu0 %v1108
    %2679 = vmatpush.msra.mxu0 %v1104
    %2680 = vmatmul.f32.gmra.mxu0 %v2642
    %v2681 = vpop.f32.mrf.mxu0
    %v2682 = vadd.f32 %v2599, %v2681
    %2683 = vdwg.mxu0
    %2684 = vmatpush.msra.mxu0 %v1165
    %2685 = vmatpush.msra.mxu0 %v1161
    %2686 = vmatpush.msra.mxu0 %v1157
    %2687 = vmatpush.msra.mxu0 %v1153
    %2688 = vmatpush.msra.mxu0 %v1149
    %2689 = vmatpush.msra.mxu0 %v1145
    %2690 = vmatpush.msra.mxu0 %v1141
    %2691 = vmatpush.msra.mxu0 %v1137
    %2692 = vmatpush.msra.mxu0 %v1133
    %2693 = vmatpush.msra.mxu0 %v1129
    %2694 = vmatpush.msra.mxu0 %v1125
    %2695 = vmatpush.msra.mxu0 %v1121
    %2696 = vmatpush.msra.mxu0 %v1117
    %2697 = vmatpush.msra.mxu0 %v1113
    %2698 = vmatpush.msra.mxu0 %v1109
    %2699 = vmatpush.msra.mxu0 %v1105
    %2700 = vmatmul.f32.gmra.mxu0 %v2642
    %v2701 = vpop.f32.mrf.mxu0
    %v2702 = vadd.f32 %v2619, %v2701
    %2703 = vdwg.mxu0
    %2704 = vmatpush.msra.mxu0 %v1166
    %2705 = vmatpush.msra.mxu0 %v1162
    %2706 = vmatpush.msra.mxu0 %v1158
    %2707 = vmatpush.msra.mxu0 %v1154
    %2708 = vmatpush.msra.mxu0 %v1150
    %2709 = vmatpush.msra.mxu0 %v1146
    %2710 = vmatpush.msra.mxu0 %v1142
    %2711 = vmatpush.msra.mxu0 %v1138
    %2712 = vmatpush.msra.mxu0 %v1134
    %2713 = vmatpush.msra.mxu0 %v1130
    %2714 = vmatpush.msra.mxu0 %v1126
    %2715 = vmatpush.msra.mxu0 %v1122
    %2716 = vmatpush.msra.mxu0 %v1118
    %2717 = vmatpush.msra.mxu0 %v1114
    %2718 = vmatpush.msra.mxu0 %v1110
    %2719 = vmatpush.msra.mxu0 %v1106
    %2720 = vmatmul.f32.gmra.mxu0 %v2642
    %v2721 = vpop.f32.mrf.mxu0
    %v2722 = vadd.f32 %v2639, %v2721
    %2723 = vdwg.mxu0
    %v2724 = vadd.f32 %v2662, %v1540
    %v2725 = vadd.f32 %v2682, %v1541
    %v2726 = vadd.f32 %v2702, %v1542
    %v2727 = vadd.f32 %v2722, %v1543
    %v2728 = vxor.u32 %v2724, 2147483648
    %v2729 = vmul.f32 %v2728, 1.442695
    %v2730 = vpow.pop %v2729
    %v2731 = vadd.f32 %v2730, 1.0
    %v2732 = vrcp.pop %v2731
    %v2733 = vmul.f32 %v2731, %v2732
    %v2734 = vsub.f32 1.0, %v2733
    %v2735 = vmul.f32 %v2732, %v2734
    %v2736 = vadd.f32 %v2732, %v2735
    %vm2737 = vweird.f32 %v2731
    %vm2738 = vweird.f32 %v2732
    %vm2739 = vmor %vm2737, %vm2738
    %v2740 = vsel %vm2739, %v2732, %v2736
    %v2741 = vand.u32 2147483647, %v2731
    %vm2742 = vcmp.eq.f32.partialorder %v2741, 8.507059e+37
    %v2743 = vand.u32 %v2731, 2147483648
    %v2744 = vor.u32 1.1754944e-38, %v2743
    %v2745 = vsel %vm2742, %v2744, %v2740
    %v2746 = vmul.f32 1.0, %v2745
    %v2747 = vxor.u32 %v2725, 2147483648
    %v2748 = vmul.f32 %v2747, 1.442695
    %v2749 = vpow.pop %v2748
    %v2750 = vadd.f32 %v2749, 1.0
    %v2751 = vrcp.pop %v2750
    %v2752 = vmul.f32 %v2750, %v2751
    %v2753 = vsub.f32 1.0, %v2752
    %v2754 = vmul.f32 %v2751, %v2753
    %v2755 = vadd.f32 %v2751, %v2754
    %vm2756 = vweird.f32 %v2750
    %vm2757 = vweird.f32 %v2751
    %vm2758 = vmor %vm2756, %vm2757
    %v2759 = vsel %vm2758, %v2751, %v2755
    %v2760 = vand.u32 2147483647, %v2750
    %vm2761 = vcmp.eq.f32.partialorder %v2760, 8.507059e+37
    %v2762 = vand.u32 %v2750, 2147483648
    %v2763 = vor.u32 1.1754944e-38, %v2762
    %v2764 = vsel %vm2761, %v2763, %v2759
    %v2765 = vmul.f32 1.0, %v2764
    %v2766 = vtanh.pop %v2726
    %v2767 = vxor.u32 %v2727, 2147483648
    %v2768 = vmul.f32 %v2767, 1.442695
    %v2769 = vpow.pop %v2768
    %v2770 = vadd.f32 %v2769, 1.0
    %v2771 = vrcp.pop %v2770
    %v2772 = vmul.f32 %v2770, %v2771
    %v2773 = vsub.f32 1.0, %v2772
    %v2774 = vmul.f32 %v2771, %v2773
    %v2775 = vadd.f32 %v2771, %v2774
    %vm2776 = vweird.f32 %v2770
    %vm2777 = vweird.f32 %v2771
    %vm2778 = vmor %vm2776, %vm2777
    %v2779 = vsel %vm2778, %v2771, %v2775
    %v2780 = vand.u32 2147483647, %v2770
    %vm2781 = vcmp.eq.f32.partialorder %v2780, 8.507059e+37
    %v2782 = vand.u32 %v2770, 2147483648
    %v2783 = vor.u32 1.1754944e-38, %v2782
    %v2784 = vsel %vm2781, %v2783, %v2779
    %v2785 = vmul.f32 1.0, %v2784
    %v2786 = vmul.f32 %v2765, %v2396
    %v2787 = vmul.f32 %v2746, %v2766
    %v2788 = vadd.f32 %v2786, %v2787
    %v2789 = vtanh.pop %v2788
    %v2790 = vmul.f32 %v2785, %v2789
    %v2792 = vrot.slane %v2006, 7
    %v2795 = vrot.slane %v2398, 6
    %v2798 = vrot.slane %v2790, 5
    %vm2800 = vcmask 1040384
    %v2801 = vsel %vm2800, %v1614, %v2792
    %vm2802 = vcmask 1041408
    %v2803 = vsel %vm2802, %v2801, %v2795
    %vm2804 = vcmask 1042432
    %v2805 = vsel %vm2804, %v2803, %v2798
    %v2806 = vld [vmem:[#allocation23] sm:$0xff]
    %v2807 = vld [vmem:[#allocation23 + $0x8] sm:$0xff]
    %v2808 = vld [vmem:[#allocation23 + $0x10] sm:$0xff]
    %v2809 = vld [vmem:[#allocation23 + $0x18] sm:$0xff]
    %v2810 = vld [vmem:[#allocation23 + $0x20] sm:$0xff]
    %v2811 = vld [vmem:[#allocation23 + $0x28] sm:$0xff]
    %v2812 = vld [vmem:[#allocation23 + $0x30] sm:$0xff]
    %v2813 = vld [vmem:[#allocation23 + $0x38] sm:$0xff]
    %v2814 = vld [vmem:[#allocation23 + $0x40] sm:$0xff]
    %v2815 = vld [vmem:[#allocation23 + $0x48] sm:$0xff]
    %v2816 = vld [vmem:[#allocation23 + $0x50] sm:$0xff]
    %v2817 = vld [vmem:[#allocation23 + $0x58] sm:$0xff]
    %v2818 = vld [vmem:[#allocation23 + $0x60] sm:$0xff]
    %v2819 = vld [vmem:[#allocation23 + $0x68] sm:$0xff]
    %v2820 = vld [vmem:[#allocation23 + $0x70] sm:$0xff]
    %v2821 = vld [vmem:[#allocation23 + $0x78] sm:$0xff]
    %v2822 = vld [vmem:[%s16] sm:$0x1]
    %v2824 = vperm.slane %v2822, 0
    %2826 = vmatpush.msra.mxu0 %v2821
    %2827 = vmatpush.msra.mxu0 %v2820
    %2828 = vmatpush.msra.mxu0 %v2819
    %2829 = vmatpush.msra.mxu0 %v2818
    %2830 = vmatpush.msra.mxu0 %v2817
    %2831 = vmatpush.msra.mxu0 %v2816
    %2832 = vmatpush.msra.mxu0 %v2815
    %2833 = vmatpush.msra.mxu0 %v2814
    %2834 = vmatpush.msra.mxu0 %v2813
    %2835 = vmatpush.msra.mxu0 %v2812
    %2836 = vmatpush.msra.mxu0 %v2811
    %2837 = vmatpush.msra.mxu0 %v2810
    %2838 = vmatpush.msra.mxu0 %v2809
    %2839 = vmatpush.msra.mxu0 %v2808
    %2840 = vmatpush.msra.mxu0 %v2807
    %2841 = vmatpush.msra.mxu0 %v2806
    %2842 = vmatmul.f32.gmra.mxu0 %v2805
    %v2843 = vpop.f32.mrf.mxu0
    %v2844 = vadd.f32 %v2824, %v2843
    %2845 = vdwg.mxu0
    %2846 = vst [vmem:[#allocation25] sm:$0xf] %v2844
    // Predicated region
    $region126: #{tpu_custom_call.1} parent=1 // pred_check
      _
    $region127: #{tpu_custom_call.1} parent=1 // pred_check_branch
      %2848 = sbr.rel (0) target = $region129
    $region128: #{tpu_custom_call.1} parent=1 // pred_region
      %2850 = vsyncadd [#allocation4], 0
      %s2852 = sshll.u32 [#allocation25], 4
      %s2853 = int_to_ptr.vmem [resolvable:$true] %s2852
      %s2854 = sshll.u32 %s17, 4
      %s2855 = int_to_ptr.hbm [resolvable:$true] %s2854
      %2857 = dma.vmem_to_hbm [thread:$0]  %s2853, 64, %s2855, [#allocation4]
    $region129: #{tpu_custom_call.1} parent=1 // pred_fallthru
      _
    // Predicated region
    $region130: #{tpu_custom_call.1} parent=1 // pred_check
      _
    $region131: #{tpu_custom_call.1} parent=1 // pred_check_branch
      %2859 = sbr.rel (0) target = $region133
    $region132: #{tpu_custom_call.1} parent=1 // pred_region
      %2861 = dma.done [#allocation4], 64
    $region133: #{tpu_custom_call.1} parent=1 // pred_fallthru
      _
    %2862 = vsyncpa [#allocation3], 1
    %2863 = vsyncpa [#allocation6], 1
    %2864 = vsyncpa [#allocation9], 1
    %2865 = vsyncpa [#allocation12], 1
    %2866 = vsyncpa [#allocation15], 1
    %2867 = vsyncpa [#allocation18], 1
    %2868 = vsyncpa [#allocation21], 1
    %2869 = vsyncpa [#allocation24], 1
    %2870 = vsyncpa [#allocation4], 1

</llo_original>
